<compile_context>
chip_gen: v7x
topology: tpu7x:2x2x1
jax: 0.10.0
libtpu: 0.0.40
codegen_flags: <defaults>
</compile_context>

<pallas_src>
import jax
import jax.numpy as jnp
from jax import lax
from jax.experimental import pallas as pl
from jax.experimental.pallas import tpu as pltpu

IN_FEATURES = 768 * 4 ** 3   # 49152
HIDDEN = 12
NUM_CLASSES = 4

K_TILE = 12288               # 4 K-steps; multiple of 128 (lane width)
MAX_TILE_B = 64              # multiple of 8; sized for v7x's smaller VMEM


def _classifier_kernel(x_ref, w1_ref, b1_ref, w2_ref, b2_ref, out_ref, acc_ref):
    """Grid = (batch_tiles, k_tiles); K is the innermost (reduction) axis.

    x_ref  : (TILE_B, K_TILE)        f32
    w1_ref : (HIDDEN, K_TILE)        bf16  -- PyTorch (out, in) layout, lane-dense K
    b1_ref : (1, HIDDEN)             f32
    w2_ref : (HIDDEN, NUM_CLASSES)   f32
    b2_ref : (1, NUM_CLASSES)        f32
    out_ref: (TILE_B, NUM_CLASSES)   f32 softmax probabilities
    acc_ref: (TILE_B, HIDDEN)        f32 scratch accumulator
    """
    k = pl.program_id(1)

    @pl.when(k == 0)
    def _init():
        acc_ref[...] = jnp.zeros_like(acc_ref)

    # bf16 x bf16 -> f32 accumulation on the MXU, contracting the lane (K)
    # dims of both operands.  Any RHS relayout is hidden under the next
    # K-chunk's DMA thanks to the K grid.
    x_chunk = x_ref[...].astype(jnp.bfloat16)
    acc_ref[...] += lax.dot_general(
        x_chunk, w1_ref[...],
        dimension_numbers=(((1,), (1,)), ((), ())),
        preferred_element_type=jnp.float32,
    )

    @pl.when(k == pl.num_programs(1) - 1)
    def _finalize():
        # Bias + ReLU (f32 vector math — v5e VPU has no bf16).
        h = jnp.maximum(acc_ref[...] + b1_ref[...], 0.0)
        # Tiny second linear + bias.
        logits = jnp.dot(h, w2_ref[...],
                         preferred_element_type=jnp.float32) + b2_ref[...]
        # Numerically stable softmax over dim=1 (classes).
        m = jnp.max(logits, axis=-1, keepdims=True)
        e = jnp.exp(logits - m)
        out_ref[...] = (e / jnp.sum(e, axis=-1, keepdims=True)).astype(out_ref.dtype)


def classifier_forward(x, w1, b1, w2, b2):
    """x: (B, 768, 4, 4, 4) f32, w1: (12, 49152) bf16 (PyTorch (out,in) layout),
    b1: (12,), w2: (12, 4), b2: (4,)  ->  (B, 4) softmax probabilities (f32)."""
    B = x.shape[0]
    x2d = jnp.reshape(x, (B, IN_FEATURES))     # same order as torch Flatten (NCDHW contiguous)
    assert w1.shape == (HIDDEN, IN_FEATURES)
    assert IN_FEATURES % K_TILE == 0

    w1_bf16 = w1.astype(jnp.bfloat16)          # no-op if already stored bf16
    b1_2d = jnp.reshape(b1, (1, HIDDEN)).astype(jnp.float32)
    w2_f32 = w2.astype(jnp.float32)
    b2_2d = jnp.reshape(b2, (1, NUM_CLASSES)).astype(jnp.float32)

    # Batch tiling: a single tile for small B, otherwise MAX_TILE_B-row tiles
    # (multiple of 8) with zero-padding so the (8,128) block rule holds and
    # VMEM stays bounded for any batch size.
    if B <= MAX_TILE_B:
        tile_b, b_pad = B, B
    else:
        tile_b = MAX_TILE_B
        b_pad = ((B + tile_b - 1) // tile_b) * tile_b
    if b_pad != B:
        x2d = jnp.pad(x2d, ((0, b_pad - B), (0, 0)))

    num_b = b_pad // tile_b
    num_k = IN_FEATURES // K_TILE

    pinned = lambda b, k: (0, 0)

    out = pl.pallas_call(
        _classifier_kernel,
        out_shape=jax.ShapeDtypeStruct((b_pad, NUM_CLASSES), jnp.float32),
        grid_spec=pltpu.PrefetchScalarGridSpec(
            num_scalar_prefetch=0,
            grid=(num_b, num_k),               # reduction axis (K) last
            in_specs=[
                pl.BlockSpec((tile_b, K_TILE), lambda b, k: (b, k)),        # x
                pl.BlockSpec((HIDDEN, K_TILE), lambda b, k: (0, k)),        # W1 (bf16)
                pl.BlockSpec((1, HIDDEN), pinned),                          # b1
                pl.BlockSpec((HIDDEN, NUM_CLASSES), pinned),                # W2
                pl.BlockSpec((1, NUM_CLASSES), pinned),                     # b2
            ],
            out_specs=pl.BlockSpec((tile_b, NUM_CLASSES), lambda b, k: (b, 0)),
            scratch_shapes=[pltpu.VMEM((tile_b, HIDDEN), jnp.float32)],
        ),
        compiler_params=pltpu.CompilerParams(
            dimension_semantics=("parallel", "arbitrary"),
            vmem_limit_bytes=32 << 20,   # ~7 MB used at TILE_B=64; safe on v5e/v6e/v7x
        ),
    )(x2d, w1_bf16, b1_2d, w2_f32, b2_2d)

    return out[:B]


def init_params(key):
    """PyTorch-style Linear init (uniform +/- 1/sqrt(fan_in)).

    W1 is produced directly in PyTorch's (out_features, in_features) layout and
    stored as bfloat16 (the kernel's weight dtype); everything else stays f32.
    """
    k1, k2, k3, k4 = jax.random.split(key, 4)
    bound1 = 1.0 / jnp.sqrt(jnp.float32(IN_FEATURES))
    bound2 = 1.0 / jnp.sqrt(jnp.float32(HIDDEN))
    w1 = jax.random.uniform(k1, (HIDDEN, IN_FEATURES), jnp.float32,
                            -bound1, bound1).astype(jnp.bfloat16)
    b1 = jax.random.uniform(k2, (HIDDEN,), jnp.float32, -bound1, bound1)
    w2 = jax.random.uniform(k3, (HIDDEN, NUM_CLASSES), jnp.float32, -bound2, bound2)
    b2 = jax.random.uniform(k4, (NUM_CLASSES,), jnp.float32, -bound2, bound2)
    return w1, b1, w2, b2


if __name__ == "__main__":
    key = jax.random.PRNGKey(0)
    kx, kp = jax.random.split(key)

    # Small batch; (B, 768, 4, 4, 4) flattens to exactly 768*4**3 features.
    B = 2
    x = jax.random.normal(kx, (B, 768, 4, 4, 4), dtype=jnp.float32)
    w1, b1, w2, b2 = init_params(kp)

    out = classifier_forward(x, w1, b1, w2, b2)
    out = jax.block_until_ready(out)

    # Pure-JAX reference with matching numerics (bf16 x bf16 -> f32 accum).
    x2d = x.reshape(B, -1)
    h_ref = jnp.dot(x2d.astype(jnp.bfloat16), w1.T,
                    preferred_element_type=jnp.float32) + b1
    h_ref = jnp.maximum(h_ref, 0.0)
    logits_ref = jnp.dot(h_ref, w2, preferred_element_type=jnp.float32) + b2
    ref = jax.nn.softmax(logits_ref, axis=1)

    assert out.shape == (B, NUM_CLASSES)
    assert jnp.allclose(jnp.sum(out, axis=1), 1.0, atol=1e-5)
    # Small slack for K-chunked f32 accumulation order vs. XLA's single dot.
    assert jnp.allclose(out, ref, atol=2e-4, rtol=2e-3), (out, ref)

    print("KERNEL_OK")
</pallas_src>

<mosaic_0001>
module attributes {stable_mosaic.version = 11 : i64} {
  func.func @_classifier_kernel(%arg0: i32, %arg1: i32, %arg2: memref<2x12288xf32, #tpu.memory_space<vmem>>, %arg3: memref<12x12288xbf16, #tpu.memory_space<vmem>>, %arg4: memref<1x12xf32, #tpu.memory_space<vmem>>, %arg5: memref<12x4xf32, #tpu.memory_space<vmem>>, %arg6: memref<1x4xf32, #tpu.memory_space<vmem>>, %arg7: memref<2x4xf32, #tpu.memory_space<vmem>>, %arg8: memref<2x12xf32, #tpu.memory_space<vmem>>) attributes {dimension_semantics = [#tpu.dimension_semantics<parallel>, #tpu.dimension_semantics<arbitrary>], iteration_bounds = array<i64: 1, 4>, scalar_prefetch = 0 : i64, scratch_operands = 1 : i64, tpu.core_type = #tpu.core_type<tc>, window_params = [{transform_indices = @transform_0, window_bounds = array<i64: 2, 12288>}, {transform_indices = @transform_1, window_bounds = array<i64: 12, 12288>}, {pipeline_mode = #tpu.pipeline_mode<synchronous>, transform_indices = @transform_2, window_bounds = array<i64: 1, 12>}, {pipeline_mode = #tpu.pipeline_mode<synchronous>, transform_indices = @transform_3, window_bounds = array<i64: 12, 4>}, {pipeline_mode = #tpu.pipeline_mode<synchronous>, transform_indices = @transform_4, window_bounds = array<i64: 1, 4>}, {transform_indices = @transform_5, window_bounds = array<i64: 2, 4>}]} {
    %c0_i32 = arith.constant 0 : i32
    %0 = arith.cmpi eq, %arg1, %c0_i32 : i32
    %1 = arith.extui %0 : i1 to i32
    %c0_i32_0 = arith.constant 0 : i32
    %2 = arith.cmpi ne, %1, %c0_i32_0 : i32
    scf.if %2 {
      %cst_9 = arith.constant 0.000000e+00 : f32
      %13 = vector.broadcast %cst_9 : f32 to vector<2x12xf32>
      %c0_10 = arith.constant 0 : index
      %c0_11 = arith.constant 0 : index
      %14 = vector.load %arg8[%c0_10, %c0_11] : memref<2x12xf32, #tpu.memory_space<vmem>>, vector<2x12xf32>
      tpu.vector_store %arg8[%c0_10, %c0_11], %13 {strides = array<i32>} : memref<2x12xf32, #tpu.memory_space<vmem>>, vector<2x12xf32>,
    } else {
    }
    %c0 = arith.constant 0 : index
    %c0_1 = arith.constant 0 : index
    %3 = vector.load %arg2[%c0, %c0_1] : memref<2x12288xf32, #tpu.memory_space<vmem>>, vector<2x12288xf32>
    %4 = arith.truncf %3 : vector<2x12288xf32> to vector<2x12288xbf16>
    %c0_2 = arith.constant 0 : index
    %c0_3 = arith.constant 0 : index
    %5 = vector.load %arg8[%c0_2, %c0_3] : memref<2x12xf32, #tpu.memory_space<vmem>>, vector<2x12xf32>
    %c0_4 = arith.constant 0 : index
    %c0_5 = arith.constant 0 : index
    %6 = vector.load %arg3[%c0_4, %c0_5] : memref<12x12288xbf16, #tpu.memory_space<vmem>>, vector<12x12288xbf16>
    %cst = arith.constant dense<0.000000e+00> : vector<2x12xf32>
    %7 = tpu.matmul %4, %6, %cst {dimension_numbers = #tpu.dot_dimension_numbers<[1], [1], [0], [0], [0, 0, 1, 0], [], []>} : vector<2x12288xbf16>, vector<12x12288xbf16>, vector<2x12xf32> -> vector<2x12xf32>
    %8 = arith.addf %5, %7 : vector<2x12xf32>
    %c0_6 = arith.constant 0 : index
    %c0_7 = arith.constant 0 : index
    %9 = vector.load %arg8[%c0_6, %c0_7] : memref<2x12xf32, #tpu.memory_space<vmem>>, vector<2x12xf32>
    tpu.vector_store %arg8[%c0_6, %c0_7], %8 {strides = array<i32>} : memref<2x12xf32, #tpu.memory_space<vmem>>, vector<2x12xf32>,
    %c3_i32 = arith.constant 3 : i32
    %10 = arith.cmpi eq, %arg1, %c3_i32 : i32
    %11 = arith.extui %10 : i1 to i32
    %c0_i32_8 = arith.constant 0 : i32
    %12 = arith.cmpi ne, %11, %c0_i32_8 : i32
    scf.if %12 {
      %c0_9 = arith.constant 0 : index
      %c0_10 = arith.constant 0 : index
      %13 = vector.load %arg8[%c0_9, %c0_10] : memref<2x12xf32, #tpu.memory_space<vmem>>, vector<2x12xf32>
      %c0_11 = arith.constant 0 : index
      %c0_12 = arith.constant 0 : index
      %14 = vector.load %arg4[%c0_11, %c0_12] : memref<1x12xf32, #tpu.memory_space<vmem>>, vector<1x12xf32>
      %15 = vector.broadcast %14 : vector<1x12xf32> to vector<2x12xf32>
      %16 = arith.addf %13, %15 : vector<2x12xf32>
      %cst_13 = arith.constant 0.000000e+00 : f32
      %17 = vector.broadcast %cst_13 : f32 to vector<2x12xf32>
      %18 = arith.maximumf %16, %17 : vector<2x12xf32>
      %c0_14 = arith.constant 0 : index
      %c0_15 = arith.constant 0 : index
      %19 = vector.load %arg5[%c0_14, %c0_15] : memref<12x4xf32, #tpu.memory_space<vmem>>, vector<12x4xf32>
      %cst_16 = arith.constant dense<0.000000e+00> : vector<2x4xf32>
      %20 = tpu.matmul %18, %19, %cst_16 {dimension_numbers = #tpu.dot_dimension_numbers<[1], [0], [0], [1], [0, 0, 1, 1], [], []>} : vector<2x12xf32>, vector<12x4xf32>, vector<2x4xf32> -> vector<2x4xf32>
      %c0_17 = arith.constant 0 : index
      %c0_18 = arith.constant 0 : index
      %21 = vector.load %arg6[%c0_17, %c0_18] : memref<1x4xf32, #tpu.memory_space<vmem>>, vector<1x4xf32>
      %22 = vector.broadcast %21 : vector<1x4xf32> to vector<2x4xf32>
      %23 = arith.addf %20, %22 : vector<2x4xf32>
      %cst_19 = arith.constant dense<0xFF800000> : vector<2xf32>
      %24 = vector.multi_reduction <maximumf>, %23, %cst_19 [1] : vector<2x4xf32> to vector<2xf32>
      %25 = vector.shape_cast %24 : vector<2xf32> to vector<2x1xf32>
      %26 = vector.broadcast %25 : vector<2x1xf32> to vector<2x4xf32>
      %27 = arith.subf %23, %26 : vector<2x4xf32>
      %28 = math.exp %27 : vector<2x4xf32>
      %cst_20 = arith.constant dense<0.000000e+00> : vector<2xf32>
      %29 = vector.multi_reduction <add>, %28, %cst_20 [1] : vector<2x4xf32> to vector<2xf32>
      %30 = vector.shape_cast %29 : vector<2xf32> to vector<2x1xf32>
      %31 = vector.broadcast %30 : vector<2x1xf32> to vector<2x4xf32>
      %32 = arith.divf %28, %31 : vector<2x4xf32>
      %c0_21 = arith.constant 0 : index
      %c0_22 = arith.constant 0 : index
      %33 = vector.load %arg7[%c0_21, %c0_22] : memref<2x4xf32, #tpu.memory_space<vmem>>, vector<2x4xf32>
      tpu.vector_store %arg7[%c0_21, %c0_22], %32 {strides = array<i32>} : memref<2x4xf32, #tpu.memory_space<vmem>>, vector<2x4xf32>,
    } else {
    }
    return
  }
  func.func @transform_0(%arg0: i32, %arg1: i32) -> (i32, i32) {
    %c0_i32 = arith.constant 0 : i32
    return %arg0, %arg1 : i32, i32
  }
  func.func @transform_1(%arg0: i32, %arg1: i32) -> (i32, i32) {
    %c0_i32 = arith.constant 0 : i32
    %c0_i32_0 = arith.constant 0 : i32
    return %c0_i32, %arg1 : i32, i32
  }
  func.func @transform_2(%arg0: i32, %arg1: i32) -> (i32, i32) {
    %c0_i32 = arith.constant 0 : i32
    %c0_i32_0 = arith.constant 0 : i32
    %c0_i32_1 = arith.constant 0 : i32
    return %c0_i32, %c0_i32_0 : i32, i32
  }
  func.func @transform_3(%arg0: i32, %arg1: i32) -> (i32, i32) {
    %c0_i32 = arith.constant 0 : i32
    %c0_i32_0 = arith.constant 0 : i32
    %c0_i32_1 = arith.constant 0 : i32
    return %c0_i32, %c0_i32_0 : i32, i32
  }
  func.func @transform_4(%arg0: i32, %arg1: i32) -> (i32, i32) {
    %c0_i32 = arith.constant 0 : i32
    %c0_i32_0 = arith.constant 0 : i32
    %c0_i32_1 = arith.constant 0 : i32
    return %c0_i32, %c0_i32_0 : i32, i32
  }
  func.func @transform_5(%arg0: i32, %arg1: i32) -> (i32, i32) {
    %c0_i32 = arith.constant 0 : i32
    %c0_i32_0 = arith.constant 0 : i32
    return %arg0, %c0_i32 : i32, i32
  }
}

</mosaic_0001>

<llo_original>
// kernel: tpu_custom_call.1
$region0: #{tpu_custom_call.1}
  #allocation0 [shape = 'u32[]', space=smem, size = 0x4, offset = 0x4, fixed_abs, tag = 'smem constant byte address 0x4 - core index']
  #allocation1 [shape = 'u32[144,128]{1,0:T(1,128)}', space=vmem, size = 0x12000, scoped, tag = 'internal scratch']
  #allocation2 [shape = 'f32[2,12]{1,0:T(2,128)}', space=vmem, size = 0x400, scoped, tag = 'scratch operand']
  %s0 = inlined_call_operand.hbm [shape: f32[2,49152], index: 0, kind: input, shape index: {}]
  %s1 = inlined_call_operand.hbm [shape: bf16[12,49152], index: 1, kind: input, shape index: {}]
  %s2 = inlined_call_operand.hbm [shape: f32[1,12], index: 2, kind: input, shape index: {}]
  %s3 = inlined_call_operand.vmem [shape: f32[12,4], index: 3, kind: input, shape index: {}]
  %s4 = inlined_call_operand.hbm [shape: f32[1,4], index: 4, kind: input, shape index: {}]
  %s5 = inlined_call_operand.hbm [shape: f32[2,4], index: 5, kind: output, shape index: {}]
  %s6 = sld [smem:[#allocation0]]
  $region77: #{tpu_custom_call.1} parent=0
    _
  %s8 = ssub.s32 1, %s6
  %s9 = scalar_select 0, %s8, %s6
  $region1: #{tpu_custom_call.1} parent=0
    #allocation3 [shape = 'u8[196608]{0}', space=vmem, size = 0x30000, scoped, tag = 'input window, operand 0']
    #allocation4 [shape = 's32[2]{0}', space=sflag, size = 0x8, scoped, tag = 'scoped memory for tpu_custom_call.1']
    #allocation5 [shape = 's32[2]{0}', space=sflag, size = 0x8, scoped, tag = 'scoped memory for tpu_custom_call.1']
    #allocation6 [shape = 'u8[786432]{0}', space=vmem, size = 0xc0000, scoped, tag = 'input window, operand 1']
    #allocation7 [shape = 's32[2]{0}', space=sflag, size = 0x8, scoped, tag = 'scoped memory for tpu_custom_call.1']
    #allocation8 [shape = 'u8[512]{0}', space=vmem, size = 0x400, scoped, tag = 'input window, operand 2, single buffered']
    #allocation9 [shape = 'u8[512]{0}', space=vmem, size = 0x400, scoped, tag = 'input window, operand 4, single buffered']
    #allocation10 [shape = 's32[1]{0}', space=sflag, size = 0x4, scoped, tag = 'scoped memory for tpu_custom_call.1']
    #allocation11 [shape = 'u8[1024]{0}', space=vmem, size = 0x400, scoped, tag = 'output window, operand 0, single buffered']
    %10 = vsyncpa [#allocation4], 0
    %s11 = scalar_lea.sflag [#allocation4], 1
    %12 = vsyncpa %s11, 0
    %13 = vsyncpa [#allocation7], 0
    %s14 = scalar_lea.sflag [#allocation7], 1
    %15 = vsyncpa %s14, 0
    %16 = vsyncpa [#allocation10], 0
    %17 = vsyncpa [#allocation5], 0
    loop: start=0, step=1, limit=6
    $region2: #{tpu_custom_call.1} parent=1 // loop_pre_header
      _
    $region3: #{tpu_custom_call.1} parent=1 // loop_header
      %s19 = sphi 0, %s23
      %p20 = scmp.ge.s32.totalorder %s19, 6
      %s26 = sphi 0, %s38
      %s27 = sphi 0, %s34
      %s28 = sphi 0, %s26
      %s29 = sphi 0, %s27
      %s30 = sphi 0, %s28
      %s31 = sphi 0, %s29
      %s43 = sphi 0, %s45
      %s46 = sphi 0, %s43
      %s47 = sphi 0, %s46
      %s63 = sphi 0, %s47
      %s69 = sphi 0, %s71
      %s72 = sphi 0, %s69
      %s73 = sphi 0, %s72
      %s89 = sphi 0, %s73
      %s93 = sphi 0, %s93
      %s95 = sphi 0, %s93
      %s96 = sphi 0, %s95
      %s110 = sphi 0, %s96
      %s114 = sphi 0, %s114
      %s116 = sphi 0, %s114
      %s117 = sphi 0, %s116
      %s131 = sphi 0, %s117
      %s135 = sphi 0, %s135
      %s137 = sphi 0, %s135
      %s138 = sphi 0, %s137
      %s152 = sphi 0, %s138
      %s158 = sphi 0, %s160
      %s161 = sphi 0, %s158
      %s162 = sphi 0, %s161
      %s178 = sphi 0, %s162
    $region4: #{tpu_custom_call.1} parent=1 // loop_header_branch
      %22 = sbr.rel (%p20) target = $region8
    $region5: #{tpu_custom_call.1} parent=1 // loop_body
      %s24 = ssub.s32 %s19, 1
      %s25 = ssub.s32 %s19, 2
      %s32 = sadd.s32 1, %s27
      %p33 = scmp.ge.s32.totalorder %s32, 4
      %s34 = scalar_select %p33, 0, %s32
      %s35 = sadd.s32 1, %s26
      %s36 = scalar_select %p33, %s35, %s26
      %p37 = scmp.ge.s32.totalorder %s36, 1
      %s38 = scalar_select %p37, 0, %s36
      %s39 = ssub.s32 %s26, %s38
      %s40 = ssub.s32 %s27, %s34
      %s41 = sor.u32 %s39, %s40
      %p42 = scmp.eq.s32.totalorder %s41, 0
      %s44 = sadd.s32 %s43, 1
      %s45 = scalar_select %p42, %s43, %s44
      %p48 = pneg %p42
      %p49 = scmp.eq.s32.totalorder %s19, 3
      %p50 = por %p48, %p49
      %p51 = scmp.ne.s32.totalorder %s43, %s46
      %p52 = scmp.eq.s32.totalorder %s19, 0
      %p53 = por %p51, %p52
      %p54 = scmp.ne.s32.totalorder %s43, %s46
      %p55 = scmp.eq.s32.totalorder %s24, 3
      %p56 = por %p54, %p55
      %p57 = scmp.ne.s32.totalorder %s46, %s47
      %p58 = scmp.eq.s32.totalorder %s24, 0
      %p59 = por %p57, %p58
      %p60 = scmp.ne.s32.totalorder %s46, %s47
      %p61 = scmp.eq.s32.totalorder %s25, 3
      %p62 = por %p60, %p61
      %p64 = scmp.ne.s32.totalorder %s47, %s63
      %p65 = scmp.eq.s32.totalorder %s25, 0
      %p66 = por %p64, %p65
      %s67 = ssub.s32 %s27, %s34
      %p68 = scmp.eq.s32.totalorder %s67, 0
      %s70 = sadd.s32 %s69, 1
      %s71 = scalar_select %p68, %s69, %s70
      %p74 = pneg %p68
      %p75 = scmp.eq.s32.totalorder %s19, 3
      %p76 = por %p74, %p75
      %p77 = scmp.ne.s32.totalorder %s69, %s72
      %p78 = scmp.eq.s32.totalorder %s19, 0
      %p79 = por %p77, %p78
      %p80 = scmp.ne.s32.totalorder %s69, %s72
      %p81 = scmp.eq.s32.totalorder %s24, 3
      %p82 = por %p80, %p81
      %p83 = scmp.ne.s32.totalorder %s72, %s73
      %p84 = scmp.eq.s32.totalorder %s24, 0
      %p85 = por %p83, %p84
      %p86 = scmp.ne.s32.totalorder %s72, %s73
      %p87 = scmp.eq.s32.totalorder %s25, 3
      %p88 = por %p86, %p87
      %p90 = scmp.ne.s32.totalorder %s73, %s89
      %p91 = scmp.eq.s32.totalorder %s25, 0
      %p92 = por %p90, %p91
      %s94 = sadd.s32 %s93, 1
      %p97 = scmp.eq.s32.totalorder %s19, 3
      %p98 = scmp.ne.s32.totalorder %s93, %s95
      %p99 = scmp.eq.s32.totalorder %s19, 0
      %p100 = por %p98, %p99
      %p101 = scmp.ne.s32.totalorder %s93, %s95
      %p102 = scmp.eq.s32.totalorder %s24, 3
      %p103 = por %p101, %p102
      %p104 = scmp.ne.s32.totalorder %s95, %s96
      %p105 = scmp.eq.s32.totalorder %s24, 0
      %p106 = por %p104, %p105
      %p107 = scmp.ne.s32.totalorder %s95, %s96
      %p108 = scmp.eq.s32.totalorder %s25, 3
      %p109 = por %p107, %p108
      %p111 = scmp.ne.s32.totalorder %s96, %s110
      %p112 = scmp.eq.s32.totalorder %s25, 0
      %p113 = por %p111, %p112
      %s115 = sadd.s32 %s114, 1
      %p118 = scmp.eq.s32.totalorder %s19, 3
      %p119 = scmp.ne.s32.totalorder %s114, %s116
      %p120 = scmp.eq.s32.totalorder %s19, 0
      %p121 = por %p119, %p120
      %p122 = scmp.ne.s32.totalorder %s114, %s116
      %p123 = scmp.eq.s32.totalorder %s24, 3
      %p124 = por %p122, %p123
      %p125 = scmp.ne.s32.totalorder %s116, %s117
      %p126 = scmp.eq.s32.totalorder %s24, 0
      %p127 = por %p125, %p126
      %p128 = scmp.ne.s32.totalorder %s116, %s117
      %p129 = scmp.eq.s32.totalorder %s25, 3
      %p130 = por %p128, %p129
      %p132 = scmp.ne.s32.totalorder %s117, %s131
      %p133 = scmp.eq.s32.totalorder %s25, 0
      %p134 = por %p132, %p133
      %s136 = sadd.s32 %s135, 1
      %p139 = scmp.eq.s32.totalorder %s19, 3
      %p140 = scmp.ne.s32.totalorder %s135, %s137
      %p141 = scmp.eq.s32.totalorder %s19, 0
      %p142 = por %p140, %p141
      %p143 = scmp.ne.s32.totalorder %s135, %s137
      %p144 = scmp.eq.s32.totalorder %s24, 3
      %p145 = por %p143, %p144
      %p146 = scmp.ne.s32.totalorder %s137, %s138
      %p147 = scmp.eq.s32.totalorder %s24, 0
      %p148 = por %p146, %p147
      %p149 = scmp.ne.s32.totalorder %s137, %s138
      %p150 = scmp.eq.s32.totalorder %s25, 3
      %p151 = por %p149, %p150
      %p153 = scmp.ne.s32.totalorder %s138, %s152
      %p154 = scmp.eq.s32.totalorder %s25, 0
      %p155 = por %p153, %p154
      %s156 = ssub.s32 %s26, %s38
      %p157 = scmp.eq.s32.totalorder %s156, 0
      %s159 = sadd.s32 %s158, 1
      %s160 = scalar_select %p157, %s158, %s159
      %p163 = pneg %p157
      %p164 = scmp.eq.s32.totalorder %s19, 3
      %p165 = por %p163, %p164
      %p166 = scmp.ne.s32.totalorder %s158, %s161
      %p167 = scmp.eq.s32.totalorder %s19, 0
      %p168 = por %p166, %p167
      %p169 = scmp.ne.s32.totalorder %s158, %s161
      %p170 = scmp.eq.s32.totalorder %s24, 3
      %p171 = por %p169, %p170
      %p172 = scmp.ne.s32.totalorder %s161, %s162
      %p173 = scmp.eq.s32.totalorder %s24, 0
      %p174 = por %p172, %p173
      %p175 = scmp.ne.s32.totalorder %s161, %s162
      %p176 = scmp.eq.s32.totalorder %s25, 3
      %p177 = por %p175, %p176
      %p179 = scmp.ne.s32.totalorder %s162, %s178
      %p180 = scmp.eq.s32.totalorder %s25, 0
      %p181 = por %p179, %p180
      %p182 = scmp.le.s32.totalorder 1, %s19
      %p183 = scmp.lt.s32.totalorder %s19, 5
      %p184 = pnand %p182, %p183
      %p185 = pneg %p184
      // Predicated region
      $region9: #{tpu_custom_call.1} parent=5 // pred_check
        _
      $region10: #{tpu_custom_call.1} parent=5 // pred_check_branch
        %187 = sbr.rel (%p184) target = $region12
      $region11: #{tpu_custom_call.1} parent=5 // pred_region
        %s188 = ssub.s32 %s19, 1
        // Predicated region
        $region13: #{tpu_custom_call.1} parent=11 // pred_check
          %p189 = pneg %p106
        $region14: #{tpu_custom_call.1} parent=11 // pred_check_branch
          %191 = sbr.rel (%p189) target = $region16
        $region15: #{tpu_custom_call.1} parent=11 // pred_region
          %s193 = ssub.s32 16, 16
          %194 = vsyncadd [#allocation7], %s193
          %s196 = sshll.u32 [#allocation8], 4
          %s197 = int_to_ptr.vmem [resolvable:$true] %s196
          %199 = dma.hbm_to_vmem [thread:$0]  %s2, 16, %s197, [#allocation7]
        $region16: #{tpu_custom_call.1} parent=11 // pred_fallthru
          _
        // Predicated region
        $region17: #{tpu_custom_call.1} parent=11 // pred_check
          %p200 = pneg %p127
        $region18: #{tpu_custom_call.1} parent=11 // pred_check_branch
          %202 = sbr.rel (%p200) target = $region20
        $region19: #{tpu_custom_call.1} parent=11 // pred_region
          _
        $region20: #{tpu_custom_call.1} parent=11 // pred_fallthru
          _
        // Predicated region
        $region21: #{tpu_custom_call.1} parent=11 // pred_check
          %p203 = pneg %p148
        $region22: #{tpu_custom_call.1} parent=11 // pred_check_branch
          %205 = sbr.rel (%p203) target = $region24
        $region23: #{tpu_custom_call.1} parent=11 // pred_region
          %s207 = ssub.s32 16, 16
          %208 = vsyncadd [#allocation10], %s207
          %s210 = sshll.u32 [#allocation9], 4
          %s211 = int_to_ptr.vmem [resolvable:$true] %s210
          %213 = dma.hbm_to_vmem [thread:$0]  %s4, 16, %s211, [#allocation10]
        $region24: #{tpu_custom_call.1} parent=11 // pred_fallthru
          _
      $region12: #{tpu_custom_call.1} parent=5 // pred_fallthru
        _
      %p214 = scmp.lt.s32.totalorder %s19, 4
      // Predicated region
      $region25: #{tpu_custom_call.1} parent=5 // pred_check
        %p215 = pneg %p214
      $region26: #{tpu_custom_call.1} parent=5 // pred_check_branch
        %217 = sbr.rel (%p215) target = $region28
      $region27: #{tpu_custom_call.1} parent=5 // pred_region
        // Predicated region
        $region29: #{tpu_custom_call.1} parent=27 // pred_check
          %p218 = pneg %p53
        $region30: #{tpu_custom_call.1} parent=27 // pred_check_branch
          %220 = sbr.rel (%p218) target = $region32
        $region31: #{tpu_custom_call.1} parent=27 // pred_region
          %s221 = sand.u32 %s43, 1
          %s222 = scalar_lea.sflag [#allocation4], %s221
          %s223 = sand.u32 %s43, 1
          %s224 = smul.addr %s223, 192
          %s225 = scalar_lea.vmem [#allocation3], %s224
          %s226 = smul.u32 96, %s27
          %s228 = ssub.s32 3072, 3072
          %229 = vsyncadd %s222, %s228
          %s230 = smul.addr %s26, 384
          %s231 = sadd.s32 %s226, %s230
          %s232 = smul.addr %s231, 32
          %s233 = scalar_lea.hbm %s0, %s232
          %s235 = sshll.u32 %s225, 4
          %s236 = int_to_ptr.vmem [resolvable:$true] %s235
          %238 = dma.hbm_to_vmem [thread:$0]  %s233, 3072, %s236, %s222
        $region32: #{tpu_custom_call.1} parent=27 // pred_fallthru
          _
        // Predicated region
        $region33: #{tpu_custom_call.1} parent=27 // pred_check
          %p239 = pneg %p79
        $region34: #{tpu_custom_call.1} parent=27 // pred_check_branch
          %241 = sbr.rel (%p239) target = $region36
        $region35: #{tpu_custom_call.1} parent=27 // pred_region
          %s242 = sand.u32 %s19, 1
          %s243 = scalar_lea.sflag [#allocation7], %s242
          %s244 = sand.u32 %s69, 1
          %s245 = smul.addr %s244, 768
          %s246 = scalar_lea.vmem [#allocation6], %s245
          %s247 = smul.u32 96, %s27
          %s249 = ssub.s32 12288, 12288
          %250 = vsyncadd %s243, %s249
          %s251 = smul.addr %s247, 64
          %s252 = scalar_lea.hbm %s1, %s251
          %s253 = sshll.u32 %s246, 4
          %s254 = int_to_ptr.vmem [resolvable:$true] %s253
          %259 = dma.hbm_to_vmem [thread:$0]  %s252, 12288, %s254, %s243, 24576, 6144, 384
        $region36: #{tpu_custom_call.1} parent=27 // pred_fallthru
          _
      $region28: #{tpu_custom_call.1} parent=5 // pred_fallthru
        _
      %p260 = scmp.le.s32.totalorder 1, %s19
      %p261 = scmp.lt.s32.totalorder %s19, 5
      %p262 = pnand %p260, %p261
      %p263 = pneg %p262
      // Predicated region
      $region37: #{tpu_custom_call.1} parent=5 // pred_check
        _
      $region38: #{tpu_custom_call.1} parent=5 // pred_check_branch
        %265 = sbr.rel (%p262) target = $region40
      $region39: #{tpu_custom_call.1} parent=5 // pred_region
        %s266 = ssub.s32 %s19, 1
        %s267 = sand.u32 %s46, 1
        %s268 = scalar_lea.sflag [#allocation4], %s267
        %s269 = sand.u32 %s46, 1
        %s270 = smul.addr %s269, 192
        %s271 = scalar_lea.vmem [#allocation3], %s270
        // Predicated region
        $region41: #{tpu_custom_call.1} parent=39 // pred_check
          %p272 = pneg %p59
        $region42: #{tpu_custom_call.1} parent=39 // pred_check_branch
          %274 = sbr.rel (%p272) target = $region44
        $region43: #{tpu_custom_call.1} parent=39 // pred_region
          %275 = dma.done %s268, 3072
        $region44: #{tpu_custom_call.1} parent=39 // pred_fallthru
          _
        %s276 = sand.u32 %s24, 1
        %s277 = scalar_lea.sflag [#allocation7], %s276
        %s278 = sand.u32 %s72, 1
        %s279 = smul.addr %s278, 768
        %s280 = scalar_lea.vmem [#allocation6], %s279
        // Predicated region
        $region45: #{tpu_custom_call.1} parent=39 // pred_check
          %p281 = pneg %p85
        $region46: #{tpu_custom_call.1} parent=39 // pred_check_branch
          %283 = sbr.rel (%p281) target = $region48
        $region47: #{tpu_custom_call.1} parent=39 // pred_region
          %284 = dma.done %s277, 12288
        $region48: #{tpu_custom_call.1} parent=39 // pred_fallthru
          _
        // Predicated region
        $region49: #{tpu_custom_call.1} parent=39 // pred_check
          %p285 = pneg %p106
        $region50: #{tpu_custom_call.1} parent=39 // pred_check_branch
          %287 = sbr.rel (%p285) target = $region52
        $region51: #{tpu_custom_call.1} parent=39 // pred_region
          %288 = dma.done [#allocation7], 16
        $region52: #{tpu_custom_call.1} parent=39 // pred_fallthru
          _
        // Predicated region
        $region53: #{tpu_custom_call.1} parent=39 // pred_check
          %p289 = pneg %p148
        $region54: #{tpu_custom_call.1} parent=39 // pred_check_branch
          %291 = sbr.rel (%p289) target = $region56
        $region55: #{tpu_custom_call.1} parent=39 // pred_region
          %292 = dma.done [#allocation10], 16
        $region56: #{tpu_custom_call.1} parent=39 // pred_fallthru
          _
        %s293 = sand.u32 %s46, 1
        %s294 = scalar_lea.sflag [#allocation4], %s293
        %s295 = sand.u32 %s46, 1
        %s296 = smul.addr %s295, 192
        %s297 = scalar_lea.vmem [#allocation3], %s296
        %p298 = pneg %p59
        %p299 = pneg %p56
        %s300 = sand.u32 %s24, 1
        %s301 = scalar_lea.sflag [#allocation7], %s300
        %s302 = sand.u32 %s72, 1
        %s303 = smul.addr %s302, 768
        %s304 = scalar_lea.vmem [#allocation6], %s303
        %p305 = pneg %p85
        %p306 = pneg %p82
        %p307 = pneg %p106
        %p308 = pneg %p103
        %p309 = pneg %p127
        %p310 = pneg %p124
        %p311 = pneg %p148
        %p312 = pneg %p145
        %p313 = pneg %p174
        %p314 = pneg %p171
        %s315 = smul.u32 96, %s29
        %s316 = smul.u32 96, %s29
        %p318 = scmp.eq.s32.totalorder %s29, 0
        // Predicated region
        $region57: #{tpu_custom_call.1} parent=39 // pred_check
          %p319 = pneg %p318
        $region58: #{tpu_custom_call.1} parent=39 // pred_check_branch
          %321 = sbr.rel (%p319) target = $region60
        $region59: #{tpu_custom_call.1} parent=39 // pred_region
          %vm322 = vcmask 91136
          %323 = vst.msk [vmem:[#allocation2] sm:$0x3] %vm322, 0.0
        $region60: #{tpu_custom_call.1} parent=39 // pred_fallthru
          _
        %v324 = vld [vmem:[%s271] sm:$0xff]
        %v325 = vld [vmem:[%s271 + $0x8] sm:$0xff]
        %v326 = vld [vmem:[%s271 + $0x10] sm:$0xff]
        %v327 = vld [vmem:[%s271 + $0x18] sm:$0xff]
        %v328 = vld [vmem:[%s271 + $0x20] sm:$0xff]
        %v329 = vld [vmem:[%s271 + $0x28] sm:$0xff]
        %v330 = vld [vmem:[%s271 + $0x30] sm:$0xff]
        %v331 = vld [vmem:[%s271 + $0x38] sm:$0xff]
        %v332 = vld [vmem:[%s271 + $0x40] sm:$0xff]
        %v333 = vld [vmem:[%s271 + $0x48] sm:$0xff]
        %v334 = vld [vmem:[%s271 + $0x50] sm:$0xff]
        %v335 = vld [vmem:[%s271 + $0x58] sm:$0xff]
        %v336 = vld [vmem:[%s271 + $0x60] sm:$0xff]
        %v337 = vld [vmem:[%s271 + $0x68] sm:$0xff]
        %v338 = vld [vmem:[%s271 + $0x70] sm:$0xff]
        %v339 = vld [vmem:[%s271 + $0x78] sm:$0xff]
        %v340 = vld [vmem:[%s271 + $0x80] sm:$0xff]
        %v341 = vld [vmem:[%s271 + $0x88] sm:$0xff]
        %v342 = vld [vmem:[%s271 + $0x90] sm:$0xff]
        %v343 = vld [vmem:[%s271 + $0x98] sm:$0xff]
        %v344 = vld [vmem:[%s271 + $0xa0] sm:$0xff]
        %v345 = vld [vmem:[%s271 + $0xa8] sm:$0xff]
        %v346 = vld [vmem:[%s271 + $0xb0] sm:$0xff]
        %v347 = vld [vmem:[%s271 + $0xb8] sm:$0xff]
        %v372 = vcombine.high %v324, %v324
        %v374 = vunpack.c.l.s4 1983009808
        %v375 = vunpack.c.0.s8 %v374
        %v376 = vlaneseq
        %v377 = vshrl.u32 %v376, 7
        %v378 = vsub.s32 %v375, %v377
        %v379 = vrot.slane %v324, %v378
        %v381 = vunpack.c.l.s4 1983009808
        %v382 = vunpack.c.0.s8 %v381
        %v383 = vlaneseq
        %v384 = vshrl.u32 %v383, 7
        %v385 = vsub.s32 %v382, %v384
        %v386 = vrot.slane %v372, %v385
        %v387 = vcombine.high %v379, %v379
        %v388 = vcombine.high %v386, %v386
        %v389 = vcombine.high %v325, %v325
        %v391 = vunpack.c.l.s4 1983009808
        %v392 = vunpack.c.0.s8 %v391
        %v393 = vlaneseq
        %v394 = vshrl.u32 %v393, 7
        %v395 = vsub.s32 %v392, %v394
        %v396 = vrot.slane %v325, %v395
        %v398 = vunpack.c.l.s4 1983009808
        %v399 = vunpack.c.0.s8 %v398
        %v400 = vlaneseq
        %v401 = vshrl.u32 %v400, 7
        %v402 = vsub.s32 %v399, %v401
        %v403 = vrot.slane %v389, %v402
        %v404 = vcombine.high %v396, %v396
        %v405 = vcombine.high %v403, %v403
        %v406 = vcombine.high %v326, %v326
        %v408 = vunpack.c.l.s4 1983009808
        %v409 = vunpack.c.0.s8 %v408
        %v410 = vlaneseq
        %v411 = vshrl.u32 %v410, 7
        %v412 = vsub.s32 %v409, %v411
        %v413 = vrot.slane %v326, %v412
        %v415 = vunpack.c.l.s4 1983009808
        %v416 = vunpack.c.0.s8 %v415
        %v417 = vlaneseq
        %v418 = vshrl.u32 %v417, 7
        %v419 = vsub.s32 %v416, %v418
        %v420 = vrot.slane %v406, %v419
        %v421 = vcombine.high %v413, %v413
        %v422 = vcombine.high %v420, %v420
        %v423 = vcombine.high %v327, %v327
        %v425 = vunpack.c.l.s4 1983009808
        %v426 = vunpack.c.0.s8 %v425
        %v427 = vlaneseq
        %v428 = vshrl.u32 %v427, 7
        %v429 = vsub.s32 %v426, %v428
        %v430 = vrot.slane %v327, %v429
        %v432 = vunpack.c.l.s4 1983009808
        %v433 = vunpack.c.0.s8 %v432
        %v434 = vlaneseq
        %v435 = vshrl.u32 %v434, 7
        %v436 = vsub.s32 %v433, %v435
        %v437 = vrot.slane %v423, %v436
        %v438 = vcombine.high %v430, %v430
        %v439 = vcombine.high %v437, %v437
        %v440 = vcombine.high %v328, %v328
        %v442 = vunpack.c.l.s4 1983009808
        %v443 = vunpack.c.0.s8 %v442
        %v444 = vlaneseq
        %v445 = vshrl.u32 %v444, 7
        %v446 = vsub.s32 %v443, %v445
        %v447 = vrot.slane %v328, %v446
        %v449 = vunpack.c.l.s4 1983009808
        %v450 = vunpack.c.0.s8 %v449
        %v451 = vlaneseq
        %v452 = vshrl.u32 %v451, 7
        %v453 = vsub.s32 %v450, %v452
        %v454 = vrot.slane %v440, %v453
        %v455 = vcombine.high %v447, %v447
        %v456 = vcombine.high %v454, %v454
        %v457 = vcombine.high %v329, %v329
        %v459 = vunpack.c.l.s4 1983009808
        %v460 = vunpack.c.0.s8 %v459
        %v461 = vlaneseq
        %v462 = vshrl.u32 %v461, 7
        %v463 = vsub.s32 %v460, %v462
        %v464 = vrot.slane %v329, %v463
        %v466 = vunpack.c.l.s4 1983009808
        %v467 = vunpack.c.0.s8 %v466
        %v468 = vlaneseq
        %v469 = vshrl.u32 %v468, 7
        %v470 = vsub.s32 %v467, %v469
        %v471 = vrot.slane %v457, %v470
        %v472 = vcombine.high %v464, %v464
        %v473 = vcombine.high %v471, %v471
        %v474 = vcombine.high %v330, %v330
        %v476 = vunpack.c.l.s4 1983009808
        %v477 = vunpack.c.0.s8 %v476
        %v478 = vlaneseq
        %v479 = vshrl.u32 %v478, 7
        %v480 = vsub.s32 %v477, %v479
        %v481 = vrot.slane %v330, %v480
        %v483 = vunpack.c.l.s4 1983009808
        %v484 = vunpack.c.0.s8 %v483
        %v485 = vlaneseq
        %v486 = vshrl.u32 %v485, 7
        %v487 = vsub.s32 %v484, %v486
        %v488 = vrot.slane %v474, %v487
        %v489 = vcombine.high %v481, %v481
        %v490 = vcombine.high %v488, %v488
        %v491 = vcombine.high %v331, %v331
        %v493 = vunpack.c.l.s4 1983009808
        %v494 = vunpack.c.0.s8 %v493
        %v495 = vlaneseq
        %v496 = vshrl.u32 %v495, 7
        %v497 = vsub.s32 %v494, %v496
        %v498 = vrot.slane %v331, %v497
        %v500 = vunpack.c.l.s4 1983009808
        %v501 = vunpack.c.0.s8 %v500
        %v502 = vlaneseq
        %v503 = vshrl.u32 %v502, 7
        %v504 = vsub.s32 %v501, %v503
        %v505 = vrot.slane %v491, %v504
        %v506 = vcombine.high %v498, %v498
        %v507 = vcombine.high %v505, %v505
        %v508 = vcombine.high %v332, %v332
        %v510 = vunpack.c.l.s4 1983009808
        %v511 = vunpack.c.0.s8 %v510
        %v512 = vlaneseq
        %v513 = vshrl.u32 %v512, 7
        %v514 = vsub.s32 %v511, %v513
        %v515 = vrot.slane %v332, %v514
        %v517 = vunpack.c.l.s4 1983009808
        %v518 = vunpack.c.0.s8 %v517
        %v519 = vlaneseq
        %v520 = vshrl.u32 %v519, 7
        %v521 = vsub.s32 %v518, %v520
        %v522 = vrot.slane %v508, %v521
        %v523 = vcombine.high %v515, %v515
        %v524 = vcombine.high %v522, %v522
        %v525 = vcombine.high %v333, %v333
        %v527 = vunpack.c.l.s4 1983009808
        %v528 = vunpack.c.0.s8 %v527
        %v529 = vlaneseq
        %v530 = vshrl.u32 %v529, 7
        %v531 = vsub.s32 %v528, %v530
        %v532 = vrot.slane %v333, %v531
        %v534 = vunpack.c.l.s4 1983009808
        %v535 = vunpack.c.0.s8 %v534
        %v536 = vlaneseq
        %v537 = vshrl.u32 %v536, 7
        %v538 = vsub.s32 %v535, %v537
        %v539 = vrot.slane %v525, %v538
        %v540 = vcombine.high %v532, %v532
        %v541 = vcombine.high %v539, %v539
        %v542 = vcombine.high %v334, %v334
        %v544 = vunpack.c.l.s4 1983009808
        %v545 = vunpack.c.0.s8 %v544
        %v546 = vlaneseq
        %v547 = vshrl.u32 %v546, 7
        %v548 = vsub.s32 %v545, %v547
        %v549 = vrot.slane %v334, %v548
        %v551 = vunpack.c.l.s4 1983009808
        %v552 = vunpack.c.0.s8 %v551
        %v553 = vlaneseq
        %v554 = vshrl.u32 %v553, 7
        %v555 = vsub.s32 %v552, %v554
        %v556 = vrot.slane %v542, %v555
        %v557 = vcombine.high %v549, %v549
        %v558 = vcombine.high %v556, %v556
        %v559 = vcombine.high %v335, %v335
        %v561 = vunpack.c.l.s4 1983009808
        %v562 = vunpack.c.0.s8 %v561
        %v563 = vlaneseq
        %v564 = vshrl.u32 %v563, 7
        %v565 = vsub.s32 %v562, %v564
        %v566 = vrot.slane %v335, %v565
        %v568 = vunpack.c.l.s4 1983009808
        %v569 = vunpack.c.0.s8 %v568
        %v570 = vlaneseq
        %v571 = vshrl.u32 %v570, 7
        %v572 = vsub.s32 %v569, %v571
        %v573 = vrot.slane %v559, %v572
        %v574 = vcombine.high %v566, %v566
        %v575 = vcombine.high %v573, %v573
        %v576 = vcombine.high %v336, %v336
        %v578 = vunpack.c.l.s4 1983009808
        %v579 = vunpack.c.0.s8 %v578
        %v580 = vlaneseq
        %v581 = vshrl.u32 %v580, 7
        %v582 = vsub.s32 %v579, %v581
        %v583 = vrot.slane %v336, %v582
        %v585 = vunpack.c.l.s4 1983009808
        %v586 = vunpack.c.0.s8 %v585
        %v587 = vlaneseq
        %v588 = vshrl.u32 %v587, 7
        %v589 = vsub.s32 %v586, %v588
        %v590 = vrot.slane %v576, %v589
        %v591 = vcombine.high %v583, %v583
        %v592 = vcombine.high %v590, %v590
        %v593 = vcombine.high %v337, %v337
        %v595 = vunpack.c.l.s4 1983009808
        %v596 = vunpack.c.0.s8 %v595
        %v597 = vlaneseq
        %v598 = vshrl.u32 %v597, 7
        %v599 = vsub.s32 %v596, %v598
        %v600 = vrot.slane %v337, %v599
        %v602 = vunpack.c.l.s4 1983009808
        %v603 = vunpack.c.0.s8 %v602
        %v604 = vlaneseq
        %v605 = vshrl.u32 %v604, 7
        %v606 = vsub.s32 %v603, %v605
        %v607 = vrot.slane %v593, %v606
        %v608 = vcombine.high %v600, %v600
        %v609 = vcombine.high %v607, %v607
        %v610 = vcombine.high %v338, %v338
        %v612 = vunpack.c.l.s4 1983009808
        %v613 = vunpack.c.0.s8 %v612
        %v614 = vlaneseq
        %v615 = vshrl.u32 %v614, 7
        %v616 = vsub.s32 %v613, %v615
        %v617 = vrot.slane %v338, %v616
        %v619 = vunpack.c.l.s4 1983009808
        %v620 = vunpack.c.0.s8 %v619
        %v621 = vlaneseq
        %v622 = vshrl.u32 %v621, 7
        %v623 = vsub.s32 %v620, %v622
        %v624 = vrot.slane %v610, %v623
        %v625 = vcombine.high %v617, %v617
        %v626 = vcombine.high %v624, %v624
        %v627 = vcombine.high %v339, %v339
        %v629 = vunpack.c.l.s4 1983009808
        %v630 = vunpack.c.0.s8 %v629
        %v631 = vlaneseq
        %v632 = vshrl.u32 %v631, 7
        %v633 = vsub.s32 %v630, %v632
        %v634 = vrot.slane %v339, %v633
        %v636 = vunpack.c.l.s4 1983009808
        %v637 = vunpack.c.0.s8 %v636
        %v638 = vlaneseq
        %v639 = vshrl.u32 %v638, 7
        %v640 = vsub.s32 %v637, %v639
        %v641 = vrot.slane %v627, %v640
        %v642 = vcombine.high %v634, %v634
        %v643 = vcombine.high %v641, %v641
        %v644 = vcombine.high %v340, %v340
        %v646 = vunpack.c.l.s4 1983009808
        %v647 = vunpack.c.0.s8 %v646
        %v648 = vlaneseq
        %v649 = vshrl.u32 %v648, 7
        %v650 = vsub.s32 %v647, %v649
        %v651 = vrot.slane %v340, %v650
        %v653 = vunpack.c.l.s4 1983009808
        %v654 = vunpack.c.0.s8 %v653
        %v655 = vlaneseq
        %v656 = vshrl.u32 %v655, 7
        %v657 = vsub.s32 %v654, %v656
        %v658 = vrot.slane %v644, %v657
        %v659 = vcombine.high %v651, %v651
        %v660 = vcombine.high %v658, %v658
        %v661 = vcombine.high %v341, %v341
        %v663 = vunpack.c.l.s4 1983009808
        %v664 = vunpack.c.0.s8 %v663
        %v665 = vlaneseq
        %v666 = vshrl.u32 %v665, 7
        %v667 = vsub.s32 %v664, %v666
        %v668 = vrot.slane %v341, %v667
        %v670 = vunpack.c.l.s4 1983009808
        %v671 = vunpack.c.0.s8 %v670
        %v672 = vlaneseq
        %v673 = vshrl.u32 %v672, 7
        %v674 = vsub.s32 %v671, %v673
        %v675 = vrot.slane %v661, %v674
        %v676 = vcombine.high %v668, %v668
        %v677 = vcombine.high %v675, %v675
        %v678 = vcombine.high %v342, %v342
        %v680 = vunpack.c.l.s4 1983009808
        %v681 = vunpack.c.0.s8 %v680
        %v682 = vlaneseq
        %v683 = vshrl.u32 %v682, 7
        %v684 = vsub.s32 %v681, %v683
        %v685 = vrot.slane %v342, %v684
        %v687 = vunpack.c.l.s4 1983009808
        %v688 = vunpack.c.0.s8 %v687
        %v689 = vlaneseq
        %v690 = vshrl.u32 %v689, 7
        %v691 = vsub.s32 %v688, %v690
        %v692 = vrot.slane %v678, %v691
        %v693 = vcombine.high %v685, %v685
        %v694 = vcombine.high %v692, %v692
        %v695 = vcombine.high %v343, %v343
        %v697 = vunpack.c.l.s4 1983009808
        %v698 = vunpack.c.0.s8 %v697
        %v699 = vlaneseq
        %v700 = vshrl.u32 %v699, 7
        %v701 = vsub.s32 %v698, %v700
        %v702 = vrot.slane %v343, %v701
        %v704 = vunpack.c.l.s4 1983009808
        %v705 = vunpack.c.0.s8 %v704
        %v706 = vlaneseq
        %v707 = vshrl.u32 %v706, 7
        %v708 = vsub.s32 %v705, %v707
        %v709 = vrot.slane %v695, %v708
        %v710 = vcombine.high %v702, %v702
        %v711 = vcombine.high %v709, %v709
        %v712 = vcombine.high %v344, %v344
        %v714 = vunpack.c.l.s4 1983009808
        %v715 = vunpack.c.0.s8 %v714
        %v716 = vlaneseq
        %v717 = vshrl.u32 %v716, 7
        %v718 = vsub.s32 %v715, %v717
        %v719 = vrot.slane %v344, %v718
        %v721 = vunpack.c.l.s4 1983009808
        %v722 = vunpack.c.0.s8 %v721
        %v723 = vlaneseq
        %v724 = vshrl.u32 %v723, 7
        %v725 = vsub.s32 %v722, %v724
        %v726 = vrot.slane %v712, %v725
        %v727 = vcombine.high %v719, %v719
        %v728 = vcombine.high %v726, %v726
        %v729 = vcombine.high %v345, %v345
        %v731 = vunpack.c.l.s4 1983009808
        %v732 = vunpack.c.0.s8 %v731
        %v733 = vlaneseq
        %v734 = vshrl.u32 %v733, 7
        %v735 = vsub.s32 %v732, %v734
        %v736 = vrot.slane %v345, %v735
        %v738 = vunpack.c.l.s4 1983009808
        %v739 = vunpack.c.0.s8 %v738
        %v740 = vlaneseq
        %v741 = vshrl.u32 %v740, 7
        %v742 = vsub.s32 %v739, %v741
        %v743 = vrot.slane %v729, %v742
        %v744 = vcombine.high %v736, %v736
        %v745 = vcombine.high %v743, %v743
        %v746 = vcombine.high %v346, %v346
        %v748 = vunpack.c.l.s4 1983009808
        %v749 = vunpack.c.0.s8 %v748
        %v750 = vlaneseq
        %v751 = vshrl.u32 %v750, 7
        %v752 = vsub.s32 %v749, %v751
        %v753 = vrot.slane %v346, %v752
        %v755 = vunpack.c.l.s4 1983009808
        %v756 = vunpack.c.0.s8 %v755
        %v757 = vlaneseq
        %v758 = vshrl.u32 %v757, 7
        %v759 = vsub.s32 %v756, %v758
        %v760 = vrot.slane %v746, %v759
        %v761 = vcombine.high %v753, %v753
        %v762 = vcombine.high %v760, %v760
        %v763 = vcombine.high %v347, %v347
        %v765 = vunpack.c.l.s4 1983009808
        %v766 = vunpack.c.0.s8 %v765
        %v767 = vlaneseq
        %v768 = vshrl.u32 %v767, 7
        %v769 = vsub.s32 %v766, %v768
        %v770 = vrot.slane %v347, %v769
        %v772 = vunpack.c.l.s4 1983009808
        %v773 = vunpack.c.0.s8 %v772
        %v774 = vlaneseq
        %v775 = vshrl.u32 %v774, 7
        %v776 = vsub.s32 %v773, %v775
        %v777 = vrot.slane %v763, %v776
        %v778 = vcombine.high %v770, %v770
        %v779 = vcombine.high %v777, %v777
        %v876 = vpack.c.bf16 %v379, %v379
        %v877 = vpack.c.bf16 %v387, %v387
        %v878 = vpack.c.bf16 %v386, %v386
        %v879 = vpack.c.bf16 %v388, %v388
        %v880 = vpack.c.bf16 %v396, %v396
        %v881 = vpack.c.bf16 %v404, %v404
        %v882 = vpack.c.bf16 %v403, %v403
        %v883 = vpack.c.bf16 %v405, %v405
        %v884 = vpack.c.bf16 %v413, %v413
        %v885 = vpack.c.bf16 %v421, %v421
        %v886 = vpack.c.bf16 %v420, %v420
        %v887 = vpack.c.bf16 %v422, %v422
        %v888 = vpack.c.bf16 %v430, %v430
        %v889 = vpack.c.bf16 %v438, %v438
        %v890 = vpack.c.bf16 %v437, %v437
        %v891 = vpack.c.bf16 %v439, %v439
        %v892 = vpack.c.bf16 %v447, %v447
        %v893 = vpack.c.bf16 %v455, %v455
        %v894 = vpack.c.bf16 %v454, %v454
        %v895 = vpack.c.bf16 %v456, %v456
        %v896 = vpack.c.bf16 %v464, %v464
        %v897 = vpack.c.bf16 %v472, %v472
        %v898 = vpack.c.bf16 %v471, %v471
        %v899 = vpack.c.bf16 %v473, %v473
        %v900 = vpack.c.bf16 %v481, %v481
        %v901 = vpack.c.bf16 %v489, %v489
        %v902 = vpack.c.bf16 %v488, %v488
        %v903 = vpack.c.bf16 %v490, %v490
        %v904 = vpack.c.bf16 %v498, %v498
        %v905 = vpack.c.bf16 %v506, %v506
        %v906 = vpack.c.bf16 %v505, %v505
        %v907 = vpack.c.bf16 %v507, %v507
        %v908 = vpack.c.bf16 %v515, %v515
        %v909 = vpack.c.bf16 %v523, %v523
        %v910 = vpack.c.bf16 %v522, %v522
        %v911 = vpack.c.bf16 %v524, %v524
        %v912 = vpack.c.bf16 %v532, %v532
        %v913 = vpack.c.bf16 %v540, %v540
        %v914 = vpack.c.bf16 %v539, %v539
        %v915 = vpack.c.bf16 %v541, %v541
        %v916 = vpack.c.bf16 %v549, %v549
        %v917 = vpack.c.bf16 %v557, %v557
        %v918 = vpack.c.bf16 %v556, %v556
        %v919 = vpack.c.bf16 %v558, %v558
        %v920 = vpack.c.bf16 %v566, %v566
        %v921 = vpack.c.bf16 %v574, %v574
        %v922 = vpack.c.bf16 %v573, %v573
        %v923 = vpack.c.bf16 %v575, %v575
        %v924 = vpack.c.bf16 %v583, %v583
        %v925 = vpack.c.bf16 %v591, %v591
        %v926 = vpack.c.bf16 %v590, %v590
        %v927 = vpack.c.bf16 %v592, %v592
        %v928 = vpack.c.bf16 %v600, %v600
        %v929 = vpack.c.bf16 %v608, %v608
        %v930 = vpack.c.bf16 %v607, %v607
        %v931 = vpack.c.bf16 %v609, %v609
        %v932 = vpack.c.bf16 %v617, %v617
        %v933 = vpack.c.bf16 %v625, %v625
        %v934 = vpack.c.bf16 %v624, %v624
        %v935 = vpack.c.bf16 %v626, %v626
        %v936 = vpack.c.bf16 %v634, %v634
        %v937 = vpack.c.bf16 %v642, %v642
        %v938 = vpack.c.bf16 %v641, %v641
        %v939 = vpack.c.bf16 %v643, %v643
        %v940 = vpack.c.bf16 %v651, %v651
        %v941 = vpack.c.bf16 %v659, %v659
        %v942 = vpack.c.bf16 %v658, %v658
        %v943 = vpack.c.bf16 %v660, %v660
        %v944 = vpack.c.bf16 %v668, %v668
        %v945 = vpack.c.bf16 %v676, %v676
        %v946 = vpack.c.bf16 %v675, %v675
        %v947 = vpack.c.bf16 %v677, %v677
        %v948 = vpack.c.bf16 %v685, %v685
        %v949 = vpack.c.bf16 %v693, %v693
        %v950 = vpack.c.bf16 %v692, %v692
        %v951 = vpack.c.bf16 %v694, %v694
        %v952 = vpack.c.bf16 %v702, %v702
        %v953 = vpack.c.bf16 %v710, %v710
        %v954 = vpack.c.bf16 %v709, %v709
        %v955 = vpack.c.bf16 %v711, %v711
        %v956 = vpack.c.bf16 %v719, %v719
        %v957 = vpack.c.bf16 %v727, %v727
        %v958 = vpack.c.bf16 %v726, %v726
        %v959 = vpack.c.bf16 %v728, %v728
        %v960 = vpack.c.bf16 %v736, %v736
        %v961 = vpack.c.bf16 %v744, %v744
        %v962 = vpack.c.bf16 %v743, %v743
        %v963 = vpack.c.bf16 %v745, %v745
        %v964 = vpack.c.bf16 %v753, %v753
        %v965 = vpack.c.bf16 %v761, %v761
        %v966 = vpack.c.bf16 %v760, %v760
        %v967 = vpack.c.bf16 %v762, %v762
        %v968 = vpack.c.bf16 %v770, %v770
        %v969 = vpack.c.bf16 %v778, %v778
        %v970 = vpack.c.bf16 %v777, %v777
        %v971 = vpack.c.bf16 %v779, %v779
        %v972 = vld [vmem:[#allocation2] sm:$0x3]
        %v973 = vld [vmem:[%s280] sm:$0xff]
        %v974 = vld [vmem:[%s280 + $0x8] sm:$0xff]
        %v975 = vld [vmem:[%s280 + $0x10] sm:$0xff]
        %v976 = vld [vmem:[%s280 + $0x18] sm:$0xff]
        %v977 = vld [vmem:[%s280 + $0x20] sm:$0xff]
        %v978 = vld [vmem:[%s280 + $0x28] sm:$0xff]
        %v979 = vld [vmem:[%s280 + $0x30] sm:$0xff]
        %v980 = vld [vmem:[%s280 + $0x38] sm:$0xff]
        %v981 = vld [vmem:[%s280 + $0x40] sm:$0xff]
        %v982 = vld [vmem:[%s280 + $0x48] sm:$0xff]
        %v983 = vld [vmem:[%s280 + $0x50] sm:$0xff]
        %v984 = vld [vmem:[%s280 + $0x58] sm:$0xff]
        %v985 = vld [vmem:[%s280 + $0x60] sm:$0xff]
        %v986 = vld [vmem:[%s280 + $0x68] sm:$0xff]
        %v987 = vld [vmem:[%s280 + $0x70] sm:$0xff]
        %v988 = vld [vmem:[%s280 + $0x78] sm:$0xff]
        %v989 = vld [vmem:[%s280 + $0x80] sm:$0xff]
        %v990 = vld [vmem:[%s280 + $0x88] sm:$0xff]
        %v991 = vld [vmem:[%s280 + $0x90] sm:$0xff]
        %v992 = vld [vmem:[%s280 + $0x98] sm:$0xff]
        %v993 = vld [vmem:[%s280 + $0xa0] sm:$0xff]
        %v994 = vld [vmem:[%s280 + $0xa8] sm:$0xff]
        %v995 = vld [vmem:[%s280 + $0xb0] sm:$0xff]
        %v996 = vld [vmem:[%s280 + $0xb8] sm:$0xff]
        %v997 = vld [vmem:[%s280 + $0xc0] sm:$0xff]
        %v998 = vld [vmem:[%s280 + $0xc8] sm:$0xff]
        %v999 = vld [vmem:[%s280 + $0xd0] sm:$0xff]
        %v1000 = vld [vmem:[%s280 + $0xd8] sm:$0xff]
        %v1001 = vld [vmem:[%s280 + $0xe0] sm:$0xff]
        %v1002 = vld [vmem:[%s280 + $0xe8] sm:$0xff]
        %v1003 = vld [vmem:[%s280 + $0xf0] sm:$0xff]
        %v1004 = vld [vmem:[%s280 + $0xf8] sm:$0xff]
        %v1005 = vld [vmem:[%s280 + $0x100] sm:$0xff]
        %v1006 = vld [vmem:[%s280 + $0x108] sm:$0xff]
        %v1007 = vld [vmem:[%s280 + $0x110] sm:$0xff]
        %v1008 = vld [vmem:[%s280 + $0x118] sm:$0xff]
        %v1009 = vld [vmem:[%s280 + $0x120] sm:$0xff]
        %v1010 = vld [vmem:[%s280 + $0x128] sm:$0xff]
        %v1011 = vld [vmem:[%s280 + $0x130] sm:$0xff]
        %v1012 = vld [vmem:[%s280 + $0x138] sm:$0xff]
        %v1013 = vld [vmem:[%s280 + $0x140] sm:$0xff]
        %v1014 = vld [vmem:[%s280 + $0x148] sm:$0xff]
        %v1015 = vld [vmem:[%s280 + $0x150] sm:$0xff]
        %v1016 = vld [vmem:[%s280 + $0x158] sm:$0xff]
        %v1017 = vld [vmem:[%s280 + $0x160] sm:$0xff]
        %v1018 = vld [vmem:[%s280 + $0x168] sm:$0xff]
        %v1019 = vld [vmem:[%s280 + $0x170] sm:$0xff]
        %v1020 = vld [vmem:[%s280 + $0x178] sm:$0xff]
        %v1021 = vld [vmem:[%s280 + $0x180] sm:$0x33]
        %v1022 = vld [vmem:[%s280 + $0x188] sm:$0x33]
        %v1023 = vld [vmem:[%s280 + $0x190] sm:$0x33]
        %v1024 = vld [vmem:[%s280 + $0x198] sm:$0x33]
        %v1025 = vld [vmem:[%s280 + $0x1a0] sm:$0x33]
        %v1026 = vld [vmem:[%s280 + $0x1a8] sm:$0x33]
        %v1027 = vld [vmem:[%s280 + $0x1b0] sm:$0x33]
        %v1028 = vld [vmem:[%s280 + $0x1b8] sm:$0x33]
        %v1029 = vld [vmem:[%s280 + $0x1c0] sm:$0x33]
        %v1030 = vld [vmem:[%s280 + $0x1c8] sm:$0x33]
        %v1031 = vld [vmem:[%s280 + $0x1d0] sm:$0x33]
        %v1032 = vld [vmem:[%s280 + $0x1d8] sm:$0x33]
        %v1033 = vld [vmem:[%s280 + $0x1e0] sm:$0x33]
        %v1034 = vld [vmem:[%s280 + $0x1e8] sm:$0x33]
        %v1035 = vld [vmem:[%s280 + $0x1f0] sm:$0x33]
        %v1036 = vld [vmem:[%s280 + $0x1f8] sm:$0x33]
        %v1037 = vld [vmem:[%s280 + $0x200] sm:$0x33]
        %v1038 = vld [vmem:[%s280 + $0x208] sm:$0x33]
        %v1039 = vld [vmem:[%s280 + $0x210] sm:$0x33]
        %v1040 = vld [vmem:[%s280 + $0x218] sm:$0x33]
        %v1041 = vld [vmem:[%s280 + $0x220] sm:$0x33]
        %v1042 = vld [vmem:[%s280 + $0x228] sm:$0x33]
        %v1043 = vld [vmem:[%s280 + $0x230] sm:$0x33]
        %v1044 = vld [vmem:[%s280 + $0x238] sm:$0x33]
        %v1045 = vld [vmem:[%s280 + $0x240] sm:$0x33]
        %v1046 = vld [vmem:[%s280 + $0x248] sm:$0x33]
        %v1047 = vld [vmem:[%s280 + $0x250] sm:$0x33]
        %v1048 = vld [vmem:[%s280 + $0x258] sm:$0x33]
        %v1049 = vld [vmem:[%s280 + $0x260] sm:$0x33]
        %v1050 = vld [vmem:[%s280 + $0x268] sm:$0x33]
        %v1051 = vld [vmem:[%s280 + $0x270] sm:$0x33]
        %v1052 = vld [vmem:[%s280 + $0x278] sm:$0x33]
        %v1053 = vld [vmem:[%s280 + $0x280] sm:$0x33]
        %v1054 = vld [vmem:[%s280 + $0x288] sm:$0x33]
        %v1055 = vld [vmem:[%s280 + $0x290] sm:$0x33]
        %v1056 = vld [vmem:[%s280 + $0x298] sm:$0x33]
        %v1057 = vld [vmem:[%s280 + $0x2a0] sm:$0x33]
        %v1058 = vld [vmem:[%s280 + $0x2a8] sm:$0x33]
        %v1059 = vld [vmem:[%s280 + $0x2b0] sm:$0x33]
        %v1060 = vld [vmem:[%s280 + $0x2b8] sm:$0x33]
        %v1061 = vld [vmem:[%s280 + $0x2c0] sm:$0x33]
        %v1062 = vld [vmem:[%s280 + $0x2c8] sm:$0x33]
        %v1063 = vld [vmem:[%s280 + $0x2d0] sm:$0x33]
        %v1064 = vld [vmem:[%s280 + $0x2d8] sm:$0x33]
        %v1065 = vld [vmem:[%s280 + $0x2e0] sm:$0x33]
        %v1066 = vld [vmem:[%s280 + $0x2e8] sm:$0x33]
        %v1067 = vld [vmem:[%s280 + $0x2f0] sm:$0x33]
        %v1068 = vld [vmem:[%s280 + $0x2f8] sm:$0x33]
        %v1165 = vunpack.c.l.b16 %v973
        %v1166 = vunpack.c.h.b16 %v973
        %v1167 = vunpack.c.l.b16 %v974
        %v1168 = vunpack.c.h.b16 %v974
        %v1169 = vunpack.c.l.b16 %v975
        %v1170 = vunpack.c.h.b16 %v975
        %v1171 = vunpack.c.l.b16 %v976
        %v1172 = vunpack.c.h.b16 %v976
        %v1173 = vunpack.c.l.b16 %v977
        %v1174 = vunpack.c.h.b16 %v977
        %v1175 = vunpack.c.l.b16 %v978
        %v1176 = vunpack.c.h.b16 %v978
        %v1177 = vunpack.c.l.b16 %v979
        %v1178 = vunpack.c.h.b16 %v979
        %v1179 = vunpack.c.l.b16 %v980
        %v1180 = vunpack.c.h.b16 %v980
        %v1181 = vunpack.c.l.b16 %v981
        %v1182 = vunpack.c.h.b16 %v981
        %v1183 = vunpack.c.l.b16 %v982
        %v1184 = vunpack.c.h.b16 %v982
        %v1185 = vunpack.c.l.b16 %v983
        %v1186 = vunpack.c.h.b16 %v983
        %v1187 = vunpack.c.l.b16 %v984
        %v1188 = vunpack.c.h.b16 %v984
        %v1189 = vunpack.c.l.b16 %v985
        %v1190 = vunpack.c.h.b16 %v985
        %v1191 = vunpack.c.l.b16 %v986
        %v1192 = vunpack.c.h.b16 %v986
        %v1193 = vunpack.c.l.b16 %v987
        %v1194 = vunpack.c.h.b16 %v987
        %v1195 = vunpack.c.l.b16 %v988
        %v1196 = vunpack.c.h.b16 %v988
        %v1197 = vunpack.c.l.b16 %v989
        %v1198 = vunpack.c.h.b16 %v989
        %v1199 = vunpack.c.l.b16 %v990
        %v1200 = vunpack.c.h.b16 %v990
        %v1201 = vunpack.c.l.b16 %v991
        %v1202 = vunpack.c.h.b16 %v991
        %v1203 = vunpack.c.l.b16 %v992
        %v1204 = vunpack.c.h.b16 %v992
        %v1205 = vunpack.c.l.b16 %v993
        %v1206 = vunpack.c.h.b16 %v993
        %v1207 = vunpack.c.l.b16 %v994
        %v1208 = vunpack.c.h.b16 %v994
        %v1209 = vunpack.c.l.b16 %v995
        %v1210 = vunpack.c.h.b16 %v995
        %v1211 = vunpack.c.l.b16 %v996
        %v1212 = vunpack.c.h.b16 %v996
        %v1213 = vunpack.c.l.b16 %v997
        %v1214 = vunpack.c.h.b16 %v997
        %v1215 = vunpack.c.l.b16 %v998
        %v1216 = vunpack.c.h.b16 %v998
        %v1217 = vunpack.c.l.b16 %v999
        %v1218 = vunpack.c.h.b16 %v999
        %v1219 = vunpack.c.l.b16 %v1000
        %v1220 = vunpack.c.h.b16 %v1000
        %v1221 = vunpack.c.l.b16 %v1001
        %v1222 = vunpack.c.h.b16 %v1001
        %v1223 = vunpack.c.l.b16 %v1002
        %v1224 = vunpack.c.h.b16 %v1002
        %v1225 = vunpack.c.l.b16 %v1003
        %v1226 = vunpack.c.h.b16 %v1003
        %v1227 = vunpack.c.l.b16 %v1004
        %v1228 = vunpack.c.h.b16 %v1004
        %v1229 = vunpack.c.l.b16 %v1005
        %v1230 = vunpack.c.h.b16 %v1005
        %v1231 = vunpack.c.l.b16 %v1006
        %v1232 = vunpack.c.h.b16 %v1006
        %v1233 = vunpack.c.l.b16 %v1007
        %v1234 = vunpack.c.h.b16 %v1007
        %v1235 = vunpack.c.l.b16 %v1008
        %v1236 = vunpack.c.h.b16 %v1008
        %v1237 = vunpack.c.l.b16 %v1009
        %v1238 = vunpack.c.h.b16 %v1009
        %v1239 = vunpack.c.l.b16 %v1010
        %v1240 = vunpack.c.h.b16 %v1010
        %v1241 = vunpack.c.l.b16 %v1011
        %v1242 = vunpack.c.h.b16 %v1011
        %v1243 = vunpack.c.l.b16 %v1012
        %v1244 = vunpack.c.h.b16 %v1012
        %v1245 = vunpack.c.l.b16 %v1013
        %v1246 = vunpack.c.h.b16 %v1013
        %v1247 = vunpack.c.l.b16 %v1014
        %v1248 = vunpack.c.h.b16 %v1014
        %v1249 = vunpack.c.l.b16 %v1015
        %v1250 = vunpack.c.h.b16 %v1015
        %v1251 = vunpack.c.l.b16 %v1016
        %v1252 = vunpack.c.h.b16 %v1016
        %v1253 = vunpack.c.l.b16 %v1017
        %v1254 = vunpack.c.h.b16 %v1017
        %v1255 = vunpack.c.l.b16 %v1018
        %v1256 = vunpack.c.h.b16 %v1018
        %v1257 = vunpack.c.l.b16 %v1019
        %v1258 = vunpack.c.h.b16 %v1019
        %v1259 = vunpack.c.l.b16 %v1020
        %v1260 = vunpack.c.h.b16 %v1020
        %v1261 = vunpack.c.l.b16 %v1021
        %v1262 = vunpack.c.h.b16 %v1021
        %v1263 = vunpack.c.l.b16 %v1022
        %v1264 = vunpack.c.h.b16 %v1022
        %v1265 = vunpack.c.l.b16 %v1023
        %v1266 = vunpack.c.h.b16 %v1023
        %v1267 = vunpack.c.l.b16 %v1024
        %v1268 = vunpack.c.h.b16 %v1024
        %v1269 = vunpack.c.l.b16 %v1025
        %v1270 = vunpack.c.h.b16 %v1025
        %v1271 = vunpack.c.l.b16 %v1026
        %v1272 = vunpack.c.h.b16 %v1026
        %v1273 = vunpack.c.l.b16 %v1027
        %v1274 = vunpack.c.h.b16 %v1027
        %v1275 = vunpack.c.l.b16 %v1028
        %v1276 = vunpack.c.h.b16 %v1028
        %v1277 = vunpack.c.l.b16 %v1029
        %v1278 = vunpack.c.h.b16 %v1029
        %v1279 = vunpack.c.l.b16 %v1030
        %v1280 = vunpack.c.h.b16 %v1030
        %v1281 = vunpack.c.l.b16 %v1031
        %v1282 = vunpack.c.h.b16 %v1031
        %v1283 = vunpack.c.l.b16 %v1032
        %v1284 = vunpack.c.h.b16 %v1032
        %v1285 = vunpack.c.l.b16 %v1033
        %v1286 = vunpack.c.h.b16 %v1033
        %v1287 = vunpack.c.l.b16 %v1034
        %v1288 = vunpack.c.h.b16 %v1034
        %v1289 = vunpack.c.l.b16 %v1035
        %v1290 = vunpack.c.h.b16 %v1035
        %v1291 = vunpack.c.l.b16 %v1036
        %v1292 = vunpack.c.h.b16 %v1036
        %v1293 = vunpack.c.l.b16 %v1037
        %v1294 = vunpack.c.h.b16 %v1037
        %v1295 = vunpack.c.l.b16 %v1038
        %v1296 = vunpack.c.h.b16 %v1038
        %v1297 = vunpack.c.l.b16 %v1039
        %v1298 = vunpack.c.h.b16 %v1039
        %v1299 = vunpack.c.l.b16 %v1040
        %v1300 = vunpack.c.h.b16 %v1040
        %v1301 = vunpack.c.l.b16 %v1041
        %v1302 = vunpack.c.h.b16 %v1041
        %v1303 = vunpack.c.l.b16 %v1042
        %v1304 = vunpack.c.h.b16 %v1042
        %v1305 = vunpack.c.l.b16 %v1043
        %v1306 = vunpack.c.h.b16 %v1043
        %v1307 = vunpack.c.l.b16 %v1044
        %v1308 = vunpack.c.h.b16 %v1044
        %v1309 = vunpack.c.l.b16 %v1045
        %v1310 = vunpack.c.h.b16 %v1045
        %v1311 = vunpack.c.l.b16 %v1046
        %v1312 = vunpack.c.h.b16 %v1046
        %v1313 = vunpack.c.l.b16 %v1047
        %v1314 = vunpack.c.h.b16 %v1047
        %v1315 = vunpack.c.l.b16 %v1048
        %v1316 = vunpack.c.h.b16 %v1048
        %v1317 = vunpack.c.l.b16 %v1049
        %v1318 = vunpack.c.h.b16 %v1049
        %v1319 = vunpack.c.l.b16 %v1050
        %v1320 = vunpack.c.h.b16 %v1050
        %v1321 = vunpack.c.l.b16 %v1051
        %v1322 = vunpack.c.h.b16 %v1051
        %v1323 = vunpack.c.l.b16 %v1052
        %v1324 = vunpack.c.h.b16 %v1052
        %v1325 = vunpack.c.l.b16 %v1053
        %v1326 = vunpack.c.h.b16 %v1053
        %v1327 = vunpack.c.l.b16 %v1054
        %v1328 = vunpack.c.h.b16 %v1054
        %v1329 = vunpack.c.l.b16 %v1055
        %v1330 = vunpack.c.h.b16 %v1055
        %v1331 = vunpack.c.l.b16 %v1056
        %v1332 = vunpack.c.h.b16 %v1056
        %v1333 = vunpack.c.l.b16 %v1057
        %v1334 = vunpack.c.h.b16 %v1057
        %v1335 = vunpack.c.l.b16 %v1058
        %v1336 = vunpack.c.h.b16 %v1058
        %v1337 = vunpack.c.l.b16 %v1059
        %v1338 = vunpack.c.h.b16 %v1059
        %v1339 = vunpack.c.l.b16 %v1060
        %v1340 = vunpack.c.h.b16 %v1060
        %v1341 = vunpack.c.l.b16 %v1061
        %v1342 = vunpack.c.h.b16 %v1061
        %v1343 = vunpack.c.l.b16 %v1062
        %v1344 = vunpack.c.h.b16 %v1062
        %v1345 = vunpack.c.l.b16 %v1063
        %v1346 = vunpack.c.h.b16 %v1063
        %v1347 = vunpack.c.l.b16 %v1064
        %v1348 = vunpack.c.h.b16 %v1064
        %v1349 = vunpack.c.l.b16 %v1065
        %v1350 = vunpack.c.h.b16 %v1065
        %v1351 = vunpack.c.l.b16 %v1066
        %v1352 = vunpack.c.h.b16 %v1066
        %v1353 = vunpack.c.l.b16 %v1067
        %v1354 = vunpack.c.h.b16 %v1067
        %v1355 = vunpack.c.l.b16 %v1068
        %v1356 = vunpack.c.h.b16 %v1068
        %v1357 = vpack.c.b16 %v1261, %v1165
        %v1358 = vpack.c.b16 %v1262, %v1166
        %v1359 = vpack.c.b16 %v1263, %v1167
        %v1360 = vpack.c.b16 %v1264, %v1168
        %v1361 = vpack.c.b16 %v1265, %v1169
        %v1362 = vpack.c.b16 %v1266, %v1170
        %v1363 = vpack.c.b16 %v1267, %v1171
        %v1364 = vpack.c.b16 %v1268, %v1172
        %v1365 = vpack.c.b16 %v1269, %v1173
        %v1366 = vpack.c.b16 %v1270, %v1174
        %v1367 = vpack.c.b16 %v1271, %v1175
        %v1368 = vpack.c.b16 %v1272, %v1176
        %v1369 = vpack.c.b16 %v1273, %v1177
        %v1370 = vpack.c.b16 %v1274, %v1178
        %v1371 = vpack.c.b16 %v1275, %v1179
        %v1372 = vpack.c.b16 %v1276, %v1180
        %v1373 = vpack.c.b16 %v1277, %v1181
        %v1374 = vpack.c.b16 %v1278, %v1182
        %v1375 = vpack.c.b16 %v1279, %v1183
        %v1376 = vpack.c.b16 %v1280, %v1184
        %v1377 = vpack.c.b16 %v1281, %v1185
        %v1378 = vpack.c.b16 %v1282, %v1186
        %v1379 = vpack.c.b16 %v1283, %v1187
        %v1380 = vpack.c.b16 %v1284, %v1188
        %v1381 = vpack.c.b16 %v1285, %v1189
        %v1382 = vpack.c.b16 %v1286, %v1190
        %v1383 = vpack.c.b16 %v1287, %v1191
        %v1384 = vpack.c.b16 %v1288, %v1192
        %v1385 = vpack.c.b16 %v1289, %v1193
        %v1386 = vpack.c.b16 %v1290, %v1194
        %v1387 = vpack.c.b16 %v1291, %v1195
        %v1388 = vpack.c.b16 %v1292, %v1196
        %v1389 = vpack.c.b16 %v1293, %v1197
        %v1390 = vpack.c.b16 %v1294, %v1198
        %v1391 = vpack.c.b16 %v1295, %v1199
        %v1392 = vpack.c.b16 %v1296, %v1200
        %v1393 = vpack.c.b16 %v1297, %v1201
        %v1394 = vpack.c.b16 %v1298, %v1202
        %v1395 = vpack.c.b16 %v1299, %v1203
        %v1396 = vpack.c.b16 %v1300, %v1204
        %v1397 = vpack.c.b16 %v1301, %v1205
        %v1398 = vpack.c.b16 %v1302, %v1206
        %v1399 = vpack.c.b16 %v1303, %v1207
        %v1400 = vpack.c.b16 %v1304, %v1208
        %v1401 = vpack.c.b16 %v1305, %v1209
        %v1402 = vpack.c.b16 %v1306, %v1210
        %v1403 = vpack.c.b16 %v1307, %v1211
        %v1404 = vpack.c.b16 %v1308, %v1212
        %v1405 = vpack.c.b16 %v1309, %v1213
        %v1406 = vpack.c.b16 %v1310, %v1214
        %v1407 = vpack.c.b16 %v1311, %v1215
        %v1408 = vpack.c.b16 %v1312, %v1216
        %v1409 = vpack.c.b16 %v1313, %v1217
        %v1410 = vpack.c.b16 %v1314, %v1218
        %v1411 = vpack.c.b16 %v1315, %v1219
        %v1412 = vpack.c.b16 %v1316, %v1220
        %v1413 = vpack.c.b16 %v1317, %v1221
        %v1414 = vpack.c.b16 %v1318, %v1222
        %v1415 = vpack.c.b16 %v1319, %v1223
        %v1416 = vpack.c.b16 %v1320, %v1224
        %v1417 = vpack.c.b16 %v1321, %v1225
        %v1418 = vpack.c.b16 %v1322, %v1226
        %v1419 = vpack.c.b16 %v1323, %v1227
        %v1420 = vpack.c.b16 %v1324, %v1228
        %v1421 = vpack.c.b16 %v1325, %v1229
        %v1422 = vpack.c.b16 %v1326, %v1230
        %v1423 = vpack.c.b16 %v1327, %v1231
        %v1424 = vpack.c.b16 %v1328, %v1232
        %v1425 = vpack.c.b16 %v1329, %v1233
        %v1426 = vpack.c.b16 %v1330, %v1234
        %v1427 = vpack.c.b16 %v1331, %v1235
        %v1428 = vpack.c.b16 %v1332, %v1236
        %v1429 = vpack.c.b16 %v1333, %v1237
        %v1430 = vpack.c.b16 %v1334, %v1238
        %v1431 = vpack.c.b16 %v1335, %v1239
        %v1432 = vpack.c.b16 %v1336, %v1240
        %v1433 = vpack.c.b16 %v1337, %v1241
        %v1434 = vpack.c.b16 %v1338, %v1242
        %v1435 = vpack.c.b16 %v1339, %v1243
        %v1436 = vpack.c.b16 %v1340, %v1244
        %v1437 = vpack.c.b16 %v1341, %v1245
        %v1438 = vpack.c.b16 %v1342, %v1246
        %v1439 = vpack.c.b16 %v1343, %v1247
        %v1440 = vpack.c.b16 %v1344, %v1248
        %v1441 = vpack.c.b16 %v1345, %v1249
        %v1442 = vpack.c.b16 %v1346, %v1250
        %v1443 = vpack.c.b16 %v1347, %v1251
        %v1444 = vpack.c.b16 %v1348, %v1252
        %v1445 = vpack.c.b16 %v1349, %v1253
        %v1446 = vpack.c.b16 %v1350, %v1254
        %v1447 = vpack.c.b16 %v1351, %v1255
        %v1448 = vpack.c.b16 %v1352, %v1256
        %v1449 = vpack.c.b16 %v1353, %v1257
        %v1450 = vpack.c.b16 %v1354, %v1258
        %v1451 = vpack.c.b16 %v1355, %v1259
        %v1452 = vpack.c.b16 %v1356, %v1260
        %1549 = vmatprep.subr.bf16.mxu0 %v1358
        %1550 = vmatpush1.bf16.xpose.msra.mxu0 %v1357
        %1551 = vmatprep.subr.bf16.mxu0 0
        %1552 = vmatpush1.bf16.xpose.msra.mxu0 0
        %1553 = vmatprep.subr.bf16.mxu0 0
        %1554 = vmatpush1.bf16.xpose.msra.mxu0 0
        %1555 = vmatprep.subr.bf16.mxu0 0
        %1556 = vmatpush1.bf16.xpose.msra.mxu0 0
        %1557 = vmatprep.subr.bf16.mxu0 0
        %1558 = vmatpush1.bf16.xpose.msra.mxu0 0
        %1559 = vmatprep.subr.bf16.mxu0 0
        %1560 = vmatpush1.bf16.xpose.msra.mxu0 0
        %1561 = vmatprep.subr.bf16.mxu0 0
        %1562 = vmatpush1.bf16.xpose.msra.mxu0 0
        %1563 = vmatprep.subr.bf16.mxu0 0
        %1564 = vmatpush1.bf16.xpose.msra.mxu0 0
        %1565 = vmatprep.subr.bf16.mxu0 0
        %1566 = vmatpush1.bf16.xpose.msra.mxu0 0
        %1567 = vmatprep.subr.bf16.mxu0 0
        %1568 = vmatpush1.bf16.xpose.msra.mxu0 0
        %1569 = vmatprep.subr.bf16.mxu0 0
        %1570 = vmatpush1.bf16.xpose.msra.mxu0 0
        %1571 = vmatprep.subr.bf16.mxu0 0
        %1572 = vmatpush1.bf16.xpose.msra.mxu0 0
        %1573 = vmatprep.subr.bf16.mxu0 0
        %1574 = vmatpush1.bf16.xpose.msra.mxu0 0
        %1575 = vmatprep.subr.bf16.mxu0 0
        %1576 = vmatpush1.bf16.xpose.msra.mxu0 0
        %1577 = vmatprep.subr.bf16.mxu0 0
        %1578 = vmatpush1.bf16.xpose.msra.mxu0 0
        %1579 = vmatprep.subr.bf16.mxu0 0
        %1580 = vmatpush1.bf16.xpose.msra.mxu0 0
        %1581 = vmatprep.mubr.bf16.mxu0 %v877
        %1582 = vmatmul.mubr.bf16.gmra.mrb[0].mxu0 %v876
        %v1583 = vpop.f32.mrb[0].mxu0
        %v1584 = vadd.f32 0.0, %v1583
        %v1585 = vpop.f32.mrb[0].mxu0
        %v1586 = vpop.f32.mrb[0].mxu0
        %v1587 = vpop.f32.mrb[0].mxu0
        %1588 = vdwg.mxu0
        %1589 = vmatprep.subr.bf16.mxu0 %v1360
        %1590 = vmatpush1.bf16.xpose.msra.mxu0 %v1359
        %1591 = vmatprep.subr.bf16.mxu0 0
        %1592 = vmatpush1.bf16.xpose.msra.mxu0 0
        %1593 = vmatprep.subr.bf16.mxu0 0
        %1594 = vmatpush1.bf16.xpose.msra.mxu0 0
        %1595 = vmatprep.subr.bf16.mxu0 0
        %1596 = vmatpush1.bf16.xpose.msra.mxu0 0
        %1597 = vmatprep.subr.bf16.mxu0 0
        %1598 = vmatpush1.bf16.xpose.msra.mxu0 0
        %1599 = vmatprep.subr.bf16.mxu0 0
        %1600 = vmatpush1.bf16.xpose.msra.mxu0 0
        %1601 = vmatprep.subr.bf16.mxu0 0
        %1602 = vmatpush1.bf16.xpose.msra.mxu0 0
        %1603 = vmatprep.subr.bf16.mxu0 0
        %1604 = vmatpush1.bf16.xpose.msra.mxu0 0
        %1605 = vmatprep.subr.bf16.mxu0 0
        %1606 = vmatpush1.bf16.xpose.msra.mxu0 0
        %1607 = vmatprep.subr.bf16.mxu0 0
        %1608 = vmatpush1.bf16.xpose.msra.mxu0 0
        %1609 = vmatprep.subr.bf16.mxu0 0
        %1610 = vmatpush1.bf16.xpose.msra.mxu0 0
        %1611 = vmatprep.subr.bf16.mxu0 0
        %1612 = vmatpush1.bf16.xpose.msra.mxu0 0
        %1613 = vmatprep.subr.bf16.mxu0 0
        %1614 = vmatpush1.bf16.xpose.msra.mxu0 0
        %1615 = vmatprep.subr.bf16.mxu0 0
        %1616 = vmatpush1.bf16.xpose.msra.mxu0 0
        %1617 = vmatprep.subr.bf16.mxu0 0
        %1618 = vmatpush1.bf16.xpose.msra.mxu0 0
        %1619 = vmatprep.subr.bf16.mxu0 0
        %1620 = vmatpush1.bf16.xpose.msra.mxu0 0
        %1621 = vmatprep.mubr.bf16.mxu0 %v879
        %1622 = vmatmul.mubr.bf16.gmra.mrb[0].mxu0 %v878
        %v1623 = vpop.f32.mrb[0].mxu0
        %v1624 = vadd.f32 %v1584, %v1623
        %v1625 = vpop.f32.mrb[0].mxu0
        %v1626 = vpop.f32.mrb[0].mxu0
        %v1627 = vpop.f32.mrb[0].mxu0
        %1628 = vdwg.mxu0
        %1629 = vmatprep.subr.bf16.mxu0 %v1362
        %1630 = vmatpush1.bf16.xpose.msra.mxu0 %v1361
        %1631 = vmatprep.subr.bf16.mxu0 0
        %1632 = vmatpush1.bf16.xpose.msra.mxu0 0
        %1633 = vmatprep.subr.bf16.mxu0 0
        %1634 = vmatpush1.bf16.xpose.msra.mxu0 0
        %1635 = vmatprep.subr.bf16.mxu0 0
        %1636 = vmatpush1.bf16.xpose.msra.mxu0 0
        %1637 = vmatprep.subr.bf16.mxu0 0
        %1638 = vmatpush1.bf16.xpose.msra.mxu0 0
        %1639 = vmatprep.subr.bf16.mxu0 0
        %1640 = vmatpush1.bf16.xpose.msra.mxu0 0
        %1641 = vmatprep.subr.bf16.mxu0 0
        %1642 = vmatpush1.bf16.xpose.msra.mxu0 0
        %1643 = vmatprep.subr.bf16.mxu0 0
        %1644 = vmatpush1.bf16.xpose.msra.mxu0 0
        %1645 = vmatprep.subr.bf16.mxu0 0
        %1646 = vmatpush1.bf16.xpose.msra.mxu0 0
        %1647 = vmatprep.subr.bf16.mxu0 0
        %1648 = vmatpush1.bf16.xpose.msra.mxu0 0
        %1649 = vmatprep.subr.bf16.mxu0 0
        %1650 = vmatpush1.bf16.xpose.msra.mxu0 0
        %1651 = vmatprep.subr.bf16.mxu0 0
        %1652 = vmatpush1.bf16.xpose.msra.mxu0 0
        %1653 = vmatprep.subr.bf16.mxu0 0
        %1654 = vmatpush1.bf16.xpose.msra.mxu0 0
        %1655 = vmatprep.subr.bf16.mxu0 0
        %1656 = vmatpush1.bf16.xpose.msra.mxu0 0
        %1657 = vmatprep.subr.bf16.mxu0 0
        %1658 = vmatpush1.bf16.xpose.msra.mxu0 0
        %1659 = vmatprep.subr.bf16.mxu0 0
        %1660 = vmatpush1.bf16.xpose.msra.mxu0 0
        %1661 = vmatprep.mubr.bf16.mxu0 %v881
        %1662 = vmatmul.mubr.bf16.gmra.mrb[0].mxu0 %v880
        %v1663 = vpop.f32.mrb[0].mxu0
        %v1664 = vadd.f32 %v1624, %v1663
        %v1665 = vpop.f32.mrb[0].mxu0
        %v1666 = vpop.f32.mrb[0].mxu0
        %v1667 = vpop.f32.mrb[0].mxu0
        %1668 = vdwg.mxu0
        %1669 = vmatprep.subr.bf16.mxu0 %v1364
        %1670 = vmatpush1.bf16.xpose.msra.mxu0 %v1363
        %1671 = vmatprep.subr.bf16.mxu0 0
        %1672 = vmatpush1.bf16.xpose.msra.mxu0 0
        %1673 = vmatprep.subr.bf16.mxu0 0
        %1674 = vmatpush1.bf16.xpose.msra.mxu0 0
        %1675 = vmatprep.subr.bf16.mxu0 0
        %1676 = vmatpush1.bf16.xpose.msra.mxu0 0
        %1677 = vmatprep.subr.bf16.mxu0 0
        %1678 = vmatpush1.bf16.xpose.msra.mxu0 0
        %1679 = vmatprep.subr.bf16.mxu0 0
        %1680 = vmatpush1.bf16.xpose.msra.mxu0 0
        %1681 = vmatprep.subr.bf16.mxu0 0
        %1682 = vmatpush1.bf16.xpose.msra.mxu0 0
        %1683 = vmatprep.subr.bf16.mxu0 0
        %1684 = vmatpush1.bf16.xpose.msra.mxu0 0
        %1685 = vmatprep.subr.bf16.mxu0 0
        %1686 = vmatpush1.bf16.xpose.msra.mxu0 0
        %1687 = vmatprep.subr.bf16.mxu0 0
        %1688 = vmatpush1.bf16.xpose.msra.mxu0 0
        %1689 = vmatprep.subr.bf16.mxu0 0
        %1690 = vmatpush1.bf16.xpose.msra.mxu0 0
        %1691 = vmatprep.subr.bf16.mxu0 0
        %1692 = vmatpush1.bf16.xpose.msra.mxu0 0
        %1693 = vmatprep.subr.bf16.mxu0 0
        %1694 = vmatpush1.bf16.xpose.msra.mxu0 0
        %1695 = vmatprep.subr.bf16.mxu0 0
        %1696 = vmatpush1.bf16.xpose.msra.mxu0 0
        %1697 = vmatprep.subr.bf16.mxu0 0
        %1698 = vmatpush1.bf16.xpose.msra.mxu0 0
        %1699 = vmatprep.subr.bf16.mxu0 0
        %1700 = vmatpush1.bf16.xpose.msra.mxu0 0
        %1701 = vmatprep.mubr.bf16.mxu0 %v883
        %1702 = vmatmul.mubr.bf16.gmra.mrb[0].mxu0 %v882
        %v1703 = vpop.f32.mrb[0].mxu0
        %v1704 = vadd.f32 %v1664, %v1703
        %v1705 = vpop.f32.mrb[0].mxu0
        %v1706 = vpop.f32.mrb[0].mxu0
        %v1707 = vpop.f32.mrb[0].mxu0
        %1708 = vdwg.mxu0
        %1709 = vmatprep.subr.bf16.mxu0 %v1366
        %1710 = vmatpush1.bf16.xpose.msra.mxu0 %v1365
        %1711 = vmatprep.subr.bf16.mxu0 0
        %1712 = vmatpush1.bf16.xpose.msra.mxu0 0
        %1713 = vmatprep.subr.bf16.mxu0 0
        %1714 = vmatpush1.bf16.xpose.msra.mxu0 0
        %1715 = vmatprep.subr.bf16.mxu0 0
        %1716 = vmatpush1.bf16.xpose.msra.mxu0 0
        %1717 = vmatprep.subr.bf16.mxu0 0
        %1718 = vmatpush1.bf16.xpose.msra.mxu0 0
        %1719 = vmatprep.subr.bf16.mxu0 0
        %1720 = vmatpush1.bf16.xpose.msra.mxu0 0
        %1721 = vmatprep.subr.bf16.mxu0 0
        %1722 = vmatpush1.bf16.xpose.msra.mxu0 0
        %1723 = vmatprep.subr.bf16.mxu0 0
        %1724 = vmatpush1.bf16.xpose.msra.mxu0 0
        %1725 = vmatprep.subr.bf16.mxu0 0
        %1726 = vmatpush1.bf16.xpose.msra.mxu0 0
        %1727 = vmatprep.subr.bf16.mxu0 0
        %1728 = vmatpush1.bf16.xpose.msra.mxu0 0
        %1729 = vmatprep.subr.bf16.mxu0 0
        %1730 = vmatpush1.bf16.xpose.msra.mxu0 0
        %1731 = vmatprep.subr.bf16.mxu0 0
        %1732 = vmatpush1.bf16.xpose.msra.mxu0 0
        %1733 = vmatprep.subr.bf16.mxu0 0
        %1734 = vmatpush1.bf16.xpose.msra.mxu0 0
        %1735 = vmatprep.subr.bf16.mxu0 0
        %1736 = vmatpush1.bf16.xpose.msra.mxu0 0
        %1737 = vmatprep.subr.bf16.mxu0 0
        %1738 = vmatpush1.bf16.xpose.msra.mxu0 0
        %1739 = vmatprep.subr.bf16.mxu0 0
        %1740 = vmatpush1.bf16.xpose.msra.mxu0 0
        %1741 = vmatprep.mubr.bf16.mxu0 %v885
        %1742 = vmatmul.mubr.bf16.gmra.mrb[0].mxu0 %v884
        %v1743 = vpop.f32.mrb[0].mxu0
        %v1744 = vadd.f32 %v1704, %v1743
        %v1745 = vpop.f32.mrb[0].mxu0
        %v1746 = vpop.f32.mrb[0].mxu0
        %v1747 = vpop.f32.mrb[0].mxu0
        %1748 = vdwg.mxu0
        %1749 = vmatprep.subr.bf16.mxu0 %v1368
        %1750 = vmatpush1.bf16.xpose.msra.mxu0 %v1367
        %1751 = vmatprep.subr.bf16.mxu0 0
        %1752 = vmatpush1.bf16.xpose.msra.mxu0 0
        %1753 = vmatprep.subr.bf16.mxu0 0
        %1754 = vmatpush1.bf16.xpose.msra.mxu0 0
        %1755 = vmatprep.subr.bf16.mxu0 0
        %1756 = vmatpush1.bf16.xpose.msra.mxu0 0
        %1757 = vmatprep.subr.bf16.mxu0 0
        %1758 = vmatpush1.bf16.xpose.msra.mxu0 0
        %1759 = vmatprep.subr.bf16.mxu0 0
        %1760 = vmatpush1.bf16.xpose.msra.mxu0 0
        %1761 = vmatprep.subr.bf16.mxu0 0
        %1762 = vmatpush1.bf16.xpose.msra.mxu0 0
        %1763 = vmatprep.subr.bf16.mxu0 0
        %1764 = vmatpush1.bf16.xpose.msra.mxu0 0
        %1765 = vmatprep.subr.bf16.mxu0 0
        %1766 = vmatpush1.bf16.xpose.msra.mxu0 0
        %1767 = vmatprep.subr.bf16.mxu0 0
        %1768 = vmatpush1.bf16.xpose.msra.mxu0 0
        %1769 = vmatprep.subr.bf16.mxu0 0
        %1770 = vmatpush1.bf16.xpose.msra.mxu0 0
        %1771 = vmatprep.subr.bf16.mxu0 0
        %1772 = vmatpush1.bf16.xpose.msra.mxu0 0
        %1773 = vmatprep.subr.bf16.mxu0 0
        %1774 = vmatpush1.bf16.xpose.msra.mxu0 0
        %1775 = vmatprep.subr.bf16.mxu0 0
        %1776 = vmatpush1.bf16.xpose.msra.mxu0 0
        %1777 = vmatprep.subr.bf16.mxu0 0
        %1778 = vmatpush1.bf16.xpose.msra.mxu0 0
        %1779 = vmatprep.subr.bf16.mxu0 0
        %1780 = vmatpush1.bf16.xpose.msra.mxu0 0
        %1781 = vmatprep.mubr.bf16.mxu0 %v887
        %1782 = vmatmul.mubr.bf16.gmra.mrb[0].mxu0 %v886
        %v1783 = vpop.f32.mrb[0].mxu0
        %v1784 = vadd.f32 %v1744, %v1783
        %v1785 = vpop.f32.mrb[0].mxu0
        %v1786 = vpop.f32.mrb[0].mxu0
        %v1787 = vpop.f32.mrb[0].mxu0
        %1788 = vdwg.mxu0
        %1789 = vmatprep.subr.bf16.mxu0 %v1370
        %1790 = vmatpush1.bf16.xpose.msra.mxu0 %v1369
        %1791 = vmatprep.subr.bf16.mxu0 0
        %1792 = vmatpush1.bf16.xpose.msra.mxu0 0
        %1793 = vmatprep.subr.bf16.mxu0 0
        %1794 = vmatpush1.bf16.xpose.msra.mxu0 0
        %1795 = vmatprep.subr.bf16.mxu0 0
        %1796 = vmatpush1.bf16.xpose.msra.mxu0 0
        %1797 = vmatprep.subr.bf16.mxu0 0
        %1798 = vmatpush1.bf16.xpose.msra.mxu0 0
        %1799 = vmatprep.subr.bf16.mxu0 0
        %1800 = vmatpush1.bf16.xpose.msra.mxu0 0
        %1801 = vmatprep.subr.bf16.mxu0 0
        %1802 = vmatpush1.bf16.xpose.msra.mxu0 0
        %1803 = vmatprep.subr.bf16.mxu0 0
        %1804 = vmatpush1.bf16.xpose.msra.mxu0 0
        %1805 = vmatprep.subr.bf16.mxu0 0
        %1806 = vmatpush1.bf16.xpose.msra.mxu0 0
        %1807 = vmatprep.subr.bf16.mxu0 0
        %1808 = vmatpush1.bf16.xpose.msra.mxu0 0
        %1809 = vmatprep.subr.bf16.mxu0 0
        %1810 = vmatpush1.bf16.xpose.msra.mxu0 0
        %1811 = vmatprep.subr.bf16.mxu0 0
        %1812 = vmatpush1.bf16.xpose.msra.mxu0 0
        %1813 = vmatprep.subr.bf16.mxu0 0
        %1814 = vmatpush1.bf16.xpose.msra.mxu0 0
        %1815 = vmatprep.subr.bf16.mxu0 0
        %1816 = vmatpush1.bf16.xpose.msra.mxu0 0
        %1817 = vmatprep.subr.bf16.mxu0 0
        %1818 = vmatpush1.bf16.xpose.msra.mxu0 0
        %1819 = vmatprep.subr.bf16.mxu0 0
        %1820 = vmatpush1.bf16.xpose.msra.mxu0 0
        %1821 = vmatprep.mubr.bf16.mxu0 %v889
        %1822 = vmatmul.mubr.bf16.gmra.mrb[0].mxu0 %v888
        %v1823 = vpop.f32.mrb[0].mxu0
        %v1824 = vadd.f32 %v1784, %v1823
        %v1825 = vpop.f32.mrb[0].mxu0
        %v1826 = vpop.f32.mrb[0].mxu0
        %v1827 = vpop.f32.mrb[0].mxu0
        %1828 = vdwg.mxu0
        %1829 = vmatprep.subr.bf16.mxu0 %v1372
        %1830 = vmatpush1.bf16.xpose.msra.mxu0 %v1371
        %1831 = vmatprep.subr.bf16.mxu0 0
        %1832 = vmatpush1.bf16.xpose.msra.mxu0 0
        %1833 = vmatprep.subr.bf16.mxu0 0
        %1834 = vmatpush1.bf16.xpose.msra.mxu0 0
        %1835 = vmatprep.subr.bf16.mxu0 0
        %1836 = vmatpush1.bf16.xpose.msra.mxu0 0
        %1837 = vmatprep.subr.bf16.mxu0 0
        %1838 = vmatpush1.bf16.xpose.msra.mxu0 0
        %1839 = vmatprep.subr.bf16.mxu0 0
        %1840 = vmatpush1.bf16.xpose.msra.mxu0 0
        %1841 = vmatprep.subr.bf16.mxu0 0
        %1842 = vmatpush1.bf16.xpose.msra.mxu0 0
        %1843 = vmatprep.subr.bf16.mxu0 0
        %1844 = vmatpush1.bf16.xpose.msra.mxu0 0
        %1845 = vmatprep.subr.bf16.mxu0 0
        %1846 = vmatpush1.bf16.xpose.msra.mxu0 0
        %1847 = vmatprep.subr.bf16.mxu0 0
        %1848 = vmatpush1.bf16.xpose.msra.mxu0 0
        %1849 = vmatprep.subr.bf16.mxu0 0
        %1850 = vmatpush1.bf16.xpose.msra.mxu0 0
        %1851 = vmatprep.subr.bf16.mxu0 0
        %1852 = vmatpush1.bf16.xpose.msra.mxu0 0
        %1853 = vmatprep.subr.bf16.mxu0 0
        %1854 = vmatpush1.bf16.xpose.msra.mxu0 0
        %1855 = vmatprep.subr.bf16.mxu0 0
        %1856 = vmatpush1.bf16.xpose.msra.mxu0 0
        %1857 = vmatprep.subr.bf16.mxu0 0
        %1858 = vmatpush1.bf16.xpose.msra.mxu0 0
        %1859 = vmatprep.subr.bf16.mxu0 0
        %1860 = vmatpush1.bf16.xpose.msra.mxu0 0
        %1861 = vmatprep.mubr.bf16.mxu0 %v891
        %1862 = vmatmul.mubr.bf16.gmra.mrb[0].mxu0 %v890
        %v1863 = vpop.f32.mrb[0].mxu0
        %v1864 = vadd.f32 %v1824, %v1863
        %v1865 = vpop.f32.mrb[0].mxu0
        %v1866 = vpop.f32.mrb[0].mxu0
        %v1867 = vpop.f32.mrb[0].mxu0
        %1868 = vdwg.mxu0
        %1869 = vmatprep.subr.bf16.mxu0 %v1374
        %1870 = vmatpush1.bf16.xpose.msra.mxu0 %v1373
        %1871 = vmatprep.subr.bf16.mxu0 0
        %1872 = vmatpush1.bf16.xpose.msra.mxu0 0
        %1873 = vmatprep.subr.bf16.mxu0 0
        %1874 = vmatpush1.bf16.xpose.msra.mxu0 0
        %1875 = vmatprep.subr.bf16.mxu0 0
        %1876 = vmatpush1.bf16.xpose.msra.mxu0 0
        %1877 = vmatprep.subr.bf16.mxu0 0
        %1878 = vmatpush1.bf16.xpose.msra.mxu0 0
        %1879 = vmatprep.subr.bf16.mxu0 0
        %1880 = vmatpush1.bf16.xpose.msra.mxu0 0
        %1881 = vmatprep.subr.bf16.mxu0 0
        %1882 = vmatpush1.bf16.xpose.msra.mxu0 0
        %1883 = vmatprep.subr.bf16.mxu0 0
        %1884 = vmatpush1.bf16.xpose.msra.mxu0 0
        %1885 = vmatprep.subr.bf16.mxu0 0
        %1886 = vmatpush1.bf16.xpose.msra.mxu0 0
        %1887 = vmatprep.subr.bf16.mxu0 0
        %1888 = vmatpush1.bf16.xpose.msra.mxu0 0
        %1889 = vmatprep.subr.bf16.mxu0 0
        %1890 = vmatpush1.bf16.xpose.msra.mxu0 0
        %1891 = vmatprep.subr.bf16.mxu0 0
        %1892 = vmatpush1.bf16.xpose.msra.mxu0 0
        %1893 = vmatprep.subr.bf16.mxu0 0
        %1894 = vmatpush1.bf16.xpose.msra.mxu0 0
        %1895 = vmatprep.subr.bf16.mxu0 0
        %1896 = vmatpush1.bf16.xpose.msra.mxu0 0
        %1897 = vmatprep.subr.bf16.mxu0 0
        %1898 = vmatpush1.bf16.xpose.msra.mxu0 0
        %1899 = vmatprep.subr.bf16.mxu0 0
        %1900 = vmatpush1.bf16.xpose.msra.mxu0 0
        %1901 = vmatprep.mubr.bf16.mxu0 %v893
        %1902 = vmatmul.mubr.bf16.gmra.mrb[0].mxu0 %v892
        %v1903 = vpop.f32.mrb[0].mxu0
        %v1904 = vadd.f32 %v1864, %v1903
        %v1905 = vpop.f32.mrb[0].mxu0
        %v1906 = vpop.f32.mrb[0].mxu0
        %v1907 = vpop.f32.mrb[0].mxu0
        %1908 = vdwg.mxu0
        %1909 = vmatprep.subr.bf16.mxu0 %v1376
        %1910 = vmatpush1.bf16.xpose.msra.mxu0 %v1375
        %1911 = vmatprep.subr.bf16.mxu0 0
        %1912 = vmatpush1.bf16.xpose.msra.mxu0 0
        %1913 = vmatprep.subr.bf16.mxu0 0
        %1914 = vmatpush1.bf16.xpose.msra.mxu0 0
        %1915 = vmatprep.subr.bf16.mxu0 0
        %1916 = vmatpush1.bf16.xpose.msra.mxu0 0
        %1917 = vmatprep.subr.bf16.mxu0 0
        %1918 = vmatpush1.bf16.xpose.msra.mxu0 0
        %1919 = vmatprep.subr.bf16.mxu0 0
        %1920 = vmatpush1.bf16.xpose.msra.mxu0 0
        %1921 = vmatprep.subr.bf16.mxu0 0
        %1922 = vmatpush1.bf16.xpose.msra.mxu0 0
        %1923 = vmatprep.subr.bf16.mxu0 0
        %1924 = vmatpush1.bf16.xpose.msra.mxu0 0
        %1925 = vmatprep.subr.bf16.mxu0 0
        %1926 = vmatpush1.bf16.xpose.msra.mxu0 0
        %1927 = vmatprep.subr.bf16.mxu0 0
        %1928 = vmatpush1.bf16.xpose.msra.mxu0 0
        %1929 = vmatprep.subr.bf16.mxu0 0
        %1930 = vmatpush1.bf16.xpose.msra.mxu0 0
        %1931 = vmatprep.subr.bf16.mxu0 0
        %1932 = vmatpush1.bf16.xpose.msra.mxu0 0
        %1933 = vmatprep.subr.bf16.mxu0 0
        %1934 = vmatpush1.bf16.xpose.msra.mxu0 0
        %1935 = vmatprep.subr.bf16.mxu0 0
        %1936 = vmatpush1.bf16.xpose.msra.mxu0 0
        %1937 = vmatprep.subr.bf16.mxu0 0
        %1938 = vmatpush1.bf16.xpose.msra.mxu0 0
        %1939 = vmatprep.subr.bf16.mxu0 0
        %1940 = vmatpush1.bf16.xpose.msra.mxu0 0
        %1941 = vmatprep.mubr.bf16.mxu0 %v895
        %1942 = vmatmul.mubr.bf16.gmra.mrb[0].mxu0 %v894
        %v1943 = vpop.f32.mrb[0].mxu0
        %v1944 = vadd.f32 %v1904, %v1943
        %v1945 = vpop.f32.mrb[0].mxu0
        %v1946 = vpop.f32.mrb[0].mxu0
        %v1947 = vpop.f32.mrb[0].mxu0
        %1948 = vdwg.mxu0
        %1949 = vmatprep.subr.bf16.mxu0 %v1378
        %1950 = vmatpush1.bf16.xpose.msra.mxu0 %v1377
        %1951 = vmatprep.subr.bf16.mxu0 0
        %1952 = vmatpush1.bf16.xpose.msra.mxu0 0
        %1953 = vmatprep.subr.bf16.mxu0 0
        %1954 = vmatpush1.bf16.xpose.msra.mxu0 0
        %1955 = vmatprep.subr.bf16.mxu0 0
        %1956 = vmatpush1.bf16.xpose.msra.mxu0 0
        %1957 = vmatprep.subr.bf16.mxu0 0
        %1958 = vmatpush1.bf16.xpose.msra.mxu0 0
        %1959 = vmatprep.subr.bf16.mxu0 0
        %1960 = vmatpush1.bf16.xpose.msra.mxu0 0
        %1961 = vmatprep.subr.bf16.mxu0 0
        %1962 = vmatpush1.bf16.xpose.msra.mxu0 0
        %1963 = vmatprep.subr.bf16.mxu0 0
        %1964 = vmatpush1.bf16.xpose.msra.mxu0 0
        %1965 = vmatprep.subr.bf16.mxu0 0
        %1966 = vmatpush1.bf16.xpose.msra.mxu0 0
        %1967 = vmatprep.subr.bf16.mxu0 0
        %1968 = vmatpush1.bf16.xpose.msra.mxu0 0
        %1969 = vmatprep.subr.bf16.mxu0 0
        %1970 = vmatpush1.bf16.xpose.msra.mxu0 0
        %1971 = vmatprep.subr.bf16.mxu0 0
        %1972 = vmatpush1.bf16.xpose.msra.mxu0 0
        %1973 = vmatprep.subr.bf16.mxu0 0
        %1974 = vmatpush1.bf16.xpose.msra.mxu0 0
        %1975 = vmatprep.subr.bf16.mxu0 0
        %1976 = vmatpush1.bf16.xpose.msra.mxu0 0
        %1977 = vmatprep.subr.bf16.mxu0 0
        %1978 = vmatpush1.bf16.xpose.msra.mxu0 0
        %1979 = vmatprep.subr.bf16.mxu0 0
        %1980 = vmatpush1.bf16.xpose.msra.mxu0 0
        %1981 = vmatprep.mubr.bf16.mxu0 %v897
        %1982 = vmatmul.mubr.bf16.gmra.mrb[0].mxu0 %v896
        %v1983 = vpop.f32.mrb[0].mxu0
        %v1984 = vadd.f32 %v1944, %v1983
        %v1985 = vpop.f32.mrb[0].mxu0
        %v1986 = vpop.f32.mrb[0].mxu0
        %v1987 = vpop.f32.mrb[0].mxu0
        %1988 = vdwg.mxu0
        %1989 = vmatprep.subr.bf16.mxu0 %v1380
        %1990 = vmatpush1.bf16.xpose.msra.mxu0 %v1379
        %1991 = vmatprep.subr.bf16.mxu0 0
        %1992 = vmatpush1.bf16.xpose.msra.mxu0 0
        %1993 = vmatprep.subr.bf16.mxu0 0
        %1994 = vmatpush1.bf16.xpose.msra.mxu0 0
        %1995 = vmatprep.subr.bf16.mxu0 0
        %1996 = vmatpush1.bf16.xpose.msra.mxu0 0
        %1997 = vmatprep.subr.bf16.mxu0 0
        %1998 = vmatpush1.bf16.xpose.msra.mxu0 0
        %1999 = vmatprep.subr.bf16.mxu0 0
        %2000 = vmatpush1.bf16.xpose.msra.mxu0 0
        %2001 = vmatprep.subr.bf16.mxu0 0
        %2002 = vmatpush1.bf16.xpose.msra.mxu0 0
        %2003 = vmatprep.subr.bf16.mxu0 0
        %2004 = vmatpush1.bf16.xpose.msra.mxu0 0
        %2005 = vmatprep.subr.bf16.mxu0 0
        %2006 = vmatpush1.bf16.xpose.msra.mxu0 0
        %2007 = vmatprep.subr.bf16.mxu0 0
        %2008 = vmatpush1.bf16.xpose.msra.mxu0 0
        %2009 = vmatprep.subr.bf16.mxu0 0
        %2010 = vmatpush1.bf16.xpose.msra.mxu0 0
        %2011 = vmatprep.subr.bf16.mxu0 0
        %2012 = vmatpush1.bf16.xpose.msra.mxu0 0
        %2013 = vmatprep.subr.bf16.mxu0 0
        %2014 = vmatpush1.bf16.xpose.msra.mxu0 0
        %2015 = vmatprep.subr.bf16.mxu0 0
        %2016 = vmatpush1.bf16.xpose.msra.mxu0 0
        %2017 = vmatprep.subr.bf16.mxu0 0
        %2018 = vmatpush1.bf16.xpose.msra.mxu0 0
        %2019 = vmatprep.subr.bf16.mxu0 0
        %2020 = vmatpush1.bf16.xpose.msra.mxu0 0
        %2021 = vmatprep.mubr.bf16.mxu0 %v899
        %2022 = vmatmul.mubr.bf16.gmra.mrb[0].mxu0 %v898
        %v2023 = vpop.f32.mrb[0].mxu0
        %v2024 = vadd.f32 %v1984, %v2023
        %v2025 = vpop.f32.mrb[0].mxu0
        %v2026 = vpop.f32.mrb[0].mxu0
        %v2027 = vpop.f32.mrb[0].mxu0
        %2028 = vdwg.mxu0
        %2029 = vmatprep.subr.bf16.mxu0 %v1382
        %2030 = vmatpush1.bf16.xpose.msra.mxu0 %v1381
        %2031 = vmatprep.subr.bf16.mxu0 0
        %2032 = vmatpush1.bf16.xpose.msra.mxu0 0
        %2033 = vmatprep.subr.bf16.mxu0 0
        %2034 = vmatpush1.bf16.xpose.msra.mxu0 0
        %2035 = vmatprep.subr.bf16.mxu0 0
        %2036 = vmatpush1.bf16.xpose.msra.mxu0 0
        %2037 = vmatprep.subr.bf16.mxu0 0
        %2038 = vmatpush1.bf16.xpose.msra.mxu0 0
        %2039 = vmatprep.subr.bf16.mxu0 0
        %2040 = vmatpush1.bf16.xpose.msra.mxu0 0
        %2041 = vmatprep.subr.bf16.mxu0 0
        %2042 = vmatpush1.bf16.xpose.msra.mxu0 0
        %2043 = vmatprep.subr.bf16.mxu0 0
        %2044 = vmatpush1.bf16.xpose.msra.mxu0 0
        %2045 = vmatprep.subr.bf16.mxu0 0
        %2046 = vmatpush1.bf16.xpose.msra.mxu0 0
        %2047 = vmatprep.subr.bf16.mxu0 0
        %2048 = vmatpush1.bf16.xpose.msra.mxu0 0
        %2049 = vmatprep.subr.bf16.mxu0 0
        %2050 = vmatpush1.bf16.xpose.msra.mxu0 0
        %2051 = vmatprep.subr.bf16.mxu0 0
        %2052 = vmatpush1.bf16.xpose.msra.mxu0 0
        %2053 = vmatprep.subr.bf16.mxu0 0
        %2054 = vmatpush1.bf16.xpose.msra.mxu0 0
        %2055 = vmatprep.subr.bf16.mxu0 0
        %2056 = vmatpush1.bf16.xpose.msra.mxu0 0
        %2057 = vmatprep.subr.bf16.mxu0 0
        %2058 = vmatpush1.bf16.xpose.msra.mxu0 0
        %2059 = vmatprep.subr.bf16.mxu0 0
        %2060 = vmatpush1.bf16.xpose.msra.mxu0 0
        %2061 = vmatprep.mubr.bf16.mxu0 %v901
        %2062 = vmatmul.mubr.bf16.gmra.mrb[0].mxu0 %v900
        %v2063 = vpop.f32.mrb[0].mxu0
        %v2064 = vadd.f32 %v2024, %v2063
        %v2065 = vpop.f32.mrb[0].mxu0
        %v2066 = vpop.f32.mrb[0].mxu0
        %v2067 = vpop.f32.mrb[0].mxu0
        %2068 = vdwg.mxu0
        %2069 = vmatprep.subr.bf16.mxu0 %v1384
        %2070 = vmatpush1.bf16.xpose.msra.mxu0 %v1383
        %2071 = vmatprep.subr.bf16.mxu0 0
        %2072 = vmatpush1.bf16.xpose.msra.mxu0 0
        %2073 = vmatprep.subr.bf16.mxu0 0
        %2074 = vmatpush1.bf16.xpose.msra.mxu0 0
        %2075 = vmatprep.subr.bf16.mxu0 0
        %2076 = vmatpush1.bf16.xpose.msra.mxu0 0
        %2077 = vmatprep.subr.bf16.mxu0 0
        %2078 = vmatpush1.bf16.xpose.msra.mxu0 0
        %2079 = vmatprep.subr.bf16.mxu0 0
        %2080 = vmatpush1.bf16.xpose.msra.mxu0 0
        %2081 = vmatprep.subr.bf16.mxu0 0
        %2082 = vmatpush1.bf16.xpose.msra.mxu0 0
        %2083 = vmatprep.subr.bf16.mxu0 0
        %2084 = vmatpush1.bf16.xpose.msra.mxu0 0
        %2085 = vmatprep.subr.bf16.mxu0 0
        %2086 = vmatpush1.bf16.xpose.msra.mxu0 0
        %2087 = vmatprep.subr.bf16.mxu0 0
        %2088 = vmatpush1.bf16.xpose.msra.mxu0 0
        %2089 = vmatprep.subr.bf16.mxu0 0
        %2090 = vmatpush1.bf16.xpose.msra.mxu0 0
        %2091 = vmatprep.subr.bf16.mxu0 0
        %2092 = vmatpush1.bf16.xpose.msra.mxu0 0
        %2093 = vmatprep.subr.bf16.mxu0 0
        %2094 = vmatpush1.bf16.xpose.msra.mxu0 0
        %2095 = vmatprep.subr.bf16.mxu0 0
        %2096 = vmatpush1.bf16.xpose.msra.mxu0 0
        %2097 = vmatprep.subr.bf16.mxu0 0
        %2098 = vmatpush1.bf16.xpose.msra.mxu0 0
        %2099 = vmatprep.subr.bf16.mxu0 0
        %2100 = vmatpush1.bf16.xpose.msra.mxu0 0
        %2101 = vmatprep.mubr.bf16.mxu0 %v903
        %2102 = vmatmul.mubr.bf16.gmra.mrb[0].mxu0 %v902
        %v2103 = vpop.f32.mrb[0].mxu0
        %v2104 = vadd.f32 %v2064, %v2103
        %v2105 = vpop.f32.mrb[0].mxu0
        %v2106 = vpop.f32.mrb[0].mxu0
        %v2107 = vpop.f32.mrb[0].mxu0
        %2108 = vdwg.mxu0
        %2109 = vmatprep.subr.bf16.mxu0 %v1386
        %2110 = vmatpush1.bf16.xpose.msra.mxu0 %v1385
        %2111 = vmatprep.subr.bf16.mxu0 0
        %2112 = vmatpush1.bf16.xpose.msra.mxu0 0
        %2113 = vmatprep.subr.bf16.mxu0 0
        %2114 = vmatpush1.bf16.xpose.msra.mxu0 0
        %2115 = vmatprep.subr.bf16.mxu0 0
        %2116 = vmatpush1.bf16.xpose.msra.mxu0 0
        %2117 = vmatprep.subr.bf16.mxu0 0
        %2118 = vmatpush1.bf16.xpose.msra.mxu0 0
        %2119 = vmatprep.subr.bf16.mxu0 0
        %2120 = vmatpush1.bf16.xpose.msra.mxu0 0
        %2121 = vmatprep.subr.bf16.mxu0 0
        %2122 = vmatpush1.bf16.xpose.msra.mxu0 0
        %2123 = vmatprep.subr.bf16.mxu0 0
        %2124 = vmatpush1.bf16.xpose.msra.mxu0 0
        %2125 = vmatprep.subr.bf16.mxu0 0
        %2126 = vmatpush1.bf16.xpose.msra.mxu0 0
        %2127 = vmatprep.subr.bf16.mxu0 0
        %2128 = vmatpush1.bf16.xpose.msra.mxu0 0
        %2129 = vmatprep.subr.bf16.mxu0 0
        %2130 = vmatpush1.bf16.xpose.msra.mxu0 0
        %2131 = vmatprep.subr.bf16.mxu0 0
        %2132 = vmatpush1.bf16.xpose.msra.mxu0 0
        %2133 = vmatprep.subr.bf16.mxu0 0
        %2134 = vmatpush1.bf16.xpose.msra.mxu0 0
        %2135 = vmatprep.subr.bf16.mxu0 0
        %2136 = vmatpush1.bf16.xpose.msra.mxu0 0
        %2137 = vmatprep.subr.bf16.mxu0 0
        %2138 = vmatpush1.bf16.xpose.msra.mxu0 0
        %2139 = vmatprep.subr.bf16.mxu0 0
        %2140 = vmatpush1.bf16.xpose.msra.mxu0 0
        %2141 = vmatprep.mubr.bf16.mxu0 %v905
        %2142 = vmatmul.mubr.bf16.gmra.mrb[0].mxu0 %v904
        %v2143 = vpop.f32.mrb[0].mxu0
        %v2144 = vadd.f32 %v2104, %v2143
        %v2145 = vpop.f32.mrb[0].mxu0
        %v2146 = vpop.f32.mrb[0].mxu0
        %v2147 = vpop.f32.mrb[0].mxu0
        %2148 = vdwg.mxu0
        %2149 = vmatprep.subr.bf16.mxu0 %v1388
        %2150 = vmatpush1.bf16.xpose.msra.mxu0 %v1387
        %2151 = vmatprep.subr.bf16.mxu0 0
        %2152 = vmatpush1.bf16.xpose.msra.mxu0 0
        %2153 = vmatprep.subr.bf16.mxu0 0
        %2154 = vmatpush1.bf16.xpose.msra.mxu0 0
        %2155 = vmatprep.subr.bf16.mxu0 0
        %2156 = vmatpush1.bf16.xpose.msra.mxu0 0
        %2157 = vmatprep.subr.bf16.mxu0 0
        %2158 = vmatpush1.bf16.xpose.msra.mxu0 0
        %2159 = vmatprep.subr.bf16.mxu0 0
        %2160 = vmatpush1.bf16.xpose.msra.mxu0 0
        %2161 = vmatprep.subr.bf16.mxu0 0
        %2162 = vmatpush1.bf16.xpose.msra.mxu0 0
        %2163 = vmatprep.subr.bf16.mxu0 0
        %2164 = vmatpush1.bf16.xpose.msra.mxu0 0
        %2165 = vmatprep.subr.bf16.mxu0 0
        %2166 = vmatpush1.bf16.xpose.msra.mxu0 0
        %2167 = vmatprep.subr.bf16.mxu0 0
        %2168 = vmatpush1.bf16.xpose.msra.mxu0 0
        %2169 = vmatprep.subr.bf16.mxu0 0
        %2170 = vmatpush1.bf16.xpose.msra.mxu0 0
        %2171 = vmatprep.subr.bf16.mxu0 0
        %2172 = vmatpush1.bf16.xpose.msra.mxu0 0
        %2173 = vmatprep.subr.bf16.mxu0 0
        %2174 = vmatpush1.bf16.xpose.msra.mxu0 0
        %2175 = vmatprep.subr.bf16.mxu0 0
        %2176 = vmatpush1.bf16.xpose.msra.mxu0 0
        %2177 = vmatprep.subr.bf16.mxu0 0
        %2178 = vmatpush1.bf16.xpose.msra.mxu0 0
        %2179 = vmatprep.subr.bf16.mxu0 0
        %2180 = vmatpush1.bf16.xpose.msra.mxu0 0
        %2181 = vmatprep.mubr.bf16.mxu0 %v907
        %2182 = vmatmul.mubr.bf16.gmra.mrb[0].mxu0 %v906
        %v2183 = vpop.f32.mrb[0].mxu0
        %v2184 = vadd.f32 %v2144, %v2183
        %v2185 = vpop.f32.mrb[0].mxu0
        %v2186 = vpop.f32.mrb[0].mxu0
        %v2187 = vpop.f32.mrb[0].mxu0
        %2188 = vdwg.mxu0
        %2189 = vmatprep.subr.bf16.mxu0 %v1390
        %2190 = vmatpush1.bf16.xpose.msra.mxu0 %v1389
        %2191 = vmatprep.subr.bf16.mxu0 0
        %2192 = vmatpush1.bf16.xpose.msra.mxu0 0
        %2193 = vmatprep.subr.bf16.mxu0 0
        %2194 = vmatpush1.bf16.xpose.msra.mxu0 0
        %2195 = vmatprep.subr.bf16.mxu0 0
        %2196 = vmatpush1.bf16.xpose.msra.mxu0 0
        %2197 = vmatprep.subr.bf16.mxu0 0
        %2198 = vmatpush1.bf16.xpose.msra.mxu0 0
        %2199 = vmatprep.subr.bf16.mxu0 0
        %2200 = vmatpush1.bf16.xpose.msra.mxu0 0
        %2201 = vmatprep.subr.bf16.mxu0 0
        %2202 = vmatpush1.bf16.xpose.msra.mxu0 0
        %2203 = vmatprep.subr.bf16.mxu0 0
        %2204 = vmatpush1.bf16.xpose.msra.mxu0 0
        %2205 = vmatprep.subr.bf16.mxu0 0
        %2206 = vmatpush1.bf16.xpose.msra.mxu0 0
        %2207 = vmatprep.subr.bf16.mxu0 0
        %2208 = vmatpush1.bf16.xpose.msra.mxu0 0
        %2209 = vmatprep.subr.bf16.mxu0 0
        %2210 = vmatpush1.bf16.xpose.msra.mxu0 0
        %2211 = vmatprep.subr.bf16.mxu0 0
        %2212 = vmatpush1.bf16.xpose.msra.mxu0 0
        %2213 = vmatprep.subr.bf16.mxu0 0
        %2214 = vmatpush1.bf16.xpose.msra.mxu0 0
        %2215 = vmatprep.subr.bf16.mxu0 0
        %2216 = vmatpush1.bf16.xpose.msra.mxu0 0
        %2217 = vmatprep.subr.bf16.mxu0 0
        %2218 = vmatpush1.bf16.xpose.msra.mxu0 0
        %2219 = vmatprep.subr.bf16.mxu0 0
        %2220 = vmatpush1.bf16.xpose.msra.mxu0 0
        %2221 = vmatprep.mubr.bf16.mxu0 %v909
        %2222 = vmatmul.mubr.bf16.gmra.mrb[0].mxu0 %v908
        %v2223 = vpop.f32.mrb[0].mxu0
        %v2224 = vadd.f32 %v2184, %v2223
        %v2225 = vpop.f32.mrb[0].mxu0
        %v2226 = vpop.f32.mrb[0].mxu0
        %v2227 = vpop.f32.mrb[0].mxu0
        %2228 = vdwg.mxu0
        %2229 = vmatprep.subr.bf16.mxu0 %v1392
        %2230 = vmatpush1.bf16.xpose.msra.mxu0 %v1391
        %2231 = vmatprep.subr.bf16.mxu0 0
        %2232 = vmatpush1.bf16.xpose.msra.mxu0 0
        %2233 = vmatprep.subr.bf16.mxu0 0
        %2234 = vmatpush1.bf16.xpose.msra.mxu0 0
        %2235 = vmatprep.subr.bf16.mxu0 0
        %2236 = vmatpush1.bf16.xpose.msra.mxu0 0
        %2237 = vmatprep.subr.bf16.mxu0 0
        %2238 = vmatpush1.bf16.xpose.msra.mxu0 0
        %2239 = vmatprep.subr.bf16.mxu0 0
        %2240 = vmatpush1.bf16.xpose.msra.mxu0 0
        %2241 = vmatprep.subr.bf16.mxu0 0
        %2242 = vmatpush1.bf16.xpose.msra.mxu0 0
        %2243 = vmatprep.subr.bf16.mxu0 0
        %2244 = vmatpush1.bf16.xpose.msra.mxu0 0
        %2245 = vmatprep.subr.bf16.mxu0 0
        %2246 = vmatpush1.bf16.xpose.msra.mxu0 0
        %2247 = vmatprep.subr.bf16.mxu0 0
        %2248 = vmatpush1.bf16.xpose.msra.mxu0 0
        %2249 = vmatprep.subr.bf16.mxu0 0
        %2250 = vmatpush1.bf16.xpose.msra.mxu0 0
        %2251 = vmatprep.subr.bf16.mxu0 0
        %2252 = vmatpush1.bf16.xpose.msra.mxu0 0
        %2253 = vmatprep.subr.bf16.mxu0 0
        %2254 = vmatpush1.bf16.xpose.msra.mxu0 0
        %2255 = vmatprep.subr.bf16.mxu0 0
        %2256 = vmatpush1.bf16.xpose.msra.mxu0 0
        %2257 = vmatprep.subr.bf16.mxu0 0
        %2258 = vmatpush1.bf16.xpose.msra.mxu0 0
        %2259 = vmatprep.subr.bf16.mxu0 0
        %2260 = vmatpush1.bf16.xpose.msra.mxu0 0
        %2261 = vmatprep.mubr.bf16.mxu0 %v911
        %2262 = vmatmul.mubr.bf16.gmra.mrb[0].mxu0 %v910
        %v2263 = vpop.f32.mrb[0].mxu0
        %v2264 = vadd.f32 %v2224, %v2263
        %v2265 = vpop.f32.mrb[0].mxu0
        %v2266 = vpop.f32.mrb[0].mxu0
        %v2267 = vpop.f32.mrb[0].mxu0
        %2268 = vdwg.mxu0
        %2269 = vmatprep.subr.bf16.mxu0 %v1394
        %2270 = vmatpush1.bf16.xpose.msra.mxu0 %v1393
        %2271 = vmatprep.subr.bf16.mxu0 0
        %2272 = vmatpush1.bf16.xpose.msra.mxu0 0
        %2273 = vmatprep.subr.bf16.mxu0 0
        %2274 = vmatpush1.bf16.xpose.msra.mxu0 0
        %2275 = vmatprep.subr.bf16.mxu0 0
        %2276 = vmatpush1.bf16.xpose.msra.mxu0 0
        %2277 = vmatprep.subr.bf16.mxu0 0
        %2278 = vmatpush1.bf16.xpose.msra.mxu0 0
        %2279 = vmatprep.subr.bf16.mxu0 0
        %2280 = vmatpush1.bf16.xpose.msra.mxu0 0
        %2281 = vmatprep.subr.bf16.mxu0 0
        %2282 = vmatpush1.bf16.xpose.msra.mxu0 0
        %2283 = vmatprep.subr.bf16.mxu0 0
        %2284 = vmatpush1.bf16.xpose.msra.mxu0 0
        %2285 = vmatprep.subr.bf16.mxu0 0
        %2286 = vmatpush1.bf16.xpose.msra.mxu0 0
        %2287 = vmatprep.subr.bf16.mxu0 0
        %2288 = vmatpush1.bf16.xpose.msra.mxu0 0
        %2289 = vmatprep.subr.bf16.mxu0 0
        %2290 = vmatpush1.bf16.xpose.msra.mxu0 0
        %2291 = vmatprep.subr.bf16.mxu0 0
        %2292 = vmatpush1.bf16.xpose.msra.mxu0 0
        %2293 = vmatprep.subr.bf16.mxu0 0
        %2294 = vmatpush1.bf16.xpose.msra.mxu0 0
        %2295 = vmatprep.subr.bf16.mxu0 0
        %2296 = vmatpush1.bf16.xpose.msra.mxu0 0
        %2297 = vmatprep.subr.bf16.mxu0 0
        %2298 = vmatpush1.bf16.xpose.msra.mxu0 0
        %2299 = vmatprep.subr.bf16.mxu0 0
        %2300 = vmatpush1.bf16.xpose.msra.mxu0 0
        %2301 = vmatprep.mubr.bf16.mxu0 %v913
        %2302 = vmatmul.mubr.bf16.gmra.mrb[0].mxu0 %v912
        %v2303 = vpop.f32.mrb[0].mxu0
        %v2304 = vadd.f32 %v2264, %v2303
        %v2305 = vpop.f32.mrb[0].mxu0
        %v2306 = vpop.f32.mrb[0].mxu0
        %v2307 = vpop.f32.mrb[0].mxu0
        %2308 = vdwg.mxu0
        %2309 = vmatprep.subr.bf16.mxu0 %v1396
        %2310 = vmatpush1.bf16.xpose.msra.mxu0 %v1395
        %2311 = vmatprep.subr.bf16.mxu0 0
        %2312 = vmatpush1.bf16.xpose.msra.mxu0 0
        %2313 = vmatprep.subr.bf16.mxu0 0
        %2314 = vmatpush1.bf16.xpose.msra.mxu0 0
        %2315 = vmatprep.subr.bf16.mxu0 0
        %2316 = vmatpush1.bf16.xpose.msra.mxu0 0
        %2317 = vmatprep.subr.bf16.mxu0 0
        %2318 = vmatpush1.bf16.xpose.msra.mxu0 0
        %2319 = vmatprep.subr.bf16.mxu0 0
        %2320 = vmatpush1.bf16.xpose.msra.mxu0 0
        %2321 = vmatprep.subr.bf16.mxu0 0
        %2322 = vmatpush1.bf16.xpose.msra.mxu0 0
        %2323 = vmatprep.subr.bf16.mxu0 0
        %2324 = vmatpush1.bf16.xpose.msra.mxu0 0
        %2325 = vmatprep.subr.bf16.mxu0 0
        %2326 = vmatpush1.bf16.xpose.msra.mxu0 0
        %2327 = vmatprep.subr.bf16.mxu0 0
        %2328 = vmatpush1.bf16.xpose.msra.mxu0 0
        %2329 = vmatprep.subr.bf16.mxu0 0
        %2330 = vmatpush1.bf16.xpose.msra.mxu0 0
        %2331 = vmatprep.subr.bf16.mxu0 0
        %2332 = vmatpush1.bf16.xpose.msra.mxu0 0
        %2333 = vmatprep.subr.bf16.mxu0 0
        %2334 = vmatpush1.bf16.xpose.msra.mxu0 0
        %2335 = vmatprep.subr.bf16.mxu0 0
        %2336 = vmatpush1.bf16.xpose.msra.mxu0 0
        %2337 = vmatprep.subr.bf16.mxu0 0
        %2338 = vmatpush1.bf16.xpose.msra.mxu0 0
        %2339 = vmatprep.subr.bf16.mxu0 0
        %2340 = vmatpush1.bf16.xpose.msra.mxu0 0
        %2341 = vmatprep.mubr.bf16.mxu0 %v915
        %2342 = vmatmul.mubr.bf16.gmra.mrb[0].mxu0 %v914
        %v2343 = vpop.f32.mrb[0].mxu0
        %v2344 = vadd.f32 %v2304, %v2343
        %v2345 = vpop.f32.mrb[0].mxu0
        %v2346 = vpop.f32.mrb[0].mxu0
        %v2347 = vpop.f32.mrb[0].mxu0
        %2348 = vdwg.mxu0
        %2349 = vmatprep.subr.bf16.mxu0 %v1398
        %2350 = vmatpush1.bf16.xpose.msra.mxu0 %v1397
        %2351 = vmatprep.subr.bf16.mxu0 0
        %2352 = vmatpush1.bf16.xpose.msra.mxu0 0
        %2353 = vmatprep.subr.bf16.mxu0 0
        %2354 = vmatpush1.bf16.xpose.msra.mxu0 0
        %2355 = vmatprep.subr.bf16.mxu0 0
        %2356 = vmatpush1.bf16.xpose.msra.mxu0 0
        %2357 = vmatprep.subr.bf16.mxu0 0
        %2358 = vmatpush1.bf16.xpose.msra.mxu0 0
        %2359 = vmatprep.subr.bf16.mxu0 0
        %2360 = vmatpush1.bf16.xpose.msra.mxu0 0
        %2361 = vmatprep.subr.bf16.mxu0 0
        %2362 = vmatpush1.bf16.xpose.msra.mxu0 0
        %2363 = vmatprep.subr.bf16.mxu0 0
        %2364 = vmatpush1.bf16.xpose.msra.mxu0 0
        %2365 = vmatprep.subr.bf16.mxu0 0
        %2366 = vmatpush1.bf16.xpose.msra.mxu0 0
        %2367 = vmatprep.subr.bf16.mxu0 0
        %2368 = vmatpush1.bf16.xpose.msra.mxu0 0
        %2369 = vmatprep.subr.bf16.mxu0 0
        %2370 = vmatpush1.bf16.xpose.msra.mxu0 0
        %2371 = vmatprep.subr.bf16.mxu0 0
        %2372 = vmatpush1.bf16.xpose.msra.mxu0 0
        %2373 = vmatprep.subr.bf16.mxu0 0
        %2374 = vmatpush1.bf16.xpose.msra.mxu0 0
        %2375 = vmatprep.subr.bf16.mxu0 0
        %2376 = vmatpush1.bf16.xpose.msra.mxu0 0
        %2377 = vmatprep.subr.bf16.mxu0 0
        %2378 = vmatpush1.bf16.xpose.msra.mxu0 0
        %2379 = vmatprep.subr.bf16.mxu0 0
        %2380 = vmatpush1.bf16.xpose.msra.mxu0 0
        %2381 = vmatprep.mubr.bf16.mxu0 %v917
        %2382 = vmatmul.mubr.bf16.gmra.mrb[0].mxu0 %v916
        %v2383 = vpop.f32.mrb[0].mxu0
        %v2384 = vadd.f32 %v2344, %v2383
        %v2385 = vpop.f32.mrb[0].mxu0
        %v2386 = vpop.f32.mrb[0].mxu0
        %v2387 = vpop.f32.mrb[0].mxu0
        %2388 = vdwg.mxu0
        %2389 = vmatprep.subr.bf16.mxu0 %v1400
        %2390 = vmatpush1.bf16.xpose.msra.mxu0 %v1399
        %2391 = vmatprep.subr.bf16.mxu0 0
        %2392 = vmatpush1.bf16.xpose.msra.mxu0 0
        %2393 = vmatprep.subr.bf16.mxu0 0
        %2394 = vmatpush1.bf16.xpose.msra.mxu0 0
        %2395 = vmatprep.subr.bf16.mxu0 0
        %2396 = vmatpush1.bf16.xpose.msra.mxu0 0
        %2397 = vmatprep.subr.bf16.mxu0 0
        %2398 = vmatpush1.bf16.xpose.msra.mxu0 0
        %2399 = vmatprep.subr.bf16.mxu0 0
        %2400 = vmatpush1.bf16.xpose.msra.mxu0 0
        %2401 = vmatprep.subr.bf16.mxu0 0
        %2402 = vmatpush1.bf16.xpose.msra.mxu0 0
        %2403 = vmatprep.subr.bf16.mxu0 0
        %2404 = vmatpush1.bf16.xpose.msra.mxu0 0
        %2405 = vmatprep.subr.bf16.mxu0 0
        %2406 = vmatpush1.bf16.xpose.msra.mxu0 0
        %2407 = vmatprep.subr.bf16.mxu0 0
        %2408 = vmatpush1.bf16.xpose.msra.mxu0 0
        %2409 = vmatprep.subr.bf16.mxu0 0
        %2410 = vmatpush1.bf16.xpose.msra.mxu0 0
        %2411 = vmatprep.subr.bf16.mxu0 0
        %2412 = vmatpush1.bf16.xpose.msra.mxu0 0
        %2413 = vmatprep.subr.bf16.mxu0 0
        %2414 = vmatpush1.bf16.xpose.msra.mxu0 0
        %2415 = vmatprep.subr.bf16.mxu0 0
        %2416 = vmatpush1.bf16.xpose.msra.mxu0 0
        %2417 = vmatprep.subr.bf16.mxu0 0
        %2418 = vmatpush1.bf16.xpose.msra.mxu0 0
        %2419 = vmatprep.subr.bf16.mxu0 0
        %2420 = vmatpush1.bf16.xpose.msra.mxu0 0
        %2421 = vmatprep.mubr.bf16.mxu0 %v919
        %2422 = vmatmul.mubr.bf16.gmra.mrb[0].mxu0 %v918
        %v2423 = vpop.f32.mrb[0].mxu0
        %v2424 = vadd.f32 %v2384, %v2423
        %v2425 = vpop.f32.mrb[0].mxu0
        %v2426 = vpop.f32.mrb[0].mxu0
        %v2427 = vpop.f32.mrb[0].mxu0
        %2428 = vdwg.mxu0
        %2429 = vmatprep.subr.bf16.mxu0 %v1402
        %2430 = vmatpush1.bf16.xpose.msra.mxu0 %v1401
        %2431 = vmatprep.subr.bf16.mxu0 0
        %2432 = vmatpush1.bf16.xpose.msra.mxu0 0
        %2433 = vmatprep.subr.bf16.mxu0 0
        %2434 = vmatpush1.bf16.xpose.msra.mxu0 0
        %2435 = vmatprep.subr.bf16.mxu0 0
        %2436 = vmatpush1.bf16.xpose.msra.mxu0 0
        %2437 = vmatprep.subr.bf16.mxu0 0
        %2438 = vmatpush1.bf16.xpose.msra.mxu0 0
        %2439 = vmatprep.subr.bf16.mxu0 0
        %2440 = vmatpush1.bf16.xpose.msra.mxu0 0
        %2441 = vmatprep.subr.bf16.mxu0 0
        %2442 = vmatpush1.bf16.xpose.msra.mxu0 0
        %2443 = vmatprep.subr.bf16.mxu0 0
        %2444 = vmatpush1.bf16.xpose.msra.mxu0 0
        %2445 = vmatprep.subr.bf16.mxu0 0
        %2446 = vmatpush1.bf16.xpose.msra.mxu0 0
        %2447 = vmatprep.subr.bf16.mxu0 0
        %2448 = vmatpush1.bf16.xpose.msra.mxu0 0
        %2449 = vmatprep.subr.bf16.mxu0 0
        %2450 = vmatpush1.bf16.xpose.msra.mxu0 0
        %2451 = vmatprep.subr.bf16.mxu0 0
        %2452 = vmatpush1.bf16.xpose.msra.mxu0 0
        %2453 = vmatprep.subr.bf16.mxu0 0
        %2454 = vmatpush1.bf16.xpose.msra.mxu0 0
        %2455 = vmatprep.subr.bf16.mxu0 0
        %2456 = vmatpush1.bf16.xpose.msra.mxu0 0
        %2457 = vmatprep.subr.bf16.mxu0 0
        %2458 = vmatpush1.bf16.xpose.msra.mxu0 0
        %2459 = vmatprep.subr.bf16.mxu0 0
        %2460 = vmatpush1.bf16.xpose.msra.mxu0 0
        %2461 = vmatprep.mubr.bf16.mxu0 %v921
        %2462 = vmatmul.mubr.bf16.gmra.mrb[0].mxu0 %v920
        %v2463 = vpop.f32.mrb[0].mxu0
        %v2464 = vadd.f32 %v2424, %v2463
        %v2465 = vpop.f32.mrb[0].mxu0
        %v2466 = vpop.f32.mrb[0].mxu0
        %v2467 = vpop.f32.mrb[0].mxu0
        %2468 = vdwg.mxu0
        %2469 = vmatprep.subr.bf16.mxu0 %v1404
        %2470 = vmatpush1.bf16.xpose.msra.mxu0 %v1403
        %2471 = vmatprep.subr.bf16.mxu0 0
        %2472 = vmatpush1.bf16.xpose.msra.mxu0 0
        %2473 = vmatprep.subr.bf16.mxu0 0
        %2474 = vmatpush1.bf16.xpose.msra.mxu0 0
        %2475 = vmatprep.subr.bf16.mxu0 0
        %2476 = vmatpush1.bf16.xpose.msra.mxu0 0
        %2477 = vmatprep.subr.bf16.mxu0 0
        %2478 = vmatpush1.bf16.xpose.msra.mxu0 0
        %2479 = vmatprep.subr.bf16.mxu0 0
        %2480 = vmatpush1.bf16.xpose.msra.mxu0 0
        %2481 = vmatprep.subr.bf16.mxu0 0
        %2482 = vmatpush1.bf16.xpose.msra.mxu0 0
        %2483 = vmatprep.subr.bf16.mxu0 0
        %2484 = vmatpush1.bf16.xpose.msra.mxu0 0
        %2485 = vmatprep.subr.bf16.mxu0 0
        %2486 = vmatpush1.bf16.xpose.msra.mxu0 0
        %2487 = vmatprep.subr.bf16.mxu0 0
        %2488 = vmatpush1.bf16.xpose.msra.mxu0 0
        %2489 = vmatprep.subr.bf16.mxu0 0
        %2490 = vmatpush1.bf16.xpose.msra.mxu0 0
        %2491 = vmatprep.subr.bf16.mxu0 0
        %2492 = vmatpush1.bf16.xpose.msra.mxu0 0
        %2493 = vmatprep.subr.bf16.mxu0 0
        %2494 = vmatpush1.bf16.xpose.msra.mxu0 0
        %2495 = vmatprep.subr.bf16.mxu0 0
        %2496 = vmatpush1.bf16.xpose.msra.mxu0 0
        %2497 = vmatprep.subr.bf16.mxu0 0
        %2498 = vmatpush1.bf16.xpose.msra.mxu0 0
        %2499 = vmatprep.subr.bf16.mxu0 0
        %2500 = vmatpush1.bf16.xpose.msra.mxu0 0
        %2501 = vmatprep.mubr.bf16.mxu0 %v923
        %2502 = vmatmul.mubr.bf16.gmra.mrb[0].mxu0 %v922
        %v2503 = vpop.f32.mrb[0].mxu0
        %v2504 = vadd.f32 %v2464, %v2503
        %v2505 = vpop.f32.mrb[0].mxu0
        %v2506 = vpop.f32.mrb[0].mxu0
        %v2507 = vpop.f32.mrb[0].mxu0
        %2508 = vdwg.mxu0
        %2509 = vmatprep.subr.bf16.mxu0 %v1406
        %2510 = vmatpush1.bf16.xpose.msra.mxu0 %v1405
        %2511 = vmatprep.subr.bf16.mxu0 0
        %2512 = vmatpush1.bf16.xpose.msra.mxu0 0
        %2513 = vmatprep.subr.bf16.mxu0 0
        %2514 = vmatpush1.bf16.xpose.msra.mxu0 0
        %2515 = vmatprep.subr.bf16.mxu0 0
        %2516 = vmatpush1.bf16.xpose.msra.mxu0 0
        %2517 = vmatprep.subr.bf16.mxu0 0
        %2518 = vmatpush1.bf16.xpose.msra.mxu0 0
        %2519 = vmatprep.subr.bf16.mxu0 0
        %2520 = vmatpush1.bf16.xpose.msra.mxu0 0
        %2521 = vmatprep.subr.bf16.mxu0 0
        %2522 = vmatpush1.bf16.xpose.msra.mxu0 0
        %2523 = vmatprep.subr.bf16.mxu0 0
        %2524 = vmatpush1.bf16.xpose.msra.mxu0 0
        %2525 = vmatprep.subr.bf16.mxu0 0
        %2526 = vmatpush1.bf16.xpose.msra.mxu0 0
        %2527 = vmatprep.subr.bf16.mxu0 0
        %2528 = vmatpush1.bf16.xpose.msra.mxu0 0
        %2529 = vmatprep.subr.bf16.mxu0 0
        %2530 = vmatpush1.bf16.xpose.msra.mxu0 0
        %2531 = vmatprep.subr.bf16.mxu0 0
        %2532 = vmatpush1.bf16.xpose.msra.mxu0 0
        %2533 = vmatprep.subr.bf16.mxu0 0
        %2534 = vmatpush1.bf16.xpose.msra.mxu0 0
        %2535 = vmatprep.subr.bf16.mxu0 0
        %2536 = vmatpush1.bf16.xpose.msra.mxu0 0
        %2537 = vmatprep.subr.bf16.mxu0 0
        %2538 = vmatpush1.bf16.xpose.msra.mxu0 0
        %2539 = vmatprep.subr.bf16.mxu0 0
        %2540 = vmatpush1.bf16.xpose.msra.mxu0 0
        %2541 = vmatprep.mubr.bf16.mxu0 %v925
        %2542 = vmatmul.mubr.bf16.gmra.mrb[0].mxu0 %v924
        %v2543 = vpop.f32.mrb[0].mxu0
        %v2544 = vadd.f32 %v2504, %v2543
        %v2545 = vpop.f32.mrb[0].mxu0
        %v2546 = vpop.f32.mrb[0].mxu0
        %v2547 = vpop.f32.mrb[0].mxu0
        %2548 = vdwg.mxu0
        %2549 = vmatprep.subr.bf16.mxu0 %v1408
        %2550 = vmatpush1.bf16.xpose.msra.mxu0 %v1407
        %2551 = vmatprep.subr.bf16.mxu0 0
        %2552 = vmatpush1.bf16.xpose.msra.mxu0 0
        %2553 = vmatprep.subr.bf16.mxu0 0
        %2554 = vmatpush1.bf16.xpose.msra.mxu0 0
        %2555 = vmatprep.subr.bf16.mxu0 0
        %2556 = vmatpush1.bf16.xpose.msra.mxu0 0
        %2557 = vmatprep.subr.bf16.mxu0 0
        %2558 = vmatpush1.bf16.xpose.msra.mxu0 0
        %2559 = vmatprep.subr.bf16.mxu0 0
        %2560 = vmatpush1.bf16.xpose.msra.mxu0 0
        %2561 = vmatprep.subr.bf16.mxu0 0
        %2562 = vmatpush1.bf16.xpose.msra.mxu0 0
        %2563 = vmatprep.subr.bf16.mxu0 0
        %2564 = vmatpush1.bf16.xpose.msra.mxu0 0
        %2565 = vmatprep.subr.bf16.mxu0 0
        %2566 = vmatpush1.bf16.xpose.msra.mxu0 0
        %2567 = vmatprep.subr.bf16.mxu0 0
        %2568 = vmatpush1.bf16.xpose.msra.mxu0 0
        %2569 = vmatprep.subr.bf16.mxu0 0
        %2570 = vmatpush1.bf16.xpose.msra.mxu0 0
        %2571 = vmatprep.subr.bf16.mxu0 0
        %2572 = vmatpush1.bf16.xpose.msra.mxu0 0
        %2573 = vmatprep.subr.bf16.mxu0 0
        %2574 = vmatpush1.bf16.xpose.msra.mxu0 0
        %2575 = vmatprep.subr.bf16.mxu0 0
        %2576 = vmatpush1.bf16.xpose.msra.mxu0 0
        %2577 = vmatprep.subr.bf16.mxu0 0
        %2578 = vmatpush1.bf16.xpose.msra.mxu0 0
        %2579 = vmatprep.subr.bf16.mxu0 0
        %2580 = vmatpush1.bf16.xpose.msra.mxu0 0
        %2581 = vmatprep.mubr.bf16.mxu0 %v927
        %2582 = vmatmul.mubr.bf16.gmra.mrb[0].mxu0 %v926
        %v2583 = vpop.f32.mrb[0].mxu0
        %v2584 = vadd.f32 %v2544, %v2583
        %v2585 = vpop.f32.mrb[0].mxu0
        %v2586 = vpop.f32.mrb[0].mxu0
        %v2587 = vpop.f32.mrb[0].mxu0
        %2588 = vdwg.mxu0
        %2589 = vmatprep.subr.bf16.mxu0 %v1410
        %2590 = vmatpush1.bf16.xpose.msra.mxu0 %v1409
        %2591 = vmatprep.subr.bf16.mxu0 0
        %2592 = vmatpush1.bf16.xpose.msra.mxu0 0
        %2593 = vmatprep.subr.bf16.mxu0 0
        %2594 = vmatpush1.bf16.xpose.msra.mxu0 0
        %2595 = vmatprep.subr.bf16.mxu0 0
        %2596 = vmatpush1.bf16.xpose.msra.mxu0 0
        %2597 = vmatprep.subr.bf16.mxu0 0
        %2598 = vmatpush1.bf16.xpose.msra.mxu0 0
        %2599 = vmatprep.subr.bf16.mxu0 0
        %2600 = vmatpush1.bf16.xpose.msra.mxu0 0
        %2601 = vmatprep.subr.bf16.mxu0 0
        %2602 = vmatpush1.bf16.xpose.msra.mxu0 0
        %2603 = vmatprep.subr.bf16.mxu0 0
        %2604 = vmatpush1.bf16.xpose.msra.mxu0 0
        %2605 = vmatprep.subr.bf16.mxu0 0
        %2606 = vmatpush1.bf16.xpose.msra.mxu0 0
        %2607 = vmatprep.subr.bf16.mxu0 0
        %2608 = vmatpush1.bf16.xpose.msra.mxu0 0
        %2609 = vmatprep.subr.bf16.mxu0 0
        %2610 = vmatpush1.bf16.xpose.msra.mxu0 0
        %2611 = vmatprep.subr.bf16.mxu0 0
        %2612 = vmatpush1.bf16.xpose.msra.mxu0 0
        %2613 = vmatprep.subr.bf16.mxu0 0
        %2614 = vmatpush1.bf16.xpose.msra.mxu0 0
        %2615 = vmatprep.subr.bf16.mxu0 0
        %2616 = vmatpush1.bf16.xpose.msra.mxu0 0
        %2617 = vmatprep.subr.bf16.mxu0 0
        %2618 = vmatpush1.bf16.xpose.msra.mxu0 0
        %2619 = vmatprep.subr.bf16.mxu0 0
        %2620 = vmatpush1.bf16.xpose.msra.mxu0 0
        %2621 = vmatprep.mubr.bf16.mxu0 %v929
        %2622 = vmatmul.mubr.bf16.gmra.mrb[0].mxu0 %v928
        %v2623 = vpop.f32.mrb[0].mxu0
        %v2624 = vadd.f32 %v2584, %v2623
        %v2625 = vpop.f32.mrb[0].mxu0
        %v2626 = vpop.f32.mrb[0].mxu0
        %v2627 = vpop.f32.mrb[0].mxu0
        %2628 = vdwg.mxu0
        %2629 = vmatprep.subr.bf16.mxu0 %v1412
        %2630 = vmatpush1.bf16.xpose.msra.mxu0 %v1411
        %2631 = vmatprep.subr.bf16.mxu0 0
        %2632 = vmatpush1.bf16.xpose.msra.mxu0 0
        %2633 = vmatprep.subr.bf16.mxu0 0
        %2634 = vmatpush1.bf16.xpose.msra.mxu0 0
        %2635 = vmatprep.subr.bf16.mxu0 0
        %2636 = vmatpush1.bf16.xpose.msra.mxu0 0
        %2637 = vmatprep.subr.bf16.mxu0 0
        %2638 = vmatpush1.bf16.xpose.msra.mxu0 0
        %2639 = vmatprep.subr.bf16.mxu0 0
        %2640 = vmatpush1.bf16.xpose.msra.mxu0 0
        %2641 = vmatprep.subr.bf16.mxu0 0
        %2642 = vmatpush1.bf16.xpose.msra.mxu0 0
        %2643 = vmatprep.subr.bf16.mxu0 0
        %2644 = vmatpush1.bf16.xpose.msra.mxu0 0
        %2645 = vmatprep.subr.bf16.mxu0 0
        %2646 = vmatpush1.bf16.xpose.msra.mxu0 0
        %2647 = vmatprep.subr.bf16.mxu0 0
        %2648 = vmatpush1.bf16.xpose.msra.mxu0 0
        %2649 = vmatprep.subr.bf16.mxu0 0
        %2650 = vmatpush1.bf16.xpose.msra.mxu0 0
        %2651 = vmatprep.subr.bf16.mxu0 0
        %2652 = vmatpush1.bf16.xpose.msra.mxu0 0
        %2653 = vmatprep.subr.bf16.mxu0 0
        %2654 = vmatpush1.bf16.xpose.msra.mxu0 0
        %2655 = vmatprep.subr.bf16.mxu0 0
        %2656 = vmatpush1.bf16.xpose.msra.mxu0 0
        %2657 = vmatprep.subr.bf16.mxu0 0
        %2658 = vmatpush1.bf16.xpose.msra.mxu0 0
        %2659 = vmatprep.subr.bf16.mxu0 0
        %2660 = vmatpush1.bf16.xpose.msra.mxu0 0
        %2661 = vmatprep.mubr.bf16.mxu0 %v931
        %2662 = vmatmul.mubr.bf16.gmra.mrb[0].mxu0 %v930
        %v2663 = vpop.f32.mrb[0].mxu0
        %v2664 = vadd.f32 %v2624, %v2663
        %v2665 = vpop.f32.mrb[0].mxu0
        %v2666 = vpop.f32.mrb[0].mxu0
        %v2667 = vpop.f32.mrb[0].mxu0
        %2668 = vdwg.mxu0
        %2669 = vmatprep.subr.bf16.mxu0 %v1414
        %2670 = vmatpush1.bf16.xpose.msra.mxu0 %v1413
        %2671 = vmatprep.subr.bf16.mxu0 0
        %2672 = vmatpush1.bf16.xpose.msra.mxu0 0
        %2673 = vmatprep.subr.bf16.mxu0 0
        %2674 = vmatpush1.bf16.xpose.msra.mxu0 0
        %2675 = vmatprep.subr.bf16.mxu0 0
        %2676 = vmatpush1.bf16.xpose.msra.mxu0 0
        %2677 = vmatprep.subr.bf16.mxu0 0
        %2678 = vmatpush1.bf16.xpose.msra.mxu0 0
        %2679 = vmatprep.subr.bf16.mxu0 0
        %2680 = vmatpush1.bf16.xpose.msra.mxu0 0
        %2681 = vmatprep.subr.bf16.mxu0 0
        %2682 = vmatpush1.bf16.xpose.msra.mxu0 0
        %2683 = vmatprep.subr.bf16.mxu0 0
        %2684 = vmatpush1.bf16.xpose.msra.mxu0 0
        %2685 = vmatprep.subr.bf16.mxu0 0
        %2686 = vmatpush1.bf16.xpose.msra.mxu0 0
        %2687 = vmatprep.subr.bf16.mxu0 0
        %2688 = vmatpush1.bf16.xpose.msra.mxu0 0
        %2689 = vmatprep.subr.bf16.mxu0 0
        %2690 = vmatpush1.bf16.xpose.msra.mxu0 0
        %2691 = vmatprep.subr.bf16.mxu0 0
        %2692 = vmatpush1.bf16.xpose.msra.mxu0 0
        %2693 = vmatprep.subr.bf16.mxu0 0
        %2694 = vmatpush1.bf16.xpose.msra.mxu0 0
        %2695 = vmatprep.subr.bf16.mxu0 0
        %2696 = vmatpush1.bf16.xpose.msra.mxu0 0
        %2697 = vmatprep.subr.bf16.mxu0 0
        %2698 = vmatpush1.bf16.xpose.msra.mxu0 0
        %2699 = vmatprep.subr.bf16.mxu0 0
        %2700 = vmatpush1.bf16.xpose.msra.mxu0 0
        %2701 = vmatprep.mubr.bf16.mxu0 %v933
        %2702 = vmatmul.mubr.bf16.gmra.mrb[0].mxu0 %v932
        %v2703 = vpop.f32.mrb[0].mxu0
        %v2704 = vadd.f32 %v2664, %v2703
        %v2705 = vpop.f32.mrb[0].mxu0
        %v2706 = vpop.f32.mrb[0].mxu0
        %v2707 = vpop.f32.mrb[0].mxu0
        %2708 = vdwg.mxu0
        %2709 = vmatprep.subr.bf16.mxu0 %v1416
        %2710 = vmatpush1.bf16.xpose.msra.mxu0 %v1415
        %2711 = vmatprep.subr.bf16.mxu0 0
        %2712 = vmatpush1.bf16.xpose.msra.mxu0 0
        %2713 = vmatprep.subr.bf16.mxu0 0
        %2714 = vmatpush1.bf16.xpose.msra.mxu0 0
        %2715 = vmatprep.subr.bf16.mxu0 0
        %2716 = vmatpush1.bf16.xpose.msra.mxu0 0
        %2717 = vmatprep.subr.bf16.mxu0 0
        %2718 = vmatpush1.bf16.xpose.msra.mxu0 0
        %2719 = vmatprep.subr.bf16.mxu0 0
        %2720 = vmatpush1.bf16.xpose.msra.mxu0 0
        %2721 = vmatprep.subr.bf16.mxu0 0
        %2722 = vmatpush1.bf16.xpose.msra.mxu0 0
        %2723 = vmatprep.subr.bf16.mxu0 0
        %2724 = vmatpush1.bf16.xpose.msra.mxu0 0
        %2725 = vmatprep.subr.bf16.mxu0 0
        %2726 = vmatpush1.bf16.xpose.msra.mxu0 0
        %2727 = vmatprep.subr.bf16.mxu0 0
        %2728 = vmatpush1.bf16.xpose.msra.mxu0 0
        %2729 = vmatprep.subr.bf16.mxu0 0
        %2730 = vmatpush1.bf16.xpose.msra.mxu0 0
        %2731 = vmatprep.subr.bf16.mxu0 0
        %2732 = vmatpush1.bf16.xpose.msra.mxu0 0
        %2733 = vmatprep.subr.bf16.mxu0 0
        %2734 = vmatpush1.bf16.xpose.msra.mxu0 0
        %2735 = vmatprep.subr.bf16.mxu0 0
        %2736 = vmatpush1.bf16.xpose.msra.mxu0 0
        %2737 = vmatprep.subr.bf16.mxu0 0
        %2738 = vmatpush1.bf16.xpose.msra.mxu0 0
        %2739 = vmatprep.subr.bf16.mxu0 0
        %2740 = vmatpush1.bf16.xpose.msra.mxu0 0
        %2741 = vmatprep.mubr.bf16.mxu0 %v935
        %2742 = vmatmul.mubr.bf16.gmra.mrb[0].mxu0 %v934
        %v2743 = vpop.f32.mrb[0].mxu0
        %v2744 = vadd.f32 %v2704, %v2743
        %v2745 = vpop.f32.mrb[0].mxu0
        %v2746 = vpop.f32.mrb[0].mxu0
        %v2747 = vpop.f32.mrb[0].mxu0
        %2748 = vdwg.mxu0
        %2749 = vmatprep.subr.bf16.mxu0 %v1418
        %2750 = vmatpush1.bf16.xpose.msra.mxu0 %v1417
        %2751 = vmatprep.subr.bf16.mxu0 0
        %2752 = vmatpush1.bf16.xpose.msra.mxu0 0
        %2753 = vmatprep.subr.bf16.mxu0 0
        %2754 = vmatpush1.bf16.xpose.msra.mxu0 0
        %2755 = vmatprep.subr.bf16.mxu0 0
        %2756 = vmatpush1.bf16.xpose.msra.mxu0 0
        %2757 = vmatprep.subr.bf16.mxu0 0
        %2758 = vmatpush1.bf16.xpose.msra.mxu0 0
        %2759 = vmatprep.subr.bf16.mxu0 0
        %2760 = vmatpush1.bf16.xpose.msra.mxu0 0
        %2761 = vmatprep.subr.bf16.mxu0 0
        %2762 = vmatpush1.bf16.xpose.msra.mxu0 0
        %2763 = vmatprep.subr.bf16.mxu0 0
        %2764 = vmatpush1.bf16.xpose.msra.mxu0 0
        %2765 = vmatprep.subr.bf16.mxu0 0
        %2766 = vmatpush1.bf16.xpose.msra.mxu0 0
        %2767 = vmatprep.subr.bf16.mxu0 0
        %2768 = vmatpush1.bf16.xpose.msra.mxu0 0
        %2769 = vmatprep.subr.bf16.mxu0 0
        %2770 = vmatpush1.bf16.xpose.msra.mxu0 0
        %2771 = vmatprep.subr.bf16.mxu0 0
        %2772 = vmatpush1.bf16.xpose.msra.mxu0 0
        %2773 = vmatprep.subr.bf16.mxu0 0
        %2774 = vmatpush1.bf16.xpose.msra.mxu0 0
        %2775 = vmatprep.subr.bf16.mxu0 0
        %2776 = vmatpush1.bf16.xpose.msra.mxu0 0
        %2777 = vmatprep.subr.bf16.mxu0 0
        %2778 = vmatpush1.bf16.xpose.msra.mxu0 0
        %2779 = vmatprep.subr.bf16.mxu0 0
        %2780 = vmatpush1.bf16.xpose.msra.mxu0 0
        %2781 = vmatprep.mubr.bf16.mxu0 %v937
        %2782 = vmatmul.mubr.bf16.gmra.mrb[0].mxu0 %v936
        %v2783 = vpop.f32.mrb[0].mxu0
        %v2784 = vadd.f32 %v2744, %v2783
        %v2785 = vpop.f32.mrb[0].mxu0
        %v2786 = vpop.f32.mrb[0].mxu0
        %v2787 = vpop.f32.mrb[0].mxu0
        %2788 = vdwg.mxu0
        %2789 = vmatprep.subr.bf16.mxu0 %v1420
        %2790 = vmatpush1.bf16.xpose.msra.mxu0 %v1419
        %2791 = vmatprep.subr.bf16.mxu0 0
        %2792 = vmatpush1.bf16.xpose.msra.mxu0 0
        %2793 = vmatprep.subr.bf16.mxu0 0
        %2794 = vmatpush1.bf16.xpose.msra.mxu0 0
        %2795 = vmatprep.subr.bf16.mxu0 0
        %2796 = vmatpush1.bf16.xpose.msra.mxu0 0
        %2797 = vmatprep.subr.bf16.mxu0 0
        %2798 = vmatpush1.bf16.xpose.msra.mxu0 0
        %2799 = vmatprep.subr.bf16.mxu0 0
        %2800 = vmatpush1.bf16.xpose.msra.mxu0 0
        %2801 = vmatprep.subr.bf16.mxu0 0
        %2802 = vmatpush1.bf16.xpose.msra.mxu0 0
        %2803 = vmatprep.subr.bf16.mxu0 0
        %2804 = vmatpush1.bf16.xpose.msra.mxu0 0
        %2805 = vmatprep.subr.bf16.mxu0 0
        %2806 = vmatpush1.bf16.xpose.msra.mxu0 0
        %2807 = vmatprep.subr.bf16.mxu0 0
        %2808 = vmatpush1.bf16.xpose.msra.mxu0 0
        %2809 = vmatprep.subr.bf16.mxu0 0
        %2810 = vmatpush1.bf16.xpose.msra.mxu0 0
        %2811 = vmatprep.subr.bf16.mxu0 0
        %2812 = vmatpush1.bf16.xpose.msra.mxu0 0
        %2813 = vmatprep.subr.bf16.mxu0 0
        %2814 = vmatpush1.bf16.xpose.msra.mxu0 0
        %2815 = vmatprep.subr.bf16.mxu0 0
        %2816 = vmatpush1.bf16.xpose.msra.mxu0 0
        %2817 = vmatprep.subr.bf16.mxu0 0
        %2818 = vmatpush1.bf16.xpose.msra.mxu0 0
        %2819 = vmatprep.subr.bf16.mxu0 0
        %2820 = vmatpush1.bf16.xpose.msra.mxu0 0
        %2821 = vmatprep.mubr.bf16.mxu0 %v939
        %2822 = vmatmul.mubr.bf16.gmra.mrb[0].mxu0 %v938
        %v2823 = vpop.f32.mrb[0].mxu0
        %v2824 = vadd.f32 %v2784, %v2823
        %v2825 = vpop.f32.mrb[0].mxu0
        %v2826 = vpop.f32.mrb[0].mxu0
        %v2827 = vpop.f32.mrb[0].mxu0
        %2828 = vdwg.mxu0
        %2829 = vmatprep.subr.bf16.mxu0 %v1422
        %2830 = vmatpush1.bf16.xpose.msra.mxu0 %v1421
        %2831 = vmatprep.subr.bf16.mxu0 0
        %2832 = vmatpush1.bf16.xpose.msra.mxu0 0
        %2833 = vmatprep.subr.bf16.mxu0 0
        %2834 = vmatpush1.bf16.xpose.msra.mxu0 0
        %2835 = vmatprep.subr.bf16.mxu0 0
        %2836 = vmatpush1.bf16.xpose.msra.mxu0 0
        %2837 = vmatprep.subr.bf16.mxu0 0
        %2838 = vmatpush1.bf16.xpose.msra.mxu0 0
        %2839 = vmatprep.subr.bf16.mxu0 0
        %2840 = vmatpush1.bf16.xpose.msra.mxu0 0
        %2841 = vmatprep.subr.bf16.mxu0 0
        %2842 = vmatpush1.bf16.xpose.msra.mxu0 0
        %2843 = vmatprep.subr.bf16.mxu0 0
        %2844 = vmatpush1.bf16.xpose.msra.mxu0 0
        %2845 = vmatprep.subr.bf16.mxu0 0
        %2846 = vmatpush1.bf16.xpose.msra.mxu0 0
        %2847 = vmatprep.subr.bf16.mxu0 0
        %2848 = vmatpush1.bf16.xpose.msra.mxu0 0
        %2849 = vmatprep.subr.bf16.mxu0 0
        %2850 = vmatpush1.bf16.xpose.msra.mxu0 0
        %2851 = vmatprep.subr.bf16.mxu0 0
        %2852 = vmatpush1.bf16.xpose.msra.mxu0 0
        %2853 = vmatprep.subr.bf16.mxu0 0
        %2854 = vmatpush1.bf16.xpose.msra.mxu0 0
        %2855 = vmatprep.subr.bf16.mxu0 0
        %2856 = vmatpush1.bf16.xpose.msra.mxu0 0
        %2857 = vmatprep.subr.bf16.mxu0 0
        %2858 = vmatpush1.bf16.xpose.msra.mxu0 0
        %2859 = vmatprep.subr.bf16.mxu0 0
        %2860 = vmatpush1.bf16.xpose.msra.mxu0 0
        %2861 = vmatprep.mubr.bf16.mxu0 %v941
        %2862 = vmatmul.mubr.bf16.gmra.mrb[0].mxu0 %v940
        %v2863 = vpop.f32.mrb[0].mxu0
        %v2864 = vadd.f32 %v2824, %v2863
        %v2865 = vpop.f32.mrb[0].mxu0
        %v2866 = vpop.f32.mrb[0].mxu0
        %v2867 = vpop.f32.mrb[0].mxu0
        %2868 = vdwg.mxu0
        %2869 = vmatprep.subr.bf16.mxu0 %v1424
        %2870 = vmatpush1.bf16.xpose.msra.mxu0 %v1423
        %2871 = vmatprep.subr.bf16.mxu0 0
        %2872 = vmatpush1.bf16.xpose.msra.mxu0 0
        %2873 = vmatprep.subr.bf16.mxu0 0
        %2874 = vmatpush1.bf16.xpose.msra.mxu0 0
        %2875 = vmatprep.subr.bf16.mxu0 0
        %2876 = vmatpush1.bf16.xpose.msra.mxu0 0
        %2877 = vmatprep.subr.bf16.mxu0 0
        %2878 = vmatpush1.bf16.xpose.msra.mxu0 0
        %2879 = vmatprep.subr.bf16.mxu0 0
        %2880 = vmatpush1.bf16.xpose.msra.mxu0 0
        %2881 = vmatprep.subr.bf16.mxu0 0
        %2882 = vmatpush1.bf16.xpose.msra.mxu0 0
        %2883 = vmatprep.subr.bf16.mxu0 0
        %2884 = vmatpush1.bf16.xpose.msra.mxu0 0
        %2885 = vmatprep.subr.bf16.mxu0 0
        %2886 = vmatpush1.bf16.xpose.msra.mxu0 0
        %2887 = vmatprep.subr.bf16.mxu0 0
        %2888 = vmatpush1.bf16.xpose.msra.mxu0 0
        %2889 = vmatprep.subr.bf16.mxu0 0
        %2890 = vmatpush1.bf16.xpose.msra.mxu0 0
        %2891 = vmatprep.subr.bf16.mxu0 0
        %2892 = vmatpush1.bf16.xpose.msra.mxu0 0
        %2893 = vmatprep.subr.bf16.mxu0 0
        %2894 = vmatpush1.bf16.xpose.msra.mxu0 0
        %2895 = vmatprep.subr.bf16.mxu0 0
        %2896 = vmatpush1.bf16.xpose.msra.mxu0 0
        %2897 = vmatprep.subr.bf16.mxu0 0
        %2898 = vmatpush1.bf16.xpose.msra.mxu0 0
        %2899 = vmatprep.subr.bf16.mxu0 0
        %2900 = vmatpush1.bf16.xpose.msra.mxu0 0
        %2901 = vmatprep.mubr.bf16.mxu0 %v943
        %2902 = vmatmul.mubr.bf16.gmra.mrb[0].mxu0 %v942
        %v2903 = vpop.f32.mrb[0].mxu0
        %v2904 = vadd.f32 %v2864, %v2903
        %v2905 = vpop.f32.mrb[0].mxu0
        %v2906 = vpop.f32.mrb[0].mxu0
        %v2907 = vpop.f32.mrb[0].mxu0
        %2908 = vdwg.mxu0
        %2909 = vmatprep.subr.bf16.mxu0 %v1426
        %2910 = vmatpush1.bf16.xpose.msra.mxu0 %v1425
        %2911 = vmatprep.subr.bf16.mxu0 0
        %2912 = vmatpush1.bf16.xpose.msra.mxu0 0
        %2913 = vmatprep.subr.bf16.mxu0 0
        %2914 = vmatpush1.bf16.xpose.msra.mxu0 0
        %2915 = vmatprep.subr.bf16.mxu0 0
        %2916 = vmatpush1.bf16.xpose.msra.mxu0 0
        %2917 = vmatprep.subr.bf16.mxu0 0
        %2918 = vmatpush1.bf16.xpose.msra.mxu0 0
        %2919 = vmatprep.subr.bf16.mxu0 0
        %2920 = vmatpush1.bf16.xpose.msra.mxu0 0
        %2921 = vmatprep.subr.bf16.mxu0 0
        %2922 = vmatpush1.bf16.xpose.msra.mxu0 0
        %2923 = vmatprep.subr.bf16.mxu0 0
        %2924 = vmatpush1.bf16.xpose.msra.mxu0 0
        %2925 = vmatprep.subr.bf16.mxu0 0
        %2926 = vmatpush1.bf16.xpose.msra.mxu0 0
        %2927 = vmatprep.subr.bf16.mxu0 0
        %2928 = vmatpush1.bf16.xpose.msra.mxu0 0
        %2929 = vmatprep.subr.bf16.mxu0 0
        %2930 = vmatpush1.bf16.xpose.msra.mxu0 0
        %2931 = vmatprep.subr.bf16.mxu0 0
        %2932 = vmatpush1.bf16.xpose.msra.mxu0 0
        %2933 = vmatprep.subr.bf16.mxu0 0
        %2934 = vmatpush1.bf16.xpose.msra.mxu0 0
        %2935 = vmatprep.subr.bf16.mxu0 0
        %2936 = vmatpush1.bf16.xpose.msra.mxu0 0
        %2937 = vmatprep.subr.bf16.mxu0 0
        %2938 = vmatpush1.bf16.xpose.msra.mxu0 0
        %2939 = vmatprep.subr.bf16.mxu0 0
        %2940 = vmatpush1.bf16.xpose.msra.mxu0 0
        %2941 = vmatprep.mubr.bf16.mxu0 %v945
        %2942 = vmatmul.mubr.bf16.gmra.mrb[0].mxu0 %v944
        %v2943 = vpop.f32.mrb[0].mxu0
        %v2944 = vadd.f32 %v2904, %v2943
        %v2945 = vpop.f32.mrb[0].mxu0
        %v2946 = vpop.f32.mrb[0].mxu0
        %v2947 = vpop.f32.mrb[0].mxu0
        %2948 = vdwg.mxu0
        %2949 = vmatprep.subr.bf16.mxu0 %v1428
        %2950 = vmatpush1.bf16.xpose.msra.mxu0 %v1427
        %2951 = vmatprep.subr.bf16.mxu0 0
        %2952 = vmatpush1.bf16.xpose.msra.mxu0 0
        %2953 = vmatprep.subr.bf16.mxu0 0
        %2954 = vmatpush1.bf16.xpose.msra.mxu0 0
        %2955 = vmatprep.subr.bf16.mxu0 0
        %2956 = vmatpush1.bf16.xpose.msra.mxu0 0
        %2957 = vmatprep.subr.bf16.mxu0 0
        %2958 = vmatpush1.bf16.xpose.msra.mxu0 0
        %2959 = vmatprep.subr.bf16.mxu0 0
        %2960 = vmatpush1.bf16.xpose.msra.mxu0 0
        %2961 = vmatprep.subr.bf16.mxu0 0
        %2962 = vmatpush1.bf16.xpose.msra.mxu0 0
        %2963 = vmatprep.subr.bf16.mxu0 0
        %2964 = vmatpush1.bf16.xpose.msra.mxu0 0
        %2965 = vmatprep.subr.bf16.mxu0 0
        %2966 = vmatpush1.bf16.xpose.msra.mxu0 0
        %2967 = vmatprep.subr.bf16.mxu0 0
        %2968 = vmatpush1.bf16.xpose.msra.mxu0 0
        %2969 = vmatprep.subr.bf16.mxu0 0
        %2970 = vmatpush1.bf16.xpose.msra.mxu0 0
        %2971 = vmatprep.subr.bf16.mxu0 0
        %2972 = vmatpush1.bf16.xpose.msra.mxu0 0
        %2973 = vmatprep.subr.bf16.mxu0 0
        %2974 = vmatpush1.bf16.xpose.msra.mxu0 0
        %2975 = vmatprep.subr.bf16.mxu0 0
        %2976 = vmatpush1.bf16.xpose.msra.mxu0 0
        %2977 = vmatprep.subr.bf16.mxu0 0
        %2978 = vmatpush1.bf16.xpose.msra.mxu0 0
        %2979 = vmatprep.subr.bf16.mxu0 0
        %2980 = vmatpush1.bf16.xpose.msra.mxu0 0
        %2981 = vmatprep.mubr.bf16.mxu0 %v947
        %2982 = vmatmul.mubr.bf16.gmra.mrb[0].mxu0 %v946
        %v2983 = vpop.f32.mrb[0].mxu0
        %v2984 = vadd.f32 %v2944, %v2983
        %v2985 = vpop.f32.mrb[0].mxu0
        %v2986 = vpop.f32.mrb[0].mxu0
        %v2987 = vpop.f32.mrb[0].mxu0
        %2988 = vdwg.mxu0
        %2989 = vmatprep.subr.bf16.mxu0 %v1430
        %2990 = vmatpush1.bf16.xpose.msra.mxu0 %v1429
        %2991 = vmatprep.subr.bf16.mxu0 0
        %2992 = vmatpush1.bf16.xpose.msra.mxu0 0
        %2993 = vmatprep.subr.bf16.mxu0 0
        %2994 = vmatpush1.bf16.xpose.msra.mxu0 0
        %2995 = vmatprep.subr.bf16.mxu0 0
        %2996 = vmatpush1.bf16.xpose.msra.mxu0 0
        %2997 = vmatprep.subr.bf16.mxu0 0
        %2998 = vmatpush1.bf16.xpose.msra.mxu0 0
        %2999 = vmatprep.subr.bf16.mxu0 0
        %3000 = vmatpush1.bf16.xpose.msra.mxu0 0
        %3001 = vmatprep.subr.bf16.mxu0 0
        %3002 = vmatpush1.bf16.xpose.msra.mxu0 0
        %3003 = vmatprep.subr.bf16.mxu0 0
        %3004 = vmatpush1.bf16.xpose.msra.mxu0 0
        %3005 = vmatprep.subr.bf16.mxu0 0
        %3006 = vmatpush1.bf16.xpose.msra.mxu0 0
        %3007 = vmatprep.subr.bf16.mxu0 0
        %3008 = vmatpush1.bf16.xpose.msra.mxu0 0
        %3009 = vmatprep.subr.bf16.mxu0 0
        %3010 = vmatpush1.bf16.xpose.msra.mxu0 0
        %3011 = vmatprep.subr.bf16.mxu0 0
        %3012 = vmatpush1.bf16.xpose.msra.mxu0 0
        %3013 = vmatprep.subr.bf16.mxu0 0
        %3014 = vmatpush1.bf16.xpose.msra.mxu0 0
        %3015 = vmatprep.subr.bf16.mxu0 0
        %3016 = vmatpush1.bf16.xpose.msra.mxu0 0
        %3017 = vmatprep.subr.bf16.mxu0 0
        %3018 = vmatpush1.bf16.xpose.msra.mxu0 0
        %3019 = vmatprep.subr.bf16.mxu0 0
        %3020 = vmatpush1.bf16.xpose.msra.mxu0 0
        %3021 = vmatprep.mubr.bf16.mxu0 %v949
        %3022 = vmatmul.mubr.bf16.gmra.mrb[0].mxu0 %v948
        %v3023 = vpop.f32.mrb[0].mxu0
        %v3024 = vadd.f32 %v2984, %v3023
        %v3025 = vpop.f32.mrb[0].mxu0
        %v3026 = vpop.f32.mrb[0].mxu0
        %v3027 = vpop.f32.mrb[0].mxu0
        %3028 = vdwg.mxu0
        %3029 = vmatprep.subr.bf16.mxu0 %v1432
        %3030 = vmatpush1.bf16.xpose.msra.mxu0 %v1431
        %3031 = vmatprep.subr.bf16.mxu0 0
        %3032 = vmatpush1.bf16.xpose.msra.mxu0 0
        %3033 = vmatprep.subr.bf16.mxu0 0
        %3034 = vmatpush1.bf16.xpose.msra.mxu0 0
        %3035 = vmatprep.subr.bf16.mxu0 0
        %3036 = vmatpush1.bf16.xpose.msra.mxu0 0
        %3037 = vmatprep.subr.bf16.mxu0 0
        %3038 = vmatpush1.bf16.xpose.msra.mxu0 0
        %3039 = vmatprep.subr.bf16.mxu0 0
        %3040 = vmatpush1.bf16.xpose.msra.mxu0 0
        %3041 = vmatprep.subr.bf16.mxu0 0
        %3042 = vmatpush1.bf16.xpose.msra.mxu0 0
        %3043 = vmatprep.subr.bf16.mxu0 0
        %3044 = vmatpush1.bf16.xpose.msra.mxu0 0
        %3045 = vmatprep.subr.bf16.mxu0 0
        %3046 = vmatpush1.bf16.xpose.msra.mxu0 0
        %3047 = vmatprep.subr.bf16.mxu0 0
        %3048 = vmatpush1.bf16.xpose.msra.mxu0 0
        %3049 = vmatprep.subr.bf16.mxu0 0
        %3050 = vmatpush1.bf16.xpose.msra.mxu0 0
        %3051 = vmatprep.subr.bf16.mxu0 0
        %3052 = vmatpush1.bf16.xpose.msra.mxu0 0
        %3053 = vmatprep.subr.bf16.mxu0 0
        %3054 = vmatpush1.bf16.xpose.msra.mxu0 0
        %3055 = vmatprep.subr.bf16.mxu0 0
        %3056 = vmatpush1.bf16.xpose.msra.mxu0 0
        %3057 = vmatprep.subr.bf16.mxu0 0
        %3058 = vmatpush1.bf16.xpose.msra.mxu0 0
        %3059 = vmatprep.subr.bf16.mxu0 0
        %3060 = vmatpush1.bf16.xpose.msra.mxu0 0
        %3061 = vmatprep.mubr.bf16.mxu0 %v951
        %3062 = vmatmul.mubr.bf16.gmra.mrb[0].mxu0 %v950
        %v3063 = vpop.f32.mrb[0].mxu0
        %v3064 = vadd.f32 %v3024, %v3063
        %v3065 = vpop.f32.mrb[0].mxu0
        %v3066 = vpop.f32.mrb[0].mxu0
        %v3067 = vpop.f32.mrb[0].mxu0
        %3068 = vdwg.mxu0
        %3069 = vmatprep.subr.bf16.mxu0 %v1434
        %3070 = vmatpush1.bf16.xpose.msra.mxu0 %v1433
        %3071 = vmatprep.subr.bf16.mxu0 0
        %3072 = vmatpush1.bf16.xpose.msra.mxu0 0
        %3073 = vmatprep.subr.bf16.mxu0 0
        %3074 = vmatpush1.bf16.xpose.msra.mxu0 0
        %3075 = vmatprep.subr.bf16.mxu0 0
        %3076 = vmatpush1.bf16.xpose.msra.mxu0 0
        %3077 = vmatprep.subr.bf16.mxu0 0
        %3078 = vmatpush1.bf16.xpose.msra.mxu0 0
        %3079 = vmatprep.subr.bf16.mxu0 0
        %3080 = vmatpush1.bf16.xpose.msra.mxu0 0
        %3081 = vmatprep.subr.bf16.mxu0 0
        %3082 = vmatpush1.bf16.xpose.msra.mxu0 0
        %3083 = vmatprep.subr.bf16.mxu0 0
        %3084 = vmatpush1.bf16.xpose.msra.mxu0 0
        %3085 = vmatprep.subr.bf16.mxu0 0
        %3086 = vmatpush1.bf16.xpose.msra.mxu0 0
        %3087 = vmatprep.subr.bf16.mxu0 0
        %3088 = vmatpush1.bf16.xpose.msra.mxu0 0
        %3089 = vmatprep.subr.bf16.mxu0 0
        %3090 = vmatpush1.bf16.xpose.msra.mxu0 0
        %3091 = vmatprep.subr.bf16.mxu0 0
        %3092 = vmatpush1.bf16.xpose.msra.mxu0 0
        %3093 = vmatprep.subr.bf16.mxu0 0
        %3094 = vmatpush1.bf16.xpose.msra.mxu0 0
        %3095 = vmatprep.subr.bf16.mxu0 0
        %3096 = vmatpush1.bf16.xpose.msra.mxu0 0
        %3097 = vmatprep.subr.bf16.mxu0 0
        %3098 = vmatpush1.bf16.xpose.msra.mxu0 0
        %3099 = vmatprep.subr.bf16.mxu0 0
        %3100 = vmatpush1.bf16.xpose.msra.mxu0 0
        %3101 = vmatprep.mubr.bf16.mxu0 %v953
        %3102 = vmatmul.mubr.bf16.gmra.mrb[0].mxu0 %v952
        %v3103 = vpop.f32.mrb[0].mxu0
        %v3104 = vadd.f32 %v3064, %v3103
        %v3105 = vpop.f32.mrb[0].mxu0
        %v3106 = vpop.f32.mrb[0].mxu0
        %v3107 = vpop.f32.mrb[0].mxu0
        %3108 = vdwg.mxu0
        %3109 = vmatprep.subr.bf16.mxu0 %v1436
        %3110 = vmatpush1.bf16.xpose.msra.mxu0 %v1435
        %3111 = vmatprep.subr.bf16.mxu0 0
        %3112 = vmatpush1.bf16.xpose.msra.mxu0 0
        %3113 = vmatprep.subr.bf16.mxu0 0
        %3114 = vmatpush1.bf16.xpose.msra.mxu0 0
        %3115 = vmatprep.subr.bf16.mxu0 0
        %3116 = vmatpush1.bf16.xpose.msra.mxu0 0
        %3117 = vmatprep.subr.bf16.mxu0 0
        %3118 = vmatpush1.bf16.xpose.msra.mxu0 0
        %3119 = vmatprep.subr.bf16.mxu0 0
        %3120 = vmatpush1.bf16.xpose.msra.mxu0 0
        %3121 = vmatprep.subr.bf16.mxu0 0
        %3122 = vmatpush1.bf16.xpose.msra.mxu0 0
        %3123 = vmatprep.subr.bf16.mxu0 0
        %3124 = vmatpush1.bf16.xpose.msra.mxu0 0
        %3125 = vmatprep.subr.bf16.mxu0 0
        %3126 = vmatpush1.bf16.xpose.msra.mxu0 0
        %3127 = vmatprep.subr.bf16.mxu0 0
        %3128 = vmatpush1.bf16.xpose.msra.mxu0 0
        %3129 = vmatprep.subr.bf16.mxu0 0
        %3130 = vmatpush1.bf16.xpose.msra.mxu0 0
        %3131 = vmatprep.subr.bf16.mxu0 0
        %3132 = vmatpush1.bf16.xpose.msra.mxu0 0
        %3133 = vmatprep.subr.bf16.mxu0 0
        %3134 = vmatpush1.bf16.xpose.msra.mxu0 0
        %3135 = vmatprep.subr.bf16.mxu0 0
        %3136 = vmatpush1.bf16.xpose.msra.mxu0 0
        %3137 = vmatprep.subr.bf16.mxu0 0
        %3138 = vmatpush1.bf16.xpose.msra.mxu0 0
        %3139 = vmatprep.subr.bf16.mxu0 0
        %3140 = vmatpush1.bf16.xpose.msra.mxu0 0
        %3141 = vmatprep.mubr.bf16.mxu0 %v955
        %3142 = vmatmul.mubr.bf16.gmra.mrb[0].mxu0 %v954
        %v3143 = vpop.f32.mrb[0].mxu0
        %v3144 = vadd.f32 %v3104, %v3143
        %v3145 = vpop.f32.mrb[0].mxu0
        %v3146 = vpop.f32.mrb[0].mxu0
        %v3147 = vpop.f32.mrb[0].mxu0
        %3148 = vdwg.mxu0
        %3149 = vmatprep.subr.bf16.mxu0 %v1438
        %3150 = vmatpush1.bf16.xpose.msra.mxu0 %v1437
        %3151 = vmatprep.subr.bf16.mxu0 0
        %3152 = vmatpush1.bf16.xpose.msra.mxu0 0
        %3153 = vmatprep.subr.bf16.mxu0 0
        %3154 = vmatpush1.bf16.xpose.msra.mxu0 0
        %3155 = vmatprep.subr.bf16.mxu0 0
        %3156 = vmatpush1.bf16.xpose.msra.mxu0 0
        %3157 = vmatprep.subr.bf16.mxu0 0
        %3158 = vmatpush1.bf16.xpose.msra.mxu0 0
        %3159 = vmatprep.subr.bf16.mxu0 0
        %3160 = vmatpush1.bf16.xpose.msra.mxu0 0
        %3161 = vmatprep.subr.bf16.mxu0 0
        %3162 = vmatpush1.bf16.xpose.msra.mxu0 0
        %3163 = vmatprep.subr.bf16.mxu0 0
        %3164 = vmatpush1.bf16.xpose.msra.mxu0 0
        %3165 = vmatprep.subr.bf16.mxu0 0
        %3166 = vmatpush1.bf16.xpose.msra.mxu0 0
        %3167 = vmatprep.subr.bf16.mxu0 0
        %3168 = vmatpush1.bf16.xpose.msra.mxu0 0
        %3169 = vmatprep.subr.bf16.mxu0 0
        %3170 = vmatpush1.bf16.xpose.msra.mxu0 0
        %3171 = vmatprep.subr.bf16.mxu0 0
        %3172 = vmatpush1.bf16.xpose.msra.mxu0 0
        %3173 = vmatprep.subr.bf16.mxu0 0
        %3174 = vmatpush1.bf16.xpose.msra.mxu0 0
        %3175 = vmatprep.subr.bf16.mxu0 0
        %3176 = vmatpush1.bf16.xpose.msra.mxu0 0
        %3177 = vmatprep.subr.bf16.mxu0 0
        %3178 = vmatpush1.bf16.xpose.msra.mxu0 0
        %3179 = vmatprep.subr.bf16.mxu0 0
        %3180 = vmatpush1.bf16.xpose.msra.mxu0 0
        %3181 = vmatprep.mubr.bf16.mxu0 %v957
        %3182 = vmatmul.mubr.bf16.gmra.mrb[0].mxu0 %v956
        %v3183 = vpop.f32.mrb[0].mxu0
        %v3184 = vadd.f32 %v3144, %v3183
        %v3185 = vpop.f32.mrb[0].mxu0
        %v3186 = vpop.f32.mrb[0].mxu0
        %v3187 = vpop.f32.mrb[0].mxu0
        %3188 = vdwg.mxu0
        %3189 = vmatprep.subr.bf16.mxu0 %v1440
        %3190 = vmatpush1.bf16.xpose.msra.mxu0 %v1439
        %3191 = vmatprep.subr.bf16.mxu0 0
        %3192 = vmatpush1.bf16.xpose.msra.mxu0 0
        %3193 = vmatprep.subr.bf16.mxu0 0
        %3194 = vmatpush1.bf16.xpose.msra.mxu0 0
        %3195 = vmatprep.subr.bf16.mxu0 0
        %3196 = vmatpush1.bf16.xpose.msra.mxu0 0
        %3197 = vmatprep.subr.bf16.mxu0 0
        %3198 = vmatpush1.bf16.xpose.msra.mxu0 0
        %3199 = vmatprep.subr.bf16.mxu0 0
        %3200 = vmatpush1.bf16.xpose.msra.mxu0 0
        %3201 = vmatprep.subr.bf16.mxu0 0
        %3202 = vmatpush1.bf16.xpose.msra.mxu0 0
        %3203 = vmatprep.subr.bf16.mxu0 0
        %3204 = vmatpush1.bf16.xpose.msra.mxu0 0
        %3205 = vmatprep.subr.bf16.mxu0 0
        %3206 = vmatpush1.bf16.xpose.msra.mxu0 0
        %3207 = vmatprep.subr.bf16.mxu0 0
        %3208 = vmatpush1.bf16.xpose.msra.mxu0 0
        %3209 = vmatprep.subr.bf16.mxu0 0
        %3210 = vmatpush1.bf16.xpose.msra.mxu0 0
        %3211 = vmatprep.subr.bf16.mxu0 0
        %3212 = vmatpush1.bf16.xpose.msra.mxu0 0
        %3213 = vmatprep.subr.bf16.mxu0 0
        %3214 = vmatpush1.bf16.xpose.msra.mxu0 0
        %3215 = vmatprep.subr.bf16.mxu0 0
        %3216 = vmatpush1.bf16.xpose.msra.mxu0 0
        %3217 = vmatprep.subr.bf16.mxu0 0
        %3218 = vmatpush1.bf16.xpose.msra.mxu0 0
        %3219 = vmatprep.subr.bf16.mxu0 0
        %3220 = vmatpush1.bf16.xpose.msra.mxu0 0
        %3221 = vmatprep.mubr.bf16.mxu0 %v959
        %3222 = vmatmul.mubr.bf16.gmra.mrb[0].mxu0 %v958
        %v3223 = vpop.f32.mrb[0].mxu0
        %v3224 = vadd.f32 %v3184, %v3223
        %v3225 = vpop.f32.mrb[0].mxu0
        %v3226 = vpop.f32.mrb[0].mxu0
        %v3227 = vpop.f32.mrb[0].mxu0
        %3228 = vdwg.mxu0
        %3229 = vmatprep.subr.bf16.mxu0 %v1442
        %3230 = vmatpush1.bf16.xpose.msra.mxu0 %v1441
        %3231 = vmatprep.subr.bf16.mxu0 0
        %3232 = vmatpush1.bf16.xpose.msra.mxu0 0
        %3233 = vmatprep.subr.bf16.mxu0 0
        %3234 = vmatpush1.bf16.xpose.msra.mxu0 0
        %3235 = vmatprep.subr.bf16.mxu0 0
        %3236 = vmatpush1.bf16.xpose.msra.mxu0 0
        %3237 = vmatprep.subr.bf16.mxu0 0
        %3238 = vmatpush1.bf16.xpose.msra.mxu0 0
        %3239 = vmatprep.subr.bf16.mxu0 0
        %3240 = vmatpush1.bf16.xpose.msra.mxu0 0
        %3241 = vmatprep.subr.bf16.mxu0 0
        %3242 = vmatpush1.bf16.xpose.msra.mxu0 0
        %3243 = vmatprep.subr.bf16.mxu0 0
        %3244 = vmatpush1.bf16.xpose.msra.mxu0 0
        %3245 = vmatprep.subr.bf16.mxu0 0
        %3246 = vmatpush1.bf16.xpose.msra.mxu0 0
        %3247 = vmatprep.subr.bf16.mxu0 0
        %3248 = vmatpush1.bf16.xpose.msra.mxu0 0
        %3249 = vmatprep.subr.bf16.mxu0 0
        %3250 = vmatpush1.bf16.xpose.msra.mxu0 0
        %3251 = vmatprep.subr.bf16.mxu0 0
        %3252 = vmatpush1.bf16.xpose.msra.mxu0 0
        %3253 = vmatprep.subr.bf16.mxu0 0
        %3254 = vmatpush1.bf16.xpose.msra.mxu0 0
        %3255 = vmatprep.subr.bf16.mxu0 0
        %3256 = vmatpush1.bf16.xpose.msra.mxu0 0
        %3257 = vmatprep.subr.bf16.mxu0 0
        %3258 = vmatpush1.bf16.xpose.msra.mxu0 0
        %3259 = vmatprep.subr.bf16.mxu0 0
        %3260 = vmatpush1.bf16.xpose.msra.mxu0 0
        %3261 = vmatprep.mubr.bf16.mxu0 %v961
        %3262 = vmatmul.mubr.bf16.gmra.mrb[0].mxu0 %v960
        %v3263 = vpop.f32.mrb[0].mxu0
        %v3264 = vadd.f32 %v3224, %v3263
        %v3265 = vpop.f32.mrb[0].mxu0
        %v3266 = vpop.f32.mrb[0].mxu0
        %v3267 = vpop.f32.mrb[0].mxu0
        %3268 = vdwg.mxu0
        %3269 = vmatprep.subr.bf16.mxu0 %v1444
        %3270 = vmatpush1.bf16.xpose.msra.mxu0 %v1443
        %3271 = vmatprep.subr.bf16.mxu0 0
        %3272 = vmatpush1.bf16.xpose.msra.mxu0 0
        %3273 = vmatprep.subr.bf16.mxu0 0
        %3274 = vmatpush1.bf16.xpose.msra.mxu0 0
        %3275 = vmatprep.subr.bf16.mxu0 0
        %3276 = vmatpush1.bf16.xpose.msra.mxu0 0
        %3277 = vmatprep.subr.bf16.mxu0 0
        %3278 = vmatpush1.bf16.xpose.msra.mxu0 0
        %3279 = vmatprep.subr.bf16.mxu0 0
        %3280 = vmatpush1.bf16.xpose.msra.mxu0 0
        %3281 = vmatprep.subr.bf16.mxu0 0
        %3282 = vmatpush1.bf16.xpose.msra.mxu0 0
        %3283 = vmatprep.subr.bf16.mxu0 0
        %3284 = vmatpush1.bf16.xpose.msra.mxu0 0
        %3285 = vmatprep.subr.bf16.mxu0 0
        %3286 = vmatpush1.bf16.xpose.msra.mxu0 0
        %3287 = vmatprep.subr.bf16.mxu0 0
        %3288 = vmatpush1.bf16.xpose.msra.mxu0 0
        %3289 = vmatprep.subr.bf16.mxu0 0
        %3290 = vmatpush1.bf16.xpose.msra.mxu0 0
        %3291 = vmatprep.subr.bf16.mxu0 0
        %3292 = vmatpush1.bf16.xpose.msra.mxu0 0
        %3293 = vmatprep.subr.bf16.mxu0 0
        %3294 = vmatpush1.bf16.xpose.msra.mxu0 0
        %3295 = vmatprep.subr.bf16.mxu0 0
        %3296 = vmatpush1.bf16.xpose.msra.mxu0 0
        %3297 = vmatprep.subr.bf16.mxu0 0
        %3298 = vmatpush1.bf16.xpose.msra.mxu0 0
        %3299 = vmatprep.subr.bf16.mxu0 0
        %3300 = vmatpush1.bf16.xpose.msra.mxu0 0
        %3301 = vmatprep.mubr.bf16.mxu0 %v963
        %3302 = vmatmul.mubr.bf16.gmra.mrb[0].mxu0 %v962
        %v3303 = vpop.f32.mrb[0].mxu0
        %v3304 = vadd.f32 %v3264, %v3303
        %v3305 = vpop.f32.mrb[0].mxu0
        %v3306 = vpop.f32.mrb[0].mxu0
        %v3307 = vpop.f32.mrb[0].mxu0
        %3308 = vdwg.mxu0
        %3309 = vmatprep.subr.bf16.mxu0 %v1446
        %3310 = vmatpush1.bf16.xpose.msra.mxu0 %v1445
        %3311 = vmatprep.subr.bf16.mxu0 0
        %3312 = vmatpush1.bf16.xpose.msra.mxu0 0
        %3313 = vmatprep.subr.bf16.mxu0 0
        %3314 = vmatpush1.bf16.xpose.msra.mxu0 0
        %3315 = vmatprep.subr.bf16.mxu0 0
        %3316 = vmatpush1.bf16.xpose.msra.mxu0 0
        %3317 = vmatprep.subr.bf16.mxu0 0
        %3318 = vmatpush1.bf16.xpose.msra.mxu0 0
        %3319 = vmatprep.subr.bf16.mxu0 0
        %3320 = vmatpush1.bf16.xpose.msra.mxu0 0
        %3321 = vmatprep.subr.bf16.mxu0 0
        %3322 = vmatpush1.bf16.xpose.msra.mxu0 0
        %3323 = vmatprep.subr.bf16.mxu0 0
        %3324 = vmatpush1.bf16.xpose.msra.mxu0 0
        %3325 = vmatprep.subr.bf16.mxu0 0
        %3326 = vmatpush1.bf16.xpose.msra.mxu0 0
        %3327 = vmatprep.subr.bf16.mxu0 0
        %3328 = vmatpush1.bf16.xpose.msra.mxu0 0
        %3329 = vmatprep.subr.bf16.mxu0 0
        %3330 = vmatpush1.bf16.xpose.msra.mxu0 0
        %3331 = vmatprep.subr.bf16.mxu0 0
        %3332 = vmatpush1.bf16.xpose.msra.mxu0 0
        %3333 = vmatprep.subr.bf16.mxu0 0
        %3334 = vmatpush1.bf16.xpose.msra.mxu0 0
        %3335 = vmatprep.subr.bf16.mxu0 0
        %3336 = vmatpush1.bf16.xpose.msra.mxu0 0
        %3337 = vmatprep.subr.bf16.mxu0 0
        %3338 = vmatpush1.bf16.xpose.msra.mxu0 0
        %3339 = vmatprep.subr.bf16.mxu0 0
        %3340 = vmatpush1.bf16.xpose.msra.mxu0 0
        %3341 = vmatprep.mubr.bf16.mxu0 %v965
        %3342 = vmatmul.mubr.bf16.gmra.mrb[0].mxu0 %v964
        %v3343 = vpop.f32.mrb[0].mxu0
        %v3344 = vadd.f32 %v3304, %v3343
        %v3345 = vpop.f32.mrb[0].mxu0
        %v3346 = vpop.f32.mrb[0].mxu0
        %v3347 = vpop.f32.mrb[0].mxu0
        %3348 = vdwg.mxu0
        %3349 = vmatprep.subr.bf16.mxu0 %v1448
        %3350 = vmatpush1.bf16.xpose.msra.mxu0 %v1447
        %3351 = vmatprep.subr.bf16.mxu0 0
        %3352 = vmatpush1.bf16.xpose.msra.mxu0 0
        %3353 = vmatprep.subr.bf16.mxu0 0
        %3354 = vmatpush1.bf16.xpose.msra.mxu0 0
        %3355 = vmatprep.subr.bf16.mxu0 0
        %3356 = vmatpush1.bf16.xpose.msra.mxu0 0
        %3357 = vmatprep.subr.bf16.mxu0 0
        %3358 = vmatpush1.bf16.xpose.msra.mxu0 0
        %3359 = vmatprep.subr.bf16.mxu0 0
        %3360 = vmatpush1.bf16.xpose.msra.mxu0 0
        %3361 = vmatprep.subr.bf16.mxu0 0
        %3362 = vmatpush1.bf16.xpose.msra.mxu0 0
        %3363 = vmatprep.subr.bf16.mxu0 0
        %3364 = vmatpush1.bf16.xpose.msra.mxu0 0
        %3365 = vmatprep.subr.bf16.mxu0 0
        %3366 = vmatpush1.bf16.xpose.msra.mxu0 0
        %3367 = vmatprep.subr.bf16.mxu0 0
        %3368 = vmatpush1.bf16.xpose.msra.mxu0 0
        %3369 = vmatprep.subr.bf16.mxu0 0
        %3370 = vmatpush1.bf16.xpose.msra.mxu0 0
        %3371 = vmatprep.subr.bf16.mxu0 0
        %3372 = vmatpush1.bf16.xpose.msra.mxu0 0
        %3373 = vmatprep.subr.bf16.mxu0 0
        %3374 = vmatpush1.bf16.xpose.msra.mxu0 0
        %3375 = vmatprep.subr.bf16.mxu0 0
        %3376 = vmatpush1.bf16.xpose.msra.mxu0 0
        %3377 = vmatprep.subr.bf16.mxu0 0
        %3378 = vmatpush1.bf16.xpose.msra.mxu0 0
        %3379 = vmatprep.subr.bf16.mxu0 0
        %3380 = vmatpush1.bf16.xpose.msra.mxu0 0
        %3381 = vmatprep.mubr.bf16.mxu0 %v967
        %3382 = vmatmul.mubr.bf16.gmra.mrb[0].mxu0 %v966
        %v3383 = vpop.f32.mrb[0].mxu0
        %v3384 = vadd.f32 %v3344, %v3383
        %v3385 = vpop.f32.mrb[0].mxu0
        %v3386 = vpop.f32.mrb[0].mxu0
        %v3387 = vpop.f32.mrb[0].mxu0
        %3388 = vdwg.mxu0
        %3389 = vmatprep.subr.bf16.mxu0 %v1450
        %3390 = vmatpush1.bf16.xpose.msra.mxu0 %v1449
        %3391 = vmatprep.subr.bf16.mxu0 0
        %3392 = vmatpush1.bf16.xpose.msra.mxu0 0
        %3393 = vmatprep.subr.bf16.mxu0 0
        %3394 = vmatpush1.bf16.xpose.msra.mxu0 0
        %3395 = vmatprep.subr.bf16.mxu0 0
        %3396 = vmatpush1.bf16.xpose.msra.mxu0 0
        %3397 = vmatprep.subr.bf16.mxu0 0
        %3398 = vmatpush1.bf16.xpose.msra.mxu0 0
        %3399 = vmatprep.subr.bf16.mxu0 0
        %3400 = vmatpush1.bf16.xpose.msra.mxu0 0
        %3401 = vmatprep.subr.bf16.mxu0 0
        %3402 = vmatpush1.bf16.xpose.msra.mxu0 0
        %3403 = vmatprep.subr.bf16.mxu0 0
        %3404 = vmatpush1.bf16.xpose.msra.mxu0 0
        %3405 = vmatprep.subr.bf16.mxu0 0
        %3406 = vmatpush1.bf16.xpose.msra.mxu0 0
        %3407 = vmatprep.subr.bf16.mxu0 0
        %3408 = vmatpush1.bf16.xpose.msra.mxu0 0
        %3409 = vmatprep.subr.bf16.mxu0 0
        %3410 = vmatpush1.bf16.xpose.msra.mxu0 0
        %3411 = vmatprep.subr.bf16.mxu0 0
        %3412 = vmatpush1.bf16.xpose.msra.mxu0 0
        %3413 = vmatprep.subr.bf16.mxu0 0
        %3414 = vmatpush1.bf16.xpose.msra.mxu0 0
        %3415 = vmatprep.subr.bf16.mxu0 0
        %3416 = vmatpush1.bf16.xpose.msra.mxu0 0
        %3417 = vmatprep.subr.bf16.mxu0 0
        %3418 = vmatpush1.bf16.xpose.msra.mxu0 0
        %3419 = vmatprep.subr.bf16.mxu0 0
        %3420 = vmatpush1.bf16.xpose.msra.mxu0 0
        %3421 = vmatprep.mubr.bf16.mxu0 %v969
        %3422 = vmatmul.mubr.bf16.gmra.mrb[0].mxu0 %v968
        %v3423 = vpop.f32.mrb[0].mxu0
        %v3424 = vadd.f32 %v3384, %v3423
        %v3425 = vpop.f32.mrb[0].mxu0
        %v3426 = vpop.f32.mrb[0].mxu0
        %v3427 = vpop.f32.mrb[0].mxu0
        %3428 = vdwg.mxu0
        %3429 = vmatprep.subr.bf16.mxu0 %v1452
        %3430 = vmatpush1.bf16.xpose.msra.mxu0 %v1451
        %3431 = vmatprep.subr.bf16.mxu0 0
        %3432 = vmatpush1.bf16.xpose.msra.mxu0 0
        %3433 = vmatprep.subr.bf16.mxu0 0
        %3434 = vmatpush1.bf16.xpose.msra.mxu0 0
        %3435 = vmatprep.subr.bf16.mxu0 0
        %3436 = vmatpush1.bf16.xpose.msra.mxu0 0
        %3437 = vmatprep.subr.bf16.mxu0 0
        %3438 = vmatpush1.bf16.xpose.msra.mxu0 0
        %3439 = vmatprep.subr.bf16.mxu0 0
        %3440 = vmatpush1.bf16.xpose.msra.mxu0 0
        %3441 = vmatprep.subr.bf16.mxu0 0
        %3442 = vmatpush1.bf16.xpose.msra.mxu0 0
        %3443 = vmatprep.subr.bf16.mxu0 0
        %3444 = vmatpush1.bf16.xpose.msra.mxu0 0
        %3445 = vmatprep.subr.bf16.mxu0 0
        %3446 = vmatpush1.bf16.xpose.msra.mxu0 0
        %3447 = vmatprep.subr.bf16.mxu0 0
        %3448 = vmatpush1.bf16.xpose.msra.mxu0 0
        %3449 = vmatprep.subr.bf16.mxu0 0
        %3450 = vmatpush1.bf16.xpose.msra.mxu0 0
        %3451 = vmatprep.subr.bf16.mxu0 0
        %3452 = vmatpush1.bf16.xpose.msra.mxu0 0
        %3453 = vmatprep.subr.bf16.mxu0 0
        %3454 = vmatpush1.bf16.xpose.msra.mxu0 0
        %3455 = vmatprep.subr.bf16.mxu0 0
        %3456 = vmatpush1.bf16.xpose.msra.mxu0 0
        %3457 = vmatprep.subr.bf16.mxu0 0
        %3458 = vmatpush1.bf16.xpose.msra.mxu0 0
        %3459 = vmatprep.subr.bf16.mxu0 0
        %3460 = vmatpush1.bf16.xpose.msra.mxu0 0
        %3461 = vmatprep.mubr.bf16.mxu0 %v971
        %3462 = vmatmul.mubr.bf16.gmra.mrb[0].mxu0 %v970
        %v3463 = vpop.f32.mrb[0].mxu0
        %v3464 = vadd.f32 %v3424, %v3463
        %v3465 = vpop.f32.mrb[0].mxu0
        %v3466 = vpop.f32.mrb[0].mxu0
        %v3467 = vpop.f32.mrb[0].mxu0
        %3468 = vdwg.mxu0
        %v3469 = vadd.f32 %v972, %v3464
        %vm3470 = vcmask 91136
        %3471 = vst.msk [vmem:[#allocation2] sm:$0x3] %vm3470, %v3469
        %p3472 = scmp.eq.s32.totalorder %s29, 3
        // Predicated region
        $region61: #{tpu_custom_call.1} parent=39 // pred_check
          %p3473 = pneg %p3472
        $region62: #{tpu_custom_call.1} parent=39 // pred_check_branch
          %3475 = sbr.rel (%p3473) target = $region64
        $region63: #{tpu_custom_call.1} parent=39 // pred_region
          %v3476 = vld [vmem:[#allocation2] sm:$0x3]
          %v3477 = vld [vmem:[#allocation8] sm:$0x1]
          %v3479 = vlaneseq
          %v3480 = vshrl.u32 %v3479, 7
          %v3481 = vsub.s32 0, %v3480
          %v3482 = vrot.slane %v3477, %v3481
          %v3484 = vadd.f32 %v3476, %v3482
          %v3485 = vmax.f32 %v3484, 0.0
          %v3486 = vld [vmem:[%s3] sm:$0xff]
          %v3487 = vld [vmem:[%s3 + $0x8] sm:$0xf]
          %v3488 = vld [vmem:[#allocation9] sm:$0x1]
          %v3490 = vlaneseq
          %v3491 = vshrl.u32 %v3490, 7
          %v3492 = vsub.s32 0, %v3491
          %v3493 = vrot.slane %v3488, %v3492
          %vm3495 = vcmask 97280
          %v3497 = vsel %vm3495, %v3485, 0
          %vm3499 = vcmask 1043456
          %v3501 = vsel %vm3499, %v3487, 0
          %3503 = vmatprep.subr.mxu0 0.0
          %3504 = vmatpush1.msra.mxu0 %v3486
          %3505 = vmatprep.subr.mxu0 0.0
          %3506 = vmatpush1.msra.mxu0 %v3501
          %3507 = vmatprep.subr.mxu0 0.0
          %3508 = vmatpush1.msra.mxu0 0.0
          %3509 = vmatprep.subr.mxu0 0.0
          %3510 = vmatpush1.msra.mxu0 0.0
          %3511 = vmatprep.subr.mxu0 0.0
          %3512 = vmatpush1.msra.mxu0 0.0
          %3513 = vmatprep.subr.mxu0 0.0
          %3514 = vmatpush1.msra.mxu0 0.0
          %3515 = vmatprep.subr.mxu0 0.0
          %3516 = vmatpush1.msra.mxu0 0.0
          %3517 = vmatprep.subr.mxu0 0.0
          %3518 = vmatpush1.msra.mxu0 0.0
          %3519 = vmatprep.subr.mxu0 0.0
          %3520 = vmatpush1.msra.mxu0 0.0
          %3521 = vmatprep.subr.mxu0 0.0
          %3522 = vmatpush1.msra.mxu0 0.0
          %3523 = vmatprep.subr.mxu0 0.0
          %3524 = vmatpush1.msra.mxu0 0.0
          %3525 = vmatprep.subr.mxu0 0.0
          %3526 = vmatpush1.msra.mxu0 0.0
          %3527 = vmatprep.subr.mxu0 0.0
          %3528 = vmatpush1.msra.mxu0 0.0
          %3529 = vmatprep.subr.mxu0 0.0
          %3530 = vmatpush1.msra.mxu0 0.0
          %3531 = vmatprep.subr.mxu0 0.0
          %3532 = vmatpush1.msra.mxu0 0.0
          %3533 = vmatprep.subr.mxu0 0.0
          %3534 = vmatpush1.msra.mxu0 0.0
          %3535 = vmatprep.subr.mxu0 0.0
          %3536 = vmatpush1.msra.mxu0 0.0
          %3537 = vmatprep.subr.mxu0 0.0
          %3538 = vmatpush1.msra.mxu0 0.0
          %3539 = vmatprep.subr.mxu0 0.0
          %3540 = vmatpush1.msra.mxu0 0.0
          %3541 = vmatprep.subr.mxu0 0.0
          %3542 = vmatpush1.msra.mxu0 0.0
          %3543 = vmatprep.subr.mxu0 0.0
          %3544 = vmatpush1.msra.mxu0 0.0
          %3545 = vmatprep.subr.mxu0 0.0
          %3546 = vmatpush1.msra.mxu0 0.0
          %3547 = vmatprep.subr.mxu0 0.0
          %3548 = vmatpush1.msra.mxu0 0.0
          %3549 = vmatprep.subr.mxu0 0.0
          %3550 = vmatpush1.msra.mxu0 0.0
          %3551 = vmatprep.subr.mxu0 0.0
          %3552 = vmatpush1.msra.mxu0 0.0
          %3553 = vmatprep.subr.mxu0 0.0
          %3554 = vmatpush1.msra.mxu0 0.0
          %3555 = vmatprep.subr.mxu0 0.0
          %3556 = vmatpush1.msra.mxu0 0.0
          %3557 = vmatprep.subr.mxu0 0.0
          %3558 = vmatpush1.msra.mxu0 0.0
          %3559 = vmatprep.subr.mxu0 0.0
          %3560 = vmatpush1.msra.mxu0 0.0
          %3561 = vmatprep.subr.mxu0 0.0
          %3562 = vmatpush1.msra.mxu0 0.0
          %3563 = vmatprep.subr.mxu0 0.0
          %3564 = vmatpush1.msra.mxu0 0.0
          %3565 = vmatprep.subr.mxu0 0.0
          %3566 = vmatpush1.msra.mxu0 0.0
          %3567 = vmatprep.mubr.f32.mxu0 0.0
          %3568 = vmatmul.mubr.f32.gmra.mrb[0].mxu0 %v3497
          %v3569 = vpop.f32.mrb[0].mxu0
          %v3570 = vadd.f32 %v3493, %v3569
          %v3571 = vpop.f32.mrb[0].mxu0
          %3572 = vdwg.mxu0
          %vm3573 = vcmask 25600
          %v3574 = vsel %vm3573, %v3570, -inf
          %3575 = vmax.xlane.f32.xlu0 %v3574
          %v3576 = vpop.xlane.xlu0 %3575
          %v3577 = vsub.f32 %v3570, %v3576
          %v3578 = vmul.f32 %v3577, 1.442695
          %v3579 = vpow.pop %v3578
          %v3580 = vsel %vm3573, %v3579, 0.0
          %3581 = vadd.xlane.f32.xlu0 %v3580
          %v3582 = vpop.xlane.xlu0 %3581
          %v3583 = vrcp.pop %v3582
          %v3584 = vmul.f32 %v3579, %v3583
          %3585 = vst.msk [vmem:[#allocation11] sm:$0x3] %vm3573, %v3584
        $region64: #{tpu_custom_call.1} parent=39 // pred_fallthru
          _
        // Predicated region
        $region65: #{tpu_custom_call.1} parent=39 // pred_check
          %p3586 = pneg %p171
        $region66: #{tpu_custom_call.1} parent=39 // pred_check_branch
          %3588 = sbr.rel (%p3586) target = $region68
        $region67: #{tpu_custom_call.1} parent=39 // pred_region
          %s3590 = ssub.s32 32, 32
          %3591 = vsyncadd [#allocation5], %s3590
          %s3592 = smul.addr %s28, 32
          %s3593 = scalar_lea.hbm %s5, %s3592
          %s3595 = sshll.u32 [#allocation11], 4
          %s3596 = int_to_ptr.vmem [resolvable:$true] %s3595
          %3598 = dma.vmem_to_hbm [thread:$0]  %s3596, 32, %s3593, [#allocation5]
        $region68: #{tpu_custom_call.1} parent=39 // pred_fallthru
          _
        // Predicated region
        $region69: #{tpu_custom_call.1} parent=39 // pred_check
          %p3599 = pneg %p171
        $region70: #{tpu_custom_call.1} parent=39 // pred_check_branch
          %3601 = sbr.rel (%p3599) target = $region72
        $region71: #{tpu_custom_call.1} parent=39 // pred_region
          %3602 = dma.done [#allocation5], 32
        $region72: #{tpu_custom_call.1} parent=39 // pred_fallthru
          _
      $region40: #{tpu_custom_call.1} parent=5 // pred_fallthru
        _
      %p3603 = scmp.le.s32.totalorder 2, %s19
      // Predicated region
      $region73: #{tpu_custom_call.1} parent=5 // pred_check
        %p3604 = pneg %p3603
      $region74: #{tpu_custom_call.1} parent=5 // pred_check_branch
        %3606 = sbr.rel (%p3604) target = $region76
      $region75: #{tpu_custom_call.1} parent=5 // pred_region
        %s3607 = ssub.s32 %s19, 2
      $region76: #{tpu_custom_call.1} parent=5 // pred_fallthru
        _
    $region6: #{tpu_custom_call.1} parent=1 // loop_footer
      %s23 = sadd.s32 1, %s19
    $region7: #{tpu_custom_call.1} parent=1 // loop_footer_branch
      %18 = sbr.rel target = $region3
    $region8: #{tpu_custom_call.1} parent=1 // loop_exit
      _
    %3608 = vsyncpa [#allocation4], 1
    %s3609 = scalar_lea.sflag [#allocation4], 1
    %3610 = vsyncpa %s3609, 1
    %3611 = vsyncpa [#allocation7], 1
    %s3612 = scalar_lea.sflag [#allocation7], 1
    %3613 = vsyncpa %s3612, 1
    %3614 = vsyncpa [#allocation10], 1
    %3615 = vsyncpa [#allocation5], 1
    %s3616 = scalar_lea.sflag [#allocation5], 1
    %3617 = vsyncpa %s3616, 1

</llo_original>
